<compile_context>
chip_gen: v5e
topology: v5e:2x2
jax: 0.10.0
libtpu: 0.0.40
codegen_flags: <defaults>
</compile_context>

<pallas_src>
import jax
import jax.numpy as jnp
from jax.experimental import pallas as pl
from jax.experimental.pallas import tpu as pltpu


def _round_up(x, m):
    return (x + m - 1) // m * m


_VMEM_LIMIT = 32 * 1024 * 1024  # safe on v5e/v6e/v7x scoped-VMEM budgets


# ----------------------------------------------------------------------------
# Pallas kernels
# ----------------------------------------------------------------------------
def _conv_relu_pool_kernel(x_ref, w_ref, b_ref, o_ref):
    """Fused conv-as-matmul + bias + ReLU + 2x2/stride-2 max-pool.

    x_ref: (4, TM, Kp) bf16 -- im2col rows for the 4 positions of each 2x2
                               pooling window; TM pooled output pixels.
    w_ref: (Kp, Np)   bf16 -- flattened conv weights (VMEM-resident).
    b_ref: (1, Np)    f32  -- bias (padded output channels are zero).
    o_ref: (TM, Np)   bf16 -- pooled, ReLU'd activations (lane-dense Np=128).
    """
    w = w_ref[...]
    a0 = jnp.dot(x_ref[0], w, preferred_element_type=jnp.float32)
    a1 = jnp.dot(x_ref[1], w, preferred_element_type=jnp.float32)
    a2 = jnp.dot(x_ref[2], w, preferred_element_type=jnp.float32)
    a3 = jnp.dot(x_ref[3], w, preferred_element_type=jnp.float32)
    # relu(max_i(a_i) + b) == max_i(relu(a_i + b)): bias add + ReLU are
    # monotone, so pooling before the epilogue is exact.
    m = jnp.maximum(jnp.maximum(a0, a1), jnp.maximum(a2, a3))
    o_ref[...] = jnp.maximum(m + b_ref[...], 0.0).astype(o_ref.dtype)


def _fc_fused_kernel(x_ref, w1_ref, b1_ref, w2_ref, b2_ref, w3_ref, b3_ref,
                     o_ref):
    """fc1 -> ReLU -> fc2 -> ReLU -> fc3, fully fused (weights VMEM-resident)."""
    h = jnp.dot(x_ref[...], w1_ref[...], preferred_element_type=jnp.float32)
    h = jnp.maximum(h + b1_ref[...], 0.0)
    h = jnp.dot(h.astype(jnp.bfloat16), w2_ref[...],
                preferred_element_type=jnp.float32)
    h = jnp.maximum(h + b2_ref[...], 0.0)
    h = jnp.dot(h.astype(jnp.bfloat16), w3_ref[...],
                preferred_element_type=jnp.float32)
    o_ref[...] = (h + b3_ref[...]).astype(o_ref.dtype)


# ----------------------------------------------------------------------------
# Wrappers
# ----------------------------------------------------------------------------
def conv_relu_pool_pallas(x_nhwc, w_flat, b_pad, *, kh, kw, tm=256):
    """Valid conv (stride 1) + bias + ReLU + 2x2/2 max-pool on NHWC activations.

    x_nhwc: (B, H, W, C); w_flat: (Kp, Np) bf16 with rows in (kh, kw, c) order
    and zero-padded; b_pad: (1, Np) f32.  Returns (B, OH//2, OW//2, Np) bf16.
    """
    B, H, W, C = x_nhwc.shape
    OH, OW = H - kh + 1, W - kw + 1
    OH2, OW2 = OH // 2, OW // 2
    K = kh * kw * C
    Kp, Np = w_flat.shape
    assert K <= Kp and Kp % 128 == 0 and Np % 128 == 0

    x = x_nhwc.astype(jnp.bfloat16)
    # im2col: channel-contiguous gather (channels land on the lane dim).
    cols = [x[:, i:i + OH, j:j + OW, :] for i in range(kh) for j in range(kw)]
    p = jnp.concatenate(cols, axis=-1)                       # (B, OH, OW, K)
    # Group rows by their 2x2 pooling window -> leading "pool offset" axis.
    p = jnp.stack([p[:, 0::2, 0::2, :], p[:, 0::2, 1::2, :],
                   p[:, 1::2, 0::2, :], p[:, 1::2, 1::2, :]], axis=0)
    M = B * OH2 * OW2
    p = p.reshape(4, M, K)

    tm = min(tm, _round_up(M, 16))
    Mp = _round_up(M, tm)
    p = jnp.pad(p, ((0, 0), (0, Mp - M), (0, Kp - K)))       # zero pad M and K

    out = pl.pallas_call(
        _conv_relu_pool_kernel,
        out_shape=jax.ShapeDtypeStruct((Mp, Np), jnp.bfloat16),
        grid=(Mp // tm,),
        in_specs=[
            pl.BlockSpec((4, tm, Kp), lambda i: (0, i, 0)),
            pl.BlockSpec((Kp, Np), lambda i: (0, 0)),        # resident weights
            pl.BlockSpec((1, Np), lambda i: (0, 0)),         # resident bias
        ],
        out_specs=pl.BlockSpec((tm, Np), lambda i: (i, 0)),
        compiler_params=pltpu.CompilerParams(
            dimension_semantics=("parallel",),
            vmem_limit_bytes=_VMEM_LIMIT),
    )(p, w_flat, b_pad)
    return out[:M].reshape(B, OH2, OW2, Np)


def fc_fused_pallas(x, w1, b1, w2, b2, w3, b3, *, tb=256):
    """Fused fc1+fc2+fc3.  x: (B, K1p) bf16.  Returns (B, N3p) f32."""
    B, K1p = x.shape
    tb = min(tb, _round_up(B, 16))
    Bp = _round_up(B, tb)
    xp = jnp.pad(x, ((0, Bp - B), (0, 0)))
    n3 = w3.shape[1]
    out = pl.pallas_call(
        _fc_fused_kernel,
        out_shape=jax.ShapeDtypeStruct((Bp, n3), jnp.float32),
        grid=(Bp // tb,),
        in_specs=[
            pl.BlockSpec((tb, K1p), lambda i: (i, 0)),
            pl.BlockSpec(w1.shape, lambda i: (0, 0)),
            pl.BlockSpec((1, w1.shape[1]), lambda i: (0, 0)),
            pl.BlockSpec(w2.shape, lambda i: (0, 0)),
            pl.BlockSpec((1, w2.shape[1]), lambda i: (0, 0)),
            pl.BlockSpec(w3.shape, lambda i: (0, 0)),
            pl.BlockSpec((1, w3.shape[1]), lambda i: (0, 0)),
        ],
        out_specs=pl.BlockSpec((tb, n3), lambda i: (i, 0)),
        compiler_params=pltpu.CompilerParams(
            dimension_semantics=("parallel",),
            vmem_limit_bytes=_VMEM_LIMIT),
    )(xp, w1, b1, w2, b2, w3, b3)
    return out[:B]


# ----------------------------------------------------------------------------
# LeNet parameters (PyTorch layout) + one-time Pallas layout prep
# ----------------------------------------------------------------------------
def init_lenet_params(key):
    """Uniform(-1/sqrt(fan_in), 1/sqrt(fan_in)) init, PyTorch-style layouts."""
    def u(k, shape, fan_in):
        bound = 1.0 / jnp.sqrt(jnp.float32(fan_in))
        return jax.random.uniform(k, shape, jnp.float32, -bound, bound)

    ks = jax.random.split(key, 10)
    return {
        "conv1_w": u(ks[0], (6, 3, 5, 5), 3 * 5 * 5),
        "conv1_b": u(ks[1], (6,), 3 * 5 * 5),
        "conv2_w": u(ks[2], (16, 6, 5, 5), 6 * 5 * 5),
        "conv2_b": u(ks[3], (16,), 6 * 5 * 5),
        "fc1_w": u(ks[4], (256, 16 * 5 * 5), 16 * 5 * 5),
        "fc1_b": u(ks[5], (256,), 16 * 5 * 5),
        "fc2_w": u(ks[6], (128, 256), 256),
        "fc2_b": u(ks[7], (128,), 256),
        "fc3_w": u(ks[8], (100, 128), 128),
        "fc3_b": u(ks[9], (100,), 128),
    }


def prepare_pallas_params(params):
    """One-time transpose / permute / pad / bf16-cast for the Pallas path."""
    bf = jnp.bfloat16

    def conv_pack(w, b, k_pad, n_pad=128):
        oc, c, kh, kw = w.shape
        k = c * kh * kw
        wf = jnp.transpose(w, (2, 3, 1, 0)).reshape(kh * kw * c, oc)  # (K, OC)
        wf = jnp.pad(wf, ((0, k_pad - k), (0, n_pad - oc))).astype(bf)
        bb = jnp.pad(b, (0, n_pad - oc)).reshape(1, n_pad).astype(jnp.float32)
        return wf, bb

    c1w, c1b = conv_pack(params["conv1_w"], params["conv1_b"], 128)   # K 75->128
    c2w, c2b = conv_pack(params["conv2_w"], params["conv2_b"], 256)   # K 150->256

    # fc1: PyTorch columns are in (c, h, w) order over a 16x5x5 map; the Pallas
    # conv2 output is (B, 5, 5, 128) (channels 16..127 are exact zeros) and is
    # flattened in (h, w, c_pad) order -> build the matching (3200, 256) weight
    # with zero rows for the padded channels.
    f1 = params["fc1_w"].reshape(256, 16, 5, 5)          # (out, c, h, w)
    f1 = jnp.transpose(f1, (2, 3, 1, 0))                 # (h, w, c, out)
    f1 = jnp.pad(f1, ((0, 0), (0, 0), (0, 128 - 16), (0, 0)))
    f1 = f1.reshape(5 * 5 * 128, 256).astype(bf)
    f1b = params["fc1_b"].reshape(1, 256).astype(jnp.float32)

    f2 = params["fc2_w"].T.astype(bf)                                  # (256,128)
    f2b = params["fc2_b"].reshape(1, 128).astype(jnp.float32)

    f3 = jnp.pad(params["fc3_w"].T, ((0, 0), (0, 128 - 100))).astype(bf)  # (128,128)
    f3b = jnp.pad(params["fc3_b"], (0, 128 - 100)).reshape(1, 128).astype(jnp.float32)

    return {"conv1_w": c1w, "conv1_b": c1b, "conv2_w": c2w, "conv2_b": c2b,
            "fc1_w": f1, "fc1_b": f1b, "fc2_w": f2, "fc2_b": f2b,
            "fc3_w": f3, "fc3_b": f3b}


# ----------------------------------------------------------------------------
# Forward pass
# ----------------------------------------------------------------------------
@jax.jit
def _lenet_apply(x_nchw, pp):
    x = jnp.transpose(x_nchw, (0, 2, 3, 1))            # NCHW -> NHWC (only transpose)
    h = conv_relu_pool_pallas(x, pp["conv1_w"], pp["conv1_b"], kh=5, kw=5)
    h = conv_relu_pool_pallas(h[..., :6], pp["conv2_w"], pp["conv2_b"], kh=5, kw=5)
    b = h.shape[0]
    h = h.reshape(b, -1)                               # (B, 5*5*128), contiguous flatten
    logits = fc_fused_pallas(h, pp["fc1_w"], pp["fc1_b"], pp["fc2_w"],
                             pp["fc2_b"], pp["fc3_w"], pp["fc3_b"])
    return logits[:, :100]                             # drop padded logit lanes


def lenet_forward(x, pparams):
    """x: (B, 3, 32, 32) f32 NCHW -> (logits (B, 100), shape_dict)."""
    B, _, H, W = x.shape
    h1, w1 = (H - 4) // 2, (W - 4) // 2
    h2, w2 = (h1 - 4) // 2, (w1 - 4) // 2
    out = _lenet_apply(x, pparams)
    shape_dict = {1: [B, 6, h1, w1], 2: [B, 16, h2, w2], 3: [B, 16 * h2 * w2],
                  4: [B, 256], 5: [B, 128], 6: [B, 100]}
    return out, shape_dict


# ----------------------------------------------------------------------------
# Pure-JAX reference with matching bf16-in / f32-accumulate numerics
# ----------------------------------------------------------------------------
def lenet_reference(x, params):
    bf = jnp.bfloat16

    def conv(x, w, b):
        y = jax.lax.conv_general_dilated(
            x.astype(bf), w.astype(bf), window_strides=(1, 1), padding="VALID",
            dimension_numbers=("NCHW", "OIHW", "NCHW"),
            preferred_element_type=jnp.float32)
        return jnp.maximum(y + b[None, :, None, None], 0.0)

    def pool(x):
        return jax.lax.reduce_window(x, -jnp.inf, jax.lax.max,
                                     (1, 1, 2, 2), (1, 1, 2, 2), "VALID")

    def fc(h, w, b, relu):
        y = jnp.dot(h.astype(bf), w.T.astype(bf),
                    preferred_element_type=jnp.float32) + b
        return jnp.maximum(y, 0.0) if relu else y

    h = pool(conv(x, params["conv1_w"], params["conv1_b"]))
    h = pool(conv(h, params["conv2_w"], params["conv2_b"]))
    h = h.reshape(h.shape[0], -1)
    h = fc(h, params["fc1_w"], params["fc1_b"], True)
    h = fc(h, params["fc2_w"], params["fc2_b"], True)
    return fc(h, params["fc3_w"], params["fc3_b"], False)


# ----------------------------------------------------------------------------
if __name__ == "__main__":
    key = jax.random.PRNGKey(0)
    k_x, k_p = jax.random.split(key)

    # LeNet requires 32x32 spatial input for the 16*5*5 flatten to hold.
    B = 2
    x = jax.random.normal(k_x, (B, 3, 32, 32), dtype=jnp.float32)
    params = init_lenet_params(k_p)
    pparams = prepare_pallas_params(params)     # one-time layout/pad/bf16 prep

    out, shape_dict = lenet_forward(x, pparams)
    out = jax.block_until_ready(out)

    assert out.shape == (B, 100)
    assert shape_dict[1] == [B, 6, 14, 14]
    assert shape_dict[2] == [B, 16, 5, 5]
    assert shape_dict[3] == [B, 400]
    assert shape_dict[4] == [B, 256]
    assert shape_dict[5] == [B, 128]
    assert shape_dict[6] == [B, 100]

    ref = jax.block_until_ready(lenet_reference(x, params))
    assert jnp.allclose(out, ref, atol=1e-2, rtol=1e-2), "mismatch vs reference"

    print("KERNEL_OK")
</pallas_src>

<mosaic_0001>
module attributes {stable_mosaic.version = 11 : i64} {
  func.func @_conv_relu_pool_kernel(%arg0: i32, %arg1: memref<4x256x128xbf16, #tpu.memory_space<vmem>>, %arg2: memref<128x128xbf16, #tpu.memory_space<vmem>>, %arg3: memref<1x128xf32, #tpu.memory_space<vmem>>, %arg4: memref<256x128xbf16, #tpu.memory_space<vmem>>) attributes {dimension_semantics = [#tpu.dimension_semantics<parallel>], iteration_bounds = array<i64: 2>, scalar_prefetch = 0 : i64, scratch_operands = 0 : i64, tpu.core_type = #tpu.core_type<tc>, window_params = [{transform_indices = @transform_0, window_bounds = array<i64: 4, 256, 128>}, {pipeline_mode = #tpu.pipeline_mode<synchronous>, transform_indices = @transform_1, window_bounds = array<i64: 128, 128>}, {pipeline_mode = #tpu.pipeline_mode<synchronous>, transform_indices = @transform_2, window_bounds = array<i64: 1, 128>}, {transform_indices = @transform_3, window_bounds = array<i64: 256, 128>}]} {
    %c0 = arith.constant 0 : index
    %c0_0 = arith.constant 0 : index
    %0 = vector.load %arg2[%c0, %c0_0] : memref<128x128xbf16, #tpu.memory_space<vmem>>, vector<128x128xbf16>
    %c0_1 = arith.constant 0 : index
    %c0_2 = arith.constant 0 : index
    %c0_3 = arith.constant 0 : index
    %1 = vector.load %arg1[%c0_1, %c0_2, %c0_3] : memref<4x256x128xbf16, #tpu.memory_space<vmem>>, vector<1x256x128xbf16>
    %2 = vector.shape_cast %1 : vector<1x256x128xbf16> to vector<256x128xbf16>
    %cst = arith.constant dense<0.000000e+00> : vector<256x128xf32>
    %3 = tpu.matmul %2, %0, %cst {dimension_numbers = #tpu.dot_dimension_numbers<[1], [0], [0], [1], [0, 0, 1, 1], [], []>} : vector<256x128xbf16>, vector<128x128xbf16>, vector<256x128xf32> -> vector<256x128xf32>
    %c1 = arith.constant 1 : index
    %c0_4 = arith.constant 0 : index
    %c0_5 = arith.constant 0 : index
    %4 = vector.load %arg1[%c1, %c0_4, %c0_5] : memref<4x256x128xbf16, #tpu.memory_space<vmem>>, vector<1x256x128xbf16>
    %5 = vector.shape_cast %4 : vector<1x256x128xbf16> to vector<256x128xbf16>
    %cst_6 = arith.constant dense<0.000000e+00> : vector<256x128xf32>
    %6 = tpu.matmul %5, %0, %cst_6 {dimension_numbers = #tpu.dot_dimension_numbers<[1], [0], [0], [1], [0, 0, 1, 1], [], []>} : vector<256x128xbf16>, vector<128x128xbf16>, vector<256x128xf32> -> vector<256x128xf32>
    %c2 = arith.constant 2 : index
    %c0_7 = arith.constant 0 : index
    %c0_8 = arith.constant 0 : index
    %7 = vector.load %arg1[%c2, %c0_7, %c0_8] : memref<4x256x128xbf16, #tpu.memory_space<vmem>>, vector<1x256x128xbf16>
    %8 = vector.shape_cast %7 : vector<1x256x128xbf16> to vector<256x128xbf16>
    %cst_9 = arith.constant dense<0.000000e+00> : vector<256x128xf32>
    %9 = tpu.matmul %8, %0, %cst_9 {dimension_numbers = #tpu.dot_dimension_numbers<[1], [0], [0], [1], [0, 0, 1, 1], [], []>} : vector<256x128xbf16>, vector<128x128xbf16>, vector<256x128xf32> -> vector<256x128xf32>
    %c3 = arith.constant 3 : index
    %c0_10 = arith.constant 0 : index
    %c0_11 = arith.constant 0 : index
    %10 = vector.load %arg1[%c3, %c0_10, %c0_11] : memref<4x256x128xbf16, #tpu.memory_space<vmem>>, vector<1x256x128xbf16>
    %11 = vector.shape_cast %10 : vector<1x256x128xbf16> to vector<256x128xbf16>
    %cst_12 = arith.constant dense<0.000000e+00> : vector<256x128xf32>
    %12 = tpu.matmul %11, %0, %cst_12 {dimension_numbers = #tpu.dot_dimension_numbers<[1], [0], [0], [1], [0, 0, 1, 1], [], []>} : vector<256x128xbf16>, vector<128x128xbf16>, vector<256x128xf32> -> vector<256x128xf32>
    %13 = arith.maximumf %3, %6 : vector<256x128xf32>
    %14 = arith.maximumf %9, %12 : vector<256x128xf32>
    %15 = arith.maximumf %13, %14 : vector<256x128xf32>
    %c0_13 = arith.constant 0 : index
    %c0_14 = arith.constant 0 : index
    %16 = vector.load %arg3[%c0_13, %c0_14] : memref<1x128xf32, #tpu.memory_space<vmem>>, vector<1x128xf32>
    %17 = vector.broadcast %16 : vector<1x128xf32> to vector<256x128xf32>
    %18 = arith.addf %15, %17 : vector<256x128xf32>
    %cst_15 = arith.constant 0.000000e+00 : f32
    %19 = vector.broadcast %cst_15 : f32 to vector<256x128xf32>
    %20 = arith.maximumf %18, %19 : vector<256x128xf32>
    %21 = arith.truncf %20 : vector<256x128xf32> to vector<256x128xbf16>
    %c0_16 = arith.constant 0 : index
    %c0_17 = arith.constant 0 : index
    %22 = vector.load %arg4[%c0_16, %c0_17] : memref<256x128xbf16, #tpu.memory_space<vmem>>, vector<256x128xbf16>
    tpu.vector_store %arg4[%c0_16, %c0_17], %21 {strides = array<i32>} : memref<256x128xbf16, #tpu.memory_space<vmem>>, vector<256x128xbf16>,
    return
  }
  func.func @transform_0(%arg0: i32) -> (i32, i32, i32) {
    %c0_i32 = arith.constant 0 : i32
    %c0_i32_0 = arith.constant 0 : i32
    %c0_i32_1 = arith.constant 0 : i32
    return %c0_i32, %arg0, %c0_i32_0 : i32, i32, i32
  }
  func.func @transform_1(%arg0: i32) -> (i32, i32) {
    %c0_i32 = arith.constant 0 : i32
    %c0_i32_0 = arith.constant 0 : i32
    %c0_i32_1 = arith.constant 0 : i32
    return %c0_i32, %c0_i32_0 : i32, i32
  }
  func.func @transform_2(%arg0: i32) -> (i32, i32) {
    %c0_i32 = arith.constant 0 : i32
    %c0_i32_0 = arith.constant 0 : i32
    %c0_i32_1 = arith.constant 0 : i32
    return %c0_i32, %c0_i32_0 : i32, i32
  }
  func.func @transform_3(%arg0: i32) -> (i32, i32) {
    %c0_i32 = arith.constant 0 : i32
    %c0_i32_0 = arith.constant 0 : i32
    return %arg0, %c0_i32 : i32, i32
  }
}

module attributes {stable_mosaic.version = 11 : i64} {
  func.func @_conv_relu_pool_kernel(%arg0: i32, %arg1: memref<4x64x256xbf16, #tpu.memory_space<vmem>>, %arg2: memref<256x128xbf16, #tpu.memory_space<vmem>>, %arg3: memref<1x128xf32, #tpu.memory_space<vmem>>, %arg4: memref<64x128xbf16, #tpu.memory_space<vmem>>) attributes {dimension_semantics = [#tpu.dimension_semantics<parallel>], iteration_bounds = array<i64: 1>, scalar_prefetch = 0 : i64, scratch_operands = 0 : i64, tpu.core_type = #tpu.core_type<tc>, window_params = [{transform_indices = @transform_0, window_bounds = array<i64: 4, 64, 256>}, {pipeline_mode = #tpu.pipeline_mode<synchronous>, transform_indices = @transform_1, window_bounds = array<i64: 256, 128>}, {pipeline_mode = #tpu.pipeline_mode<synchronous>, transform_indices = @transform_2, window_bounds = array<i64: 1, 128>}, {transform_indices = @transform_3, window_bounds = array<i64: 64, 128>}]} {
    %c0 = arith.constant 0 : index
    %c0_0 = arith.constant 0 : index
    %0 = vector.load %arg2[%c0, %c0_0] : memref<256x128xbf16, #tpu.memory_space<vmem>>, vector<256x128xbf16>
    %c0_1 = arith.constant 0 : index
    %c0_2 = arith.constant 0 : index
    %c0_3 = arith.constant 0 : index
    %1 = vector.load %arg1[%c0_1, %c0_2, %c0_3] : memref<4x64x256xbf16, #tpu.memory_space<vmem>>, vector<1x64x256xbf16>
    %2 = vector.shape_cast %1 : vector<1x64x256xbf16> to vector<64x256xbf16>
    %cst = arith.constant dense<0.000000e+00> : vector<64x128xf32>
    %3 = tpu.matmul %2, %0, %cst {dimension_numbers = #tpu.dot_dimension_numbers<[1], [0], [0], [1], [0, 0, 1, 1], [], []>} : vector<64x256xbf16>, vector<256x128xbf16>, vector<64x128xf32> -> vector<64x128xf32>
    %c1 = arith.constant 1 : index
    %c0_4 = arith.constant 0 : index
    %c0_5 = arith.constant 0 : index
    %4 = vector.load %arg1[%c1, %c0_4, %c0_5] : memref<4x64x256xbf16, #tpu.memory_space<vmem>>, vector<1x64x256xbf16>
    %5 = vector.shape_cast %4 : vector<1x64x256xbf16> to vector<64x256xbf16>
    %cst_6 = arith.constant dense<0.000000e+00> : vector<64x128xf32>
    %6 = tpu.matmul %5, %0, %cst_6 {dimension_numbers = #tpu.dot_dimension_numbers<[1], [0], [0], [1], [0, 0, 1, 1], [], []>} : vector<64x256xbf16>, vector<256x128xbf16>, vector<64x128xf32> -> vector<64x128xf32>
    %c2 = arith.constant 2 : index
    %c0_7 = arith.constant 0 : index
    %c0_8 = arith.constant 0 : index
    %7 = vector.load %arg1[%c2, %c0_7, %c0_8] : memref<4x64x256xbf16, #tpu.memory_space<vmem>>, vector<1x64x256xbf16>
    %8 = vector.shape_cast %7 : vector<1x64x256xbf16> to vector<64x256xbf16>
    %cst_9 = arith.constant dense<0.000000e+00> : vector<64x128xf32>
    %9 = tpu.matmul %8, %0, %cst_9 {dimension_numbers = #tpu.dot_dimension_numbers<[1], [0], [0], [1], [0, 0, 1, 1], [], []>} : vector<64x256xbf16>, vector<256x128xbf16>, vector<64x128xf32> -> vector<64x128xf32>
    %c3 = arith.constant 3 : index
    %c0_10 = arith.constant 0 : index
    %c0_11 = arith.constant 0 : index
    %10 = vector.load %arg1[%c3, %c0_10, %c0_11] : memref<4x64x256xbf16, #tpu.memory_space<vmem>>, vector<1x64x256xbf16>
    %11 = vector.shape_cast %10 : vector<1x64x256xbf16> to vector<64x256xbf16>
    %cst_12 = arith.constant dense<0.000000e+00> : vector<64x128xf32>
    %12 = tpu.matmul %11, %0, %cst_12 {dimension_numbers = #tpu.dot_dimension_numbers<[1], [0], [0], [1], [0, 0, 1, 1], [], []>} : vector<64x256xbf16>, vector<256x128xbf16>, vector<64x128xf32> -> vector<64x128xf32>
    %13 = arith.maximumf %3, %6 : vector<64x128xf32>
    %14 = arith.maximumf %9, %12 : vector<64x128xf32>
    %15 = arith.maximumf %13, %14 : vector<64x128xf32>
    %c0_13 = arith.constant 0 : index
    %c0_14 = arith.constant 0 : index
    %16 = vector.load %arg3[%c0_13, %c0_14] : memref<1x128xf32, #tpu.memory_space<vmem>>, vector<1x128xf32>
    %17 = vector.broadcast %16 : vector<1x128xf32> to vector<64x128xf32>
    %18 = arith.addf %15, %17 : vector<64x128xf32>
    %cst_15 = arith.constant 0.000000e+00 : f32
    %19 = vector.broadcast %cst_15 : f32 to vector<64x128xf32>
    %20 = arith.maximumf %18, %19 : vector<64x128xf32>
    %21 = arith.truncf %20 : vector<64x128xf32> to vector<64x128xbf16>
    %c0_16 = arith.constant 0 : index
    %c0_17 = arith.constant 0 : index
    %22 = vector.load %arg4[%c0_16, %c0_17] : memref<64x128xbf16, #tpu.memory_space<vmem>>, vector<64x128xbf16>
    tpu.vector_store %arg4[%c0_16, %c0_17], %21 {strides = array<i32>} : memref<64x128xbf16, #tpu.memory_space<vmem>>, vector<64x128xbf16>,
    return
  }
  func.func @transform_0(%arg0: i32) -> (i32, i32, i32) {
    %c0_i32 = arith.constant 0 : i32
    %c0_i32_0 = arith.constant 0 : i32
    %c0_i32_1 = arith.constant 0 : i32
    return %c0_i32, %arg0, %c0_i32_0 : i32, i32, i32
  }
  func.func @transform_1(%arg0: i32) -> (i32, i32) {
    %c0_i32 = arith.constant 0 : i32
    %c0_i32_0 = arith.constant 0 : i32
    %c0_i32_1 = arith.constant 0 : i32
    return %c0_i32, %c0_i32_0 : i32, i32
  }
  func.func @transform_2(%arg0: i32) -> (i32, i32) {
    %c0_i32 = arith.constant 0 : i32
    %c0_i32_0 = arith.constant 0 : i32
    %c0_i32_1 = arith.constant 0 : i32
    return %c0_i32, %c0_i32_0 : i32, i32
  }
  func.func @transform_3(%arg0: i32) -> (i32, i32) {
    %c0_i32 = arith.constant 0 : i32
    %c0_i32_0 = arith.constant 0 : i32
    return %arg0, %c0_i32 : i32, i32
  }
}

module attributes {stable_mosaic.version = 11 : i64} {
  func.func @_fc_fused_kernel(%arg0: i32, %arg1: memref<16x3200xbf16, #tpu.memory_space<vmem>>, %arg2: memref<3200x256xbf16, #tpu.memory_space<vmem>>, %arg3: memref<1x256xf32, #tpu.memory_space<vmem>>, %arg4: memref<256x128xbf16, #tpu.memory_space<vmem>>, %arg5: memref<1x128xf32, #tpu.memory_space<vmem>>, %arg6: memref<128x128xbf16, #tpu.memory_space<vmem>>, %arg7: memref<1x128xf32, #tpu.memory_space<vmem>>, %arg8: memref<16x128xf32, #tpu.memory_space<vmem>>) attributes {dimension_semantics = [#tpu.dimension_semantics<parallel>], iteration_bounds = array<i64: 1>, scalar_prefetch = 0 : i64, scratch_operands = 0 : i64, tpu.core_type = #tpu.core_type<tc>, window_params = [{transform_indices = @transform_0, window_bounds = array<i64: 16, 3200>}, {pipeline_mode = #tpu.pipeline_mode<synchronous>, transform_indices = @transform_1, window_bounds = array<i64: 3200, 256>}, {pipeline_mode = #tpu.pipeline_mode<synchronous>, transform_indices = @transform_2, window_bounds = array<i64: 1, 256>}, {pipeline_mode = #tpu.pipeline_mode<synchronous>, transform_indices = @transform_3, window_bounds = array<i64: 256, 128>}, {pipeline_mode = #tpu.pipeline_mode<synchronous>, transform_indices = @transform_4, window_bounds = array<i64: 1, 128>}, {pipeline_mode = #tpu.pipeline_mode<synchronous>, transform_indices = @transform_5, window_bounds = array<i64: 128, 128>}, {pipeline_mode = #tpu.pipeline_mode<synchronous>, transform_indices = @transform_6, window_bounds = array<i64: 1, 128>}, {transform_indices = @transform_7, window_bounds = array<i64: 16, 128>}]} {
    %c0 = arith.constant 0 : index
    %c0_0 = arith.constant 0 : index
    %0 = vector.load %arg1[%c0, %c0_0] : memref<16x3200xbf16, #tpu.memory_space<vmem>>, vector<16x3200xbf16>
    %c0_1 = arith.constant 0 : index
    %c0_2 = arith.constant 0 : index
    %1 = vector.load %arg2[%c0_1, %c0_2] : memref<3200x256xbf16, #tpu.memory_space<vmem>>, vector<3200x256xbf16>
    %cst = arith.constant dense<0.000000e+00> : vector<16x256xf32>
    %2 = tpu.matmul %0, %1, %cst {dimension_numbers = #tpu.dot_dimension_numbers<[1], [0], [0], [1], [0, 0, 1, 1], [], []>} : vector<16x3200xbf16>, vector<3200x256xbf16>, vector<16x256xf32> -> vector<16x256xf32>
    %c0_3 = arith.constant 0 : index
    %c0_4 = arith.constant 0 : index
    %3 = vector.load %arg3[%c0_3, %c0_4] : memref<1x256xf32, #tpu.memory_space<vmem>>, vector<1x256xf32>
    %4 = vector.broadcast %3 : vector<1x256xf32> to vector<16x256xf32>
    %5 = arith.addf %2, %4 : vector<16x256xf32>
    %cst_5 = arith.constant 0.000000e+00 : f32
    %6 = vector.broadcast %cst_5 : f32 to vector<16x256xf32>
    %7 = arith.maximumf %5, %6 : vector<16x256xf32>
    %8 = arith.truncf %7 : vector<16x256xf32> to vector<16x256xbf16>
    %c0_6 = arith.constant 0 : index
    %c0_7 = arith.constant 0 : index
    %9 = vector.load %arg4[%c0_6, %c0_7] : memref<256x128xbf16, #tpu.memory_space<vmem>>, vector<256x128xbf16>
    %cst_8 = arith.constant dense<0.000000e+00> : vector<16x128xf32>
    %10 = tpu.matmul %8, %9, %cst_8 {dimension_numbers = #tpu.dot_dimension_numbers<[1], [0], [0], [1], [0, 0, 1, 1], [], []>} : vector<16x256xbf16>, vector<256x128xbf16>, vector<16x128xf32> -> vector<16x128xf32>
    %c0_9 = arith.constant 0 : index
    %c0_10 = arith.constant 0 : index
    %11 = vector.load %arg5[%c0_9, %c0_10] : memref<1x128xf32, #tpu.memory_space<vmem>>, vector<1x128xf32>
    %12 = vector.broadcast %11 : vector<1x128xf32> to vector<16x128xf32>
    %13 = arith.addf %10, %12 : vector<16x128xf32>
    %cst_11 = arith.constant 0.000000e+00 : f32
    %14 = vector.broadcast %cst_11 : f32 to vector<16x128xf32>
    %15 = arith.maximumf %13, %14 : vector<16x128xf32>
    %16 = arith.truncf %15 : vector<16x128xf32> to vector<16x128xbf16>
    %c0_12 = arith.constant 0 : index
    %c0_13 = arith.constant 0 : index
    %17 = vector.load %arg6[%c0_12, %c0_13] : memref<128x128xbf16, #tpu.memory_space<vmem>>, vector<128x128xbf16>
    %cst_14 = arith.constant dense<0.000000e+00> : vector<16x128xf32>
    %18 = tpu.matmul %16, %17, %cst_14 {dimension_numbers = #tpu.dot_dimension_numbers<[1], [0], [0], [1], [0, 0, 1, 1], [], []>} : vector<16x128xbf16>, vector<128x128xbf16>, vector<16x128xf32> -> vector<16x128xf32>
    %c0_15 = arith.constant 0 : index
    %c0_16 = arith.constant 0 : index
    %19 = vector.load %arg7[%c0_15, %c0_16] : memref<1x128xf32, #tpu.memory_space<vmem>>, vector<1x128xf32>
    %20 = vector.broadcast %19 : vector<1x128xf32> to vector<16x128xf32>
    %21 = arith.addf %18, %20 : vector<16x128xf32>
    %c0_17 = arith.constant 0 : index
    %c0_18 = arith.constant 0 : index
    %22 = vector.load %arg8[%c0_17, %c0_18] : memref<16x128xf32, #tpu.memory_space<vmem>>, vector<16x128xf32>
    tpu.vector_store %arg8[%c0_17, %c0_18], %21 {strides = array<i32>} : memref<16x128xf32, #tpu.memory_space<vmem>>, vector<16x128xf32>,
    return
  }
  func.func @transform_0(%arg0: i32) -> (i32, i32) {
    %c0_i32 = arith.constant 0 : i32
    %c0_i32_0 = arith.constant 0 : i32
    return %arg0, %c0_i32 : i32, i32
  }
  func.func @transform_1(%arg0: i32) -> (i32, i32) {
    %c0_i32 = arith.constant 0 : i32
    %c0_i32_0 = arith.constant 0 : i32
    %c0_i32_1 = arith.constant 0 : i32
    return %c0_i32, %c0_i32_0 : i32, i32
  }
  func.func @transform_2(%arg0: i32) -> (i32, i32) {
    %c0_i32 = arith.constant 0 : i32
    %c0_i32_0 = arith.constant 0 : i32
    %c0_i32_1 = arith.constant 0 : i32
    return %c0_i32, %c0_i32_0 : i32, i32
  }
  func.func @transform_3(%arg0: i32) -> (i32, i32) {
    %c0_i32 = arith.constant 0 : i32
    %c0_i32_0 = arith.constant 0 : i32
    %c0_i32_1 = arith.constant 0 : i32
    return %c0_i32, %c0_i32_0 : i32, i32
  }
  func.func @transform_4(%arg0: i32) -> (i32, i32) {
    %c0_i32 = arith.constant 0 : i32
    %c0_i32_0 = arith.constant 0 : i32
    %c0_i32_1 = arith.constant 0 : i32
    return %c0_i32, %c0_i32_0 : i32, i32
  }
  func.func @transform_5(%arg0: i32) -> (i32, i32) {
    %c0_i32 = arith.constant 0 : i32
    %c0_i32_0 = arith.constant 0 : i32
    %c0_i32_1 = arith.constant 0 : i32
    return %c0_i32, %c0_i32_0 : i32, i32
  }
  func.func @transform_6(%arg0: i32) -> (i32, i32) {
    %c0_i32 = arith.constant 0 : i32
    %c0_i32_0 = arith.constant 0 : i32
    %c0_i32_1 = arith.constant 0 : i32
    return %c0_i32, %c0_i32_0 : i32, i32
  }
  func.func @transform_7(%arg0: i32) -> (i32, i32) {
    %c0_i32 = arith.constant 0 : i32
    %c0_i32_0 = arith.constant 0 : i32
    return %arg0, %c0_i32 : i32, i32
  }
}

</mosaic_0001>

<llo_original>
// kernel: _lenet_apply.3
$region0: #{_lenet_apply.3}
  #allocation0 [shape = 'u32[]', space=smem, size = 0x4, offset = 0x4, fixed_abs, tag = 'smem constant byte address 0x4 - core index']
  #allocation1 [shape = 'u32[72,128]{1,0:T(1,128)}', space=vmem, size = 0x9000, scoped, tag = 'internal scratch']
  %s0 = inlined_call_operand.vmem [shape: bf16[4,512,128], index: 0, kind: input, shape index: {}]
  %s1 = inlined_call_operand.vmem [shape: bf16[128,128], index: 1, kind: input, shape index: {}]
  %s2 = inlined_call_operand.vmem [shape: f32[1,128], index: 2, kind: input, shape index: {}]
  %s3 = inlined_call_operand.vmem [shape: bf16[512,128], index: 3, kind: output, shape index: {}]
  %s4 = sld [smem:[#allocation0]]
  $region86: #{_lenet_apply.3} parent=0
    _
  %s6 = ssub.s32 1, %s4
  %s7 = scalar_select 0, %s6, %s4
  $region1: #{_lenet_apply.3} parent=0
    #allocation2 [shape = 'u8[524288]{0}', space=vmem, size = 0x80000, scoped, tag = 'input window, operand 0']
    loop: start=0, step=1, limit=4
    $region2: #{_lenet_apply.3} parent=1 // loop_pre_header
      _
    $region3: #{_lenet_apply.3} parent=1 // loop_header
      %s9 = sphi 0, %s13
      %p10 = scmp.ge.s32.totalorder %s9, 4
      %s19 = sphi 0, %s21
      %s22 = sphi 0, %s19
      %s23 = sphi 0, %s22
      %s39 = sphi 0, %s23
      %s43 = sphi 0, %s43
      %s45 = sphi 0, %s43
      %s46 = sphi 0, %s45
      %s60 = sphi 0, %s46
      %s64 = sphi 0, %s64
      %s66 = sphi 0, %s64
      %s67 = sphi 0, %s66
      %s81 = sphi 0, %s67
      %s87 = sphi 0, %s89
      %s90 = sphi 0, %s87
      %s91 = sphi 0, %s90
      %s107 = sphi 0, %s91
    $region4: #{_lenet_apply.3} parent=1 // loop_header_branch
      %12 = sbr.rel (%p10) target = $region8
    $region5: #{_lenet_apply.3} parent=1 // loop_body
      %s14 = ssub.s32 %s9, 1
      %s15 = ssub.s32 %s9, 2
      %s16 = sadd.s32 %s9, 1
      %s17 = ssub.s32 %s9, %s16
      %p18 = scmp.eq.s32.totalorder %s17, 0
      %s20 = sadd.s32 %s19, 1
      %s21 = scalar_select %p18, %s19, %s20
      %p24 = pneg %p18
      %p25 = scmp.eq.s32.totalorder %s9, 1
      %p26 = por %p24, %p25
      %p27 = scmp.ne.s32.totalorder %s19, %s22
      %p28 = scmp.eq.s32.totalorder %s9, 0
      %p29 = por %p27, %p28
      %p30 = scmp.ne.s32.totalorder %s19, %s22
      %p31 = scmp.eq.s32.totalorder %s14, 1
      %p32 = por %p30, %p31
      %p33 = scmp.ne.s32.totalorder %s22, %s23
      %p34 = scmp.eq.s32.totalorder %s14, 0
      %p35 = por %p33, %p34
      %p36 = scmp.ne.s32.totalorder %s22, %s23
      %p37 = scmp.eq.s32.totalorder %s15, 1
      %p38 = por %p36, %p37
      %p40 = scmp.ne.s32.totalorder %s23, %s39
      %p41 = scmp.eq.s32.totalorder %s15, 0
      %p42 = por %p40, %p41
      %s44 = sadd.s32 %s43, 1
      %p47 = scmp.eq.s32.totalorder %s9, 1
      %p48 = scmp.ne.s32.totalorder %s43, %s45
      %p49 = scmp.eq.s32.totalorder %s9, 0
      %p50 = por %p48, %p49
      %p51 = scmp.ne.s32.totalorder %s43, %s45
      %p52 = scmp.eq.s32.totalorder %s14, 1
      %p53 = por %p51, %p52
      %p54 = scmp.ne.s32.totalorder %s45, %s46
      %p55 = scmp.eq.s32.totalorder %s14, 0
      %p56 = por %p54, %p55
      %p57 = scmp.ne.s32.totalorder %s45, %s46
      %p58 = scmp.eq.s32.totalorder %s15, 1
      %p59 = por %p57, %p58
      %p61 = scmp.ne.s32.totalorder %s46, %s60
      %p62 = scmp.eq.s32.totalorder %s15, 0
      %p63 = por %p61, %p62
      %s65 = sadd.s32 %s64, 1
      %p68 = scmp.eq.s32.totalorder %s9, 1
      %p69 = scmp.ne.s32.totalorder %s64, %s66
      %p70 = scmp.eq.s32.totalorder %s9, 0
      %p71 = por %p69, %p70
      %p72 = scmp.ne.s32.totalorder %s64, %s66
      %p73 = scmp.eq.s32.totalorder %s14, 1
      %p74 = por %p72, %p73
      %p75 = scmp.ne.s32.totalorder %s66, %s67
      %p76 = scmp.eq.s32.totalorder %s14, 0
      %p77 = por %p75, %p76
      %p78 = scmp.ne.s32.totalorder %s66, %s67
      %p79 = scmp.eq.s32.totalorder %s15, 1
      %p80 = por %p78, %p79
      %p82 = scmp.ne.s32.totalorder %s67, %s81
      %p83 = scmp.eq.s32.totalorder %s15, 0
      %p84 = por %p82, %p83
      %s85 = ssub.s32 %s9, %s16
      %p86 = scmp.eq.s32.totalorder %s85, 0
      %s88 = sadd.s32 %s87, 1
      %s89 = scalar_select %p86, %s87, %s88
      %p92 = pneg %p86
      %p93 = scmp.eq.s32.totalorder %s9, 1
      %p94 = por %p92, %p93
      %p95 = scmp.ne.s32.totalorder %s87, %s90
      %p96 = scmp.eq.s32.totalorder %s9, 0
      %p97 = por %p95, %p96
      %p98 = scmp.ne.s32.totalorder %s87, %s90
      %p99 = scmp.eq.s32.totalorder %s14, 1
      %p100 = por %p98, %p99
      %p101 = scmp.ne.s32.totalorder %s90, %s91
      %p102 = scmp.eq.s32.totalorder %s14, 0
      %p103 = por %p101, %p102
      %p104 = scmp.ne.s32.totalorder %s90, %s91
      %p105 = scmp.eq.s32.totalorder %s15, 1
      %p106 = por %p104, %p105
      %p108 = scmp.ne.s32.totalorder %s91, %s107
      %p109 = scmp.eq.s32.totalorder %s15, 0
      %p110 = por %p108, %p109
      %p111 = scmp.le.s32.totalorder 1, %s9
      %p112 = scmp.lt.s32.totalorder %s9, 3
      %p113 = pnand %p111, %p112
      %p114 = pneg %p113
      // Predicated region
      $region9: #{_lenet_apply.3} parent=5 // pred_check
        _
      $region10: #{_lenet_apply.3} parent=5 // pred_check_branch
        %116 = sbr.rel (%p113) target = $region12
      $region11: #{_lenet_apply.3} parent=5 // pred_region
        %s117 = ssub.s32 %s9, 1
        // Predicated region
        $region13: #{_lenet_apply.3} parent=11 // pred_check
          %p118 = pneg %p56
        $region14: #{_lenet_apply.3} parent=11 // pred_check_branch
          %120 = sbr.rel (%p118) target = $region16
        $region15: #{_lenet_apply.3} parent=11 // pred_region
          _
        $region16: #{_lenet_apply.3} parent=11 // pred_fallthru
          _
        // Predicated region
        $region17: #{_lenet_apply.3} parent=11 // pred_check
          %p121 = pneg %p77
        $region18: #{_lenet_apply.3} parent=11 // pred_check_branch
          %123 = sbr.rel (%p121) target = $region20
        $region19: #{_lenet_apply.3} parent=11 // pred_region
          _
        $region20: #{_lenet_apply.3} parent=11 // pred_fallthru
          _
      $region12: #{_lenet_apply.3} parent=5 // pred_fallthru
        _
      %p124 = scmp.lt.s32.totalorder %s9, 2
      // Predicated region
      $region21: #{_lenet_apply.3} parent=5 // pred_check
        %p125 = pneg %p124
      $region22: #{_lenet_apply.3} parent=5 // pred_check_branch
        %127 = sbr.rel (%p125) target = $region24
      $region23: #{_lenet_apply.3} parent=5 // pred_region
        // Predicated region
        $region25: #{_lenet_apply.3} parent=23 // pred_check
          %p128 = pneg %p29
        $region26: #{_lenet_apply.3} parent=23 // pred_check_branch
          %130 = sbr.rel (%p128) target = $region28
        $region27: #{_lenet_apply.3} parent=23 // pred_region
          %s131 = sand.u32 %s19, 1
          %s132 = sand.u32 %s19, 1
          %s133 = smul.addr %s132, 512
          %s134 = scalar_lea.vmem [#allocation2], %s133
          %s135 = smul.u32 32, %s9
          %s136 = smul.addr %s135, 4
          %s137 = scalar_lea.vmem %s0, %s136
          // Predicated region
          $region29: #{_lenet_apply.3} parent=27 // pred_check
            _
          $region30: #{_lenet_apply.3} parent=27 // pred_check_branch
            %139 = sbr.rel (0) target = $region32
          $region31: #{_lenet_apply.3} parent=27 // pred_region
            // Predicated region
            $region33: #{_lenet_apply.3} parent=31 // pred_check
              _
            $region34: #{_lenet_apply.3} parent=31 // pred_check_branch
              %141 = sbr.rel target = $region36
            $region35: #{_lenet_apply.3} parent=31 // pred_region
              // Predicated region
              $region48: #{_lenet_apply.3} parent=35 // pred_check
                _
              $region49: #{_lenet_apply.3} parent=35 // pred_check_branch
                %411 = sbr.rel (0) target = $region51
              $region50: #{_lenet_apply.3} parent=35 // pred_region
                loop: start=0, step=1, limit=1
                $region52: #{_lenet_apply.3} parent=50 // loop_pre_header
                  _
                $region53: #{_lenet_apply.3} parent=50 // loop_header
                  %s413 = sphi 0, %s417
                  %p414 = scmp.ge.s32.totalorder %s413, 1
                  %s418 = sphi %s137, %s137
                  %s419 = sphi %s134, %s134
                $region54: #{_lenet_apply.3} parent=50 // loop_header_branch
                  %416 = sbr.rel (%p414) target = $region58
                $region55: #{_lenet_apply.3} parent=50 // loop_body
                  _
                $region56: #{_lenet_apply.3} parent=50 // loop_footer
                  %s417 = sadd.s32 1, %s413
                $region57: #{_lenet_apply.3} parent=50 // loop_footer_branch
                  %412 = sbr.rel target = $region53
                $region58: #{_lenet_apply.3} parent=50 // loop_exit
                  _
                %s421 = ssub.s32 16, 1
                loop: start=0, step=1, limit=1
                $region59: #{_lenet_apply.3} parent=50 // loop_pre_header
                  _
                $region60: #{_lenet_apply.3} parent=50 // loop_header
                  %s423 = sphi 0, %s427
                  %p424 = scmp.ge.s32.totalorder %s423, 1
                  %s428 = sphi %s137, %s137
                  %s429 = sphi %s134, %s134
                $region61: #{_lenet_apply.3} parent=50 // loop_header_branch
                  %426 = sbr.rel (%p424) target = $region65
                $region62: #{_lenet_apply.3} parent=50 // loop_body
                  %v430 = vld [vmem:[%s428] sm:%s421]
                  %431 = vst [vmem:[%s429] sm:%s421] %v430
                  %v432 = vld [vmem:[%s428 + $0x4] sm:%s421]
                  %433 = vst [vmem:[%s429 + $0x4] sm:%s421] %v432
                  %v434 = vld [vmem:[%s428 + $0x8] sm:%s421]
                  %435 = vst [vmem:[%s429 + $0x8] sm:%s421] %v434
                  %v436 = vld [vmem:[%s428 + $0xc] sm:%s421]
                  %437 = vst [vmem:[%s429 + $0xc] sm:%s421] %v436
                  %v438 = vld [vmem:[%s428 + $0x10] sm:%s421]
                  %439 = vst [vmem:[%s429 + $0x10] sm:%s421] %v438
                  %v440 = vld [vmem:[%s428 + $0x14] sm:%s421]
                  %441 = vst [vmem:[%s429 + $0x14] sm:%s421] %v440
                  %v442 = vld [vmem:[%s428 + $0x18] sm:%s421]
                  %443 = vst [vmem:[%s429 + $0x18] sm:%s421] %v442
                  %v444 = vld [vmem:[%s428 + $0x1c] sm:%s421]
                  %445 = vst [vmem:[%s429 + $0x1c] sm:%s421] %v444
                  %v446 = vld [vmem:[%s428 + $0x20] sm:%s421]
                  %447 = vst [vmem:[%s429 + $0x20] sm:%s421] %v446
                  %v448 = vld [vmem:[%s428 + $0x24] sm:%s421]
                  %449 = vst [vmem:[%s429 + $0x24] sm:%s421] %v448
                  %v450 = vld [vmem:[%s428 + $0x28] sm:%s421]
                  %451 = vst [vmem:[%s429 + $0x28] sm:%s421] %v450
                  %v452 = vld [vmem:[%s428 + $0x2c] sm:%s421]
                  %453 = vst [vmem:[%s429 + $0x2c] sm:%s421] %v452
                  %v454 = vld [vmem:[%s428 + $0x30] sm:%s421]
                  %455 = vst [vmem:[%s429 + $0x30] sm:%s421] %v454
                  %v456 = vld [vmem:[%s428 + $0x34] sm:%s421]
                  %457 = vst [vmem:[%s429 + $0x34] sm:%s421] %v456
                  %v458 = vld [vmem:[%s428 + $0x38] sm:%s421]
                  %459 = vst [vmem:[%s429 + $0x38] sm:%s421] %v458
                  %v460 = vld [vmem:[%s428 + $0x3c] sm:%s421]
                  %461 = vst [vmem:[%s429 + $0x3c] sm:%s421] %v460
                  %v462 = vld [vmem:[%s428 + $0x40] sm:%s421]
                  %463 = vst [vmem:[%s429 + $0x40] sm:%s421] %v462
                  %v464 = vld [vmem:[%s428 + $0x44] sm:%s421]
                  %465 = vst [vmem:[%s429 + $0x44] sm:%s421] %v464
                  %v466 = vld [vmem:[%s428 + $0x48] sm:%s421]
                  %467 = vst [vmem:[%s429 + $0x48] sm:%s421] %v466
                  %v468 = vld [vmem:[%s428 + $0x4c] sm:%s421]
                  %469 = vst [vmem:[%s429 + $0x4c] sm:%s421] %v468
                  %v470 = vld [vmem:[%s428 + $0x50] sm:%s421]
                  %471 = vst [vmem:[%s429 + $0x50] sm:%s421] %v470
                  %v472 = vld [vmem:[%s428 + $0x54] sm:%s421]
                  %473 = vst [vmem:[%s429 + $0x54] sm:%s421] %v472
                  %v474 = vld [vmem:[%s428 + $0x58] sm:%s421]
                  %475 = vst [vmem:[%s429 + $0x58] sm:%s421] %v474
                  %v476 = vld [vmem:[%s428 + $0x5c] sm:%s421]
                  %477 = vst [vmem:[%s429 + $0x5c] sm:%s421] %v476
                  %v478 = vld [vmem:[%s428 + $0x60] sm:%s421]
                  %479 = vst [vmem:[%s429 + $0x60] sm:%s421] %v478
                  %v480 = vld [vmem:[%s428 + $0x64] sm:%s421]
                  %481 = vst [vmem:[%s429 + $0x64] sm:%s421] %v480
                  %v482 = vld [vmem:[%s428 + $0x68] sm:%s421]
                  %483 = vst [vmem:[%s429 + $0x68] sm:%s421] %v482
                  %v484 = vld [vmem:[%s428 + $0x6c] sm:%s421]
                  %485 = vst [vmem:[%s429 + $0x6c] sm:%s421] %v484
                  %v486 = vld [vmem:[%s428 + $0x70] sm:%s421]
                  %487 = vst [vmem:[%s429 + $0x70] sm:%s421] %v486
                  %v488 = vld [vmem:[%s428 + $0x74] sm:%s421]
                  %489 = vst [vmem:[%s429 + $0x74] sm:%s421] %v488
                  %v490 = vld [vmem:[%s428 + $0x78] sm:%s421]
                  %491 = vst [vmem:[%s429 + $0x78] sm:%s421] %v490
                  %v492 = vld [vmem:[%s428 + $0x7c] sm:%s421]
                  %493 = vst [vmem:[%s429 + $0x7c] sm:%s421] %v492
                  %v494 = vld [vmem:[%s428 + $0x100] sm:%s421]
                  %495 = vst [vmem:[%s429 + $0x80] sm:%s421] %v494
                  %v496 = vld [vmem:[%s428 + $0x104] sm:%s421]
                  %497 = vst [vmem:[%s429 + $0x84] sm:%s421] %v496
                  %v498 = vld [vmem:[%s428 + $0x108] sm:%s421]
                  %499 = vst [vmem:[%s429 + $0x88] sm:%s421] %v498
                  %v500 = vld [vmem:[%s428 + $0x10c] sm:%s421]
                  %501 = vst [vmem:[%s429 + $0x8c] sm:%s421] %v500
                  %v502 = vld [vmem:[%s428 + $0x110] sm:%s421]
                  %503 = vst [vmem:[%s429 + $0x90] sm:%s421] %v502
                  %v504 = vld [vmem:[%s428 + $0x114] sm:%s421]
                  %505 = vst [vmem:[%s429 + $0x94] sm:%s421] %v504
                  %v506 = vld [vmem:[%s428 + $0x118] sm:%s421]
                  %507 = vst [vmem:[%s429 + $0x98] sm:%s421] %v506
                  %v508 = vld [vmem:[%s428 + $0x11c] sm:%s421]
                  %509 = vst [vmem:[%s429 + $0x9c] sm:%s421] %v508
                  %v510 = vld [vmem:[%s428 + $0x120] sm:%s421]
                  %511 = vst [vmem:[%s429 + $0xa0] sm:%s421] %v510
                  %v512 = vld [vmem:[%s428 + $0x124] sm:%s421]
                  %513 = vst [vmem:[%s429 + $0xa4] sm:%s421] %v512
                  %v514 = vld [vmem:[%s428 + $0x128] sm:%s421]
                  %515 = vst [vmem:[%s429 + $0xa8] sm:%s421] %v514
                  %v516 = vld [vmem:[%s428 + $0x12c] sm:%s421]
                  %517 = vst [vmem:[%s429 + $0xac] sm:%s421] %v516
                  %v518 = vld [vmem:[%s428 + $0x130] sm:%s421]
                  %519 = vst [vmem:[%s429 + $0xb0] sm:%s421] %v518
                  %v520 = vld [vmem:[%s428 + $0x134] sm:%s421]
                  %521 = vst [vmem:[%s429 + $0xb4] sm:%s421] %v520
                  %v522 = vld [vmem:[%s428 + $0x138] sm:%s421]
                  %523 = vst [vmem:[%s429 + $0xb8] sm:%s421] %v522
                  %v524 = vld [vmem:[%s428 + $0x13c] sm:%s421]
                  %525 = vst [vmem:[%s429 + $0xbc] sm:%s421] %v524
                  %v526 = vld [vmem:[%s428 + $0x140] sm:%s421]
                  %527 = vst [vmem:[%s429 + $0xc0] sm:%s421] %v526
                  %v528 = vld [vmem:[%s428 + $0x144] sm:%s421]
                  %529 = vst [vmem:[%s429 + $0xc4] sm:%s421] %v528
                  %v530 = vld [vmem:[%s428 + $0x148] sm:%s421]
                  %531 = vst [vmem:[%s429 + $0xc8] sm:%s421] %v530
                  %v532 = vld [vmem:[%s428 + $0x14c] sm:%s421]
                  %533 = vst [vmem:[%s429 + $0xcc] sm:%s421] %v532
                  %v534 = vld [vmem:[%s428 + $0x150] sm:%s421]
                  %535 = vst [vmem:[%s429 + $0xd0] sm:%s421] %v534
                  %v536 = vld [vmem:[%s428 + $0x154] sm:%s421]
                  %537 = vst [vmem:[%s429 + $0xd4] sm:%s421] %v536
                  %v538 = vld [vmem:[%s428 + $0x158] sm:%s421]
                  %539 = vst [vmem:[%s429 + $0xd8] sm:%s421] %v538
                  %v540 = vld [vmem:[%s428 + $0x15c] sm:%s421]
                  %541 = vst [vmem:[%s429 + $0xdc] sm:%s421] %v540
                  %v542 = vld [vmem:[%s428 + $0x160] sm:%s421]
                  %543 = vst [vmem:[%s429 + $0xe0] sm:%s421] %v542
                  %v544 = vld [vmem:[%s428 + $0x164] sm:%s421]
                  %545 = vst [vmem:[%s429 + $0xe4] sm:%s421] %v544
                  %v546 = vld [vmem:[%s428 + $0x168] sm:%s421]
                  %547 = vst [vmem:[%s429 + $0xe8] sm:%s421] %v546
                  %v548 = vld [vmem:[%s428 + $0x16c] sm:%s421]
                  %549 = vst [vmem:[%s429 + $0xec] sm:%s421] %v548
                  %v550 = vld [vmem:[%s428 + $0x170] sm:%s421]
                  %551 = vst [vmem:[%s429 + $0xf0] sm:%s421] %v550
                  %v552 = vld [vmem:[%s428 + $0x174] sm:%s421]
                  %553 = vst [vmem:[%s429 + $0xf4] sm:%s421] %v552
                  %v554 = vld [vmem:[%s428 + $0x178] sm:%s421]
                  %555 = vst [vmem:[%s429 + $0xf8] sm:%s421] %v554
                  %v556 = vld [vmem:[%s428 + $0x17c] sm:%s421]
                  %557 = vst [vmem:[%s429 + $0xfc] sm:%s421] %v556
                  %v558 = vld [vmem:[%s428 + $0x200] sm:%s421]
                  %559 = vst [vmem:[%s429 + $0x100] sm:%s421] %v558
                  %v560 = vld [vmem:[%s428 + $0x204] sm:%s421]
                  %561 = vst [vmem:[%s429 + $0x104] sm:%s421] %v560
                  %v562 = vld [vmem:[%s428 + $0x208] sm:%s421]
                  %563 = vst [vmem:[%s429 + $0x108] sm:%s421] %v562
                  %v564 = vld [vmem:[%s428 + $0x20c] sm:%s421]
                  %565 = vst [vmem:[%s429 + $0x10c] sm:%s421] %v564
                  %v566 = vld [vmem:[%s428 + $0x210] sm:%s421]
                  %567 = vst [vmem:[%s429 + $0x110] sm:%s421] %v566
                  %v568 = vld [vmem:[%s428 + $0x214] sm:%s421]
                  %569 = vst [vmem:[%s429 + $0x114] sm:%s421] %v568
                  %v570 = vld [vmem:[%s428 + $0x218] sm:%s421]
                  %571 = vst [vmem:[%s429 + $0x118] sm:%s421] %v570
                  %v572 = vld [vmem:[%s428 + $0x21c] sm:%s421]
                  %573 = vst [vmem:[%s429 + $0x11c] sm:%s421] %v572
                  %v574 = vld [vmem:[%s428 + $0x220] sm:%s421]
                  %575 = vst [vmem:[%s429 + $0x120] sm:%s421] %v574
                  %v576 = vld [vmem:[%s428 + $0x224] sm:%s421]
                  %577 = vst [vmem:[%s429 + $0x124] sm:%s421] %v576
                  %v578 = vld [vmem:[%s428 + $0x228] sm:%s421]
                  %579 = vst [vmem:[%s429 + $0x128] sm:%s421] %v578
                  %v580 = vld [vmem:[%s428 + $0x22c] sm:%s421]
                  %581 = vst [vmem:[%s429 + $0x12c] sm:%s421] %v580
                  %v582 = vld [vmem:[%s428 + $0x230] sm:%s421]
                  %583 = vst [vmem:[%s429 + $0x130] sm:%s421] %v582
                  %v584 = vld [vmem:[%s428 + $0x234] sm:%s421]
                  %585 = vst [vmem:[%s429 + $0x134] sm:%s421] %v584
                  %v586 = vld [vmem:[%s428 + $0x238] sm:%s421]
                  %587 = vst [vmem:[%s429 + $0x138] sm:%s421] %v586
                  %v588 = vld [vmem:[%s428 + $0x23c] sm:%s421]
                  %589 = vst [vmem:[%s429 + $0x13c] sm:%s421] %v588
                  %v590 = vld [vmem:[%s428 + $0x240] sm:%s421]
                  %591 = vst [vmem:[%s429 + $0x140] sm:%s421] %v590
                  %v592 = vld [vmem:[%s428 + $0x244] sm:%s421]
                  %593 = vst [vmem:[%s429 + $0x144] sm:%s421] %v592
                  %v594 = vld [vmem:[%s428 + $0x248] sm:%s421]
                  %595 = vst [vmem:[%s429 + $0x148] sm:%s421] %v594
                  %v596 = vld [vmem:[%s428 + $0x24c] sm:%s421]
                  %597 = vst [vmem:[%s429 + $0x14c] sm:%s421] %v596
                  %v598 = vld [vmem:[%s428 + $0x250] sm:%s421]
                  %599 = vst [vmem:[%s429 + $0x150] sm:%s421] %v598
                  %v600 = vld [vmem:[%s428 + $0x254] sm:%s421]
                  %601 = vst [vmem:[%s429 + $0x154] sm:%s421] %v600
                  %v602 = vld [vmem:[%s428 + $0x258] sm:%s421]
                  %603 = vst [vmem:[%s429 + $0x158] sm:%s421] %v602
                  %v604 = vld [vmem:[%s428 + $0x25c] sm:%s421]
                  %605 = vst [vmem:[%s429 + $0x15c] sm:%s421] %v604
                  %v606 = vld [vmem:[%s428 + $0x260] sm:%s421]
                  %607 = vst [vmem:[%s429 + $0x160] sm:%s421] %v606
                  %v608 = vld [vmem:[%s428 + $0x264] sm:%s421]
                  %609 = vst [vmem:[%s429 + $0x164] sm:%s421] %v608
                  %v610 = vld [vmem:[%s428 + $0x268] sm:%s421]
                  %611 = vst [vmem:[%s429 + $0x168] sm:%s421] %v610
                  %v612 = vld [vmem:[%s428 + $0x26c] sm:%s421]
                  %613 = vst [vmem:[%s429 + $0x16c] sm:%s421] %v612
                  %v614 = vld [vmem:[%s428 + $0x270] sm:%s421]
                  %615 = vst [vmem:[%s429 + $0x170] sm:%s421] %v614
                  %v616 = vld [vmem:[%s428 + $0x274] sm:%s421]
                  %617 = vst [vmem:[%s429 + $0x174] sm:%s421] %v616
                  %v618 = vld [vmem:[%s428 + $0x278] sm:%s421]
                  %619 = vst [vmem:[%s429 + $0x178] sm:%s421] %v618
                  %v620 = vld [vmem:[%s428 + $0x27c] sm:%s421]
                  %621 = vst [vmem:[%s429 + $0x17c] sm:%s421] %v620
                  %v622 = vld [vmem:[%s428 + $0x300] sm:%s421]
                  %623 = vst [vmem:[%s429 + $0x180] sm:%s421] %v622
                  %v624 = vld [vmem:[%s428 + $0x304] sm:%s421]
                  %625 = vst [vmem:[%s429 + $0x184] sm:%s421] %v624
                  %v626 = vld [vmem:[%s428 + $0x308] sm:%s421]
                  %627 = vst [vmem:[%s429 + $0x188] sm:%s421] %v626
                  %v628 = vld [vmem:[%s428 + $0x30c] sm:%s421]
                  %629 = vst [vmem:[%s429 + $0x18c] sm:%s421] %v628
                  %v630 = vld [vmem:[%s428 + $0x310] sm:%s421]
                  %631 = vst [vmem:[%s429 + $0x190] sm:%s421] %v630
                  %v632 = vld [vmem:[%s428 + $0x314] sm:%s421]
                  %633 = vst [vmem:[%s429 + $0x194] sm:%s421] %v632
                  %v634 = vld [vmem:[%s428 + $0x318] sm:%s421]
                  %635 = vst [vmem:[%s429 + $0x198] sm:%s421] %v634
                  %v636 = vld [vmem:[%s428 + $0x31c] sm:%s421]
                  %637 = vst [vmem:[%s429 + $0x19c] sm:%s421] %v636
                  %v638 = vld [vmem:[%s428 + $0x320] sm:%s421]
                  %639 = vst [vmem:[%s429 + $0x1a0] sm:%s421] %v638
                  %v640 = vld [vmem:[%s428 + $0x324] sm:%s421]
                  %641 = vst [vmem:[%s429 + $0x1a4] sm:%s421] %v640
                  %v642 = vld [vmem:[%s428 + $0x328] sm:%s421]
                  %643 = vst [vmem:[%s429 + $0x1a8] sm:%s421] %v642
                  %v644 = vld [vmem:[%s428 + $0x32c] sm:%s421]
                  %645 = vst [vmem:[%s429 + $0x1ac] sm:%s421] %v644
                  %v646 = vld [vmem:[%s428 + $0x330] sm:%s421]
                  %647 = vst [vmem:[%s429 + $0x1b0] sm:%s421] %v646
                  %v648 = vld [vmem:[%s428 + $0x334] sm:%s421]
                  %649 = vst [vmem:[%s429 + $0x1b4] sm:%s421] %v648
                  %v650 = vld [vmem:[%s428 + $0x338] sm:%s421]
                  %651 = vst [vmem:[%s429 + $0x1b8] sm:%s421] %v650
                  %v652 = vld [vmem:[%s428 + $0x33c] sm:%s421]
                  %653 = vst [vmem:[%s429 + $0x1bc] sm:%s421] %v652
                  %v654 = vld [vmem:[%s428 + $0x340] sm:%s421]
                  %655 = vst [vmem:[%s429 + $0x1c0] sm:%s421] %v654
                  %v656 = vld [vmem:[%s428 + $0x344] sm:%s421]
                  %657 = vst [vmem:[%s429 + $0x1c4] sm:%s421] %v656
                  %v658 = vld [vmem:[%s428 + $0x348] sm:%s421]
                  %659 = vst [vmem:[%s429 + $0x1c8] sm:%s421] %v658
                  %v660 = vld [vmem:[%s428 + $0x34c] sm:%s421]
                  %661 = vst [vmem:[%s429 + $0x1cc] sm:%s421] %v660
                  %v662 = vld [vmem:[%s428 + $0x350] sm:%s421]
                  %663 = vst [vmem:[%s429 + $0x1d0] sm:%s421] %v662
                  %v664 = vld [vmem:[%s428 + $0x354] sm:%s421]
                  %665 = vst [vmem:[%s429 + $0x1d4] sm:%s421] %v664
                  %v666 = vld [vmem:[%s428 + $0x358] sm:%s421]
                  %667 = vst [vmem:[%s429 + $0x1d8] sm:%s421] %v666
                  %v668 = vld [vmem:[%s428 + $0x35c] sm:%s421]
                  %669 = vst [vmem:[%s429 + $0x1dc] sm:%s421] %v668
                  %v670 = vld [vmem:[%s428 + $0x360] sm:%s421]
                  %671 = vst [vmem:[%s429 + $0x1e0] sm:%s421] %v670
                  %v672 = vld [vmem:[%s428 + $0x364] sm:%s421]
                  %673 = vst [vmem:[%s429 + $0x1e4] sm:%s421] %v672
                  %v674 = vld [vmem:[%s428 + $0x368] sm:%s421]
                  %675 = vst [vmem:[%s429 + $0x1e8] sm:%s421] %v674
                  %v676 = vld [vmem:[%s428 + $0x36c] sm:%s421]
                  %677 = vst [vmem:[%s429 + $0x1ec] sm:%s421] %v676
                  %v678 = vld [vmem:[%s428 + $0x370] sm:%s421]
                  %679 = vst [vmem:[%s429 + $0x1f0] sm:%s421] %v678
                  %v680 = vld [vmem:[%s428 + $0x374] sm:%s421]
                  %681 = vst [vmem:[%s429 + $0x1f4] sm:%s421] %v680
                  %v682 = vld [vmem:[%s428 + $0x378] sm:%s421]
                  %683 = vst [vmem:[%s429 + $0x1f8] sm:%s421] %v682
                  %v684 = vld [vmem:[%s428 + $0x37c] sm:%s421]
                  %685 = vst [vmem:[%s429 + $0x1fc] sm:%s421] %v684
                $region63: #{_lenet_apply.3} parent=50 // loop_footer
                  %s427 = sadd.s32 1, %s423
                $region64: #{_lenet_apply.3} parent=50 // loop_footer_branch
                  %422 = sbr.rel target = $region60
                $region65: #{_lenet_apply.3} parent=50 // loop_exit
                  _
              $region51: #{_lenet_apply.3} parent=35 // pred_fallthru
                _
            $region36: #{_lenet_apply.3} parent=31 // pred_fallthru
              _
            // Predicated region
            $region37: #{_lenet_apply.3} parent=31 // pred_check
              _
            $region38: #{_lenet_apply.3} parent=31 // pred_check_branch
              %143 = sbr.rel (0) target = $region40
            $region39: #{_lenet_apply.3} parent=31 // pred_region
              %s145 = ssub.s32 16, 1
              loop: start=0, step=1, limit=1
              $region41: #{_lenet_apply.3} parent=39 // loop_pre_header
                _
              $region42: #{_lenet_apply.3} parent=39 // loop_header
                %s147 = sphi 0, %s151
                %p148 = scmp.ge.s32.totalorder %s147, 1
                %s152 = sphi %s137, %s137
                %s153 = sphi %s134, %s134
              $region43: #{_lenet_apply.3} parent=39 // loop_header_branch
                %150 = sbr.rel (%p148) target = $region47
              $region44: #{_lenet_apply.3} parent=39 // loop_body
                %v154 = vld [vmem:[%s152] sm:%s145]
                %155 = vst [vmem:[%s153] sm:%s145] %v154
                %v156 = vld [vmem:[%s152 + $0x4] sm:%s145]
                %157 = vst [vmem:[%s153 + $0x4] sm:%s145] %v156
                %v158 = vld [vmem:[%s152 + $0x8] sm:%s145]
                %159 = vst [vmem:[%s153 + $0x8] sm:%s145] %v158
                %v160 = vld [vmem:[%s152 + $0xc] sm:%s145]
                %161 = vst [vmem:[%s153 + $0xc] sm:%s145] %v160
                %v162 = vld [vmem:[%s152 + $0x10] sm:%s145]
                %163 = vst [vmem:[%s153 + $0x10] sm:%s145] %v162
                %v164 = vld [vmem:[%s152 + $0x14] sm:%s145]
                %165 = vst [vmem:[%s153 + $0x14] sm:%s145] %v164
                %v166 = vld [vmem:[%s152 + $0x18] sm:%s145]
                %167 = vst [vmem:[%s153 + $0x18] sm:%s145] %v166
                %v168 = vld [vmem:[%s152 + $0x1c] sm:%s145]
                %169 = vst [vmem:[%s153 + $0x1c] sm:%s145] %v168
                %v170 = vld [vmem:[%s152 + $0x20] sm:%s145]
                %171 = vst [vmem:[%s153 + $0x20] sm:%s145] %v170
                %v172 = vld [vmem:[%s152 + $0x24] sm:%s145]
                %173 = vst [vmem:[%s153 + $0x24] sm:%s145] %v172
                %v174 = vld [vmem:[%s152 + $0x28] sm:%s145]
                %175 = vst [vmem:[%s153 + $0x28] sm:%s145] %v174
                %v176 = vld [vmem:[%s152 + $0x2c] sm:%s145]
                %177 = vst [vmem:[%s153 + $0x2c] sm:%s145] %v176
                %v178 = vld [vmem:[%s152 + $0x30] sm:%s145]
                %179 = vst [vmem:[%s153 + $0x30] sm:%s145] %v178
                %v180 = vld [vmem:[%s152 + $0x34] sm:%s145]
                %181 = vst [vmem:[%s153 + $0x34] sm:%s145] %v180
                %v182 = vld [vmem:[%s152 + $0x38] sm:%s145]
                %183 = vst [vmem:[%s153 + $0x38] sm:%s145] %v182
                %v184 = vld [vmem:[%s152 + $0x3c] sm:%s145]
                %185 = vst [vmem:[%s153 + $0x3c] sm:%s145] %v184
                %v186 = vld [vmem:[%s152 + $0x40] sm:%s145]
                %187 = vst [vmem:[%s153 + $0x40] sm:%s145] %v186
                %v188 = vld [vmem:[%s152 + $0x44] sm:%s145]
                %189 = vst [vmem:[%s153 + $0x44] sm:%s145] %v188
                %v190 = vld [vmem:[%s152 + $0x48] sm:%s145]
                %191 = vst [vmem:[%s153 + $0x48] sm:%s145] %v190
                %v192 = vld [vmem:[%s152 + $0x4c] sm:%s145]
                %193 = vst [vmem:[%s153 + $0x4c] sm:%s145] %v192
                %v194 = vld [vmem:[%s152 + $0x50] sm:%s145]
                %195 = vst [vmem:[%s153 + $0x50] sm:%s145] %v194
                %v196 = vld [vmem:[%s152 + $0x54] sm:%s145]
                %197 = vst [vmem:[%s153 + $0x54] sm:%s145] %v196
                %v198 = vld [vmem:[%s152 + $0x58] sm:%s145]
                %199 = vst [vmem:[%s153 + $0x58] sm:%s145] %v198
                %v200 = vld [vmem:[%s152 + $0x5c] sm:%s145]
                %201 = vst [vmem:[%s153 + $0x5c] sm:%s145] %v200
                %v202 = vld [vmem:[%s152 + $0x60] sm:%s145]
                %203 = vst [vmem:[%s153 + $0x60] sm:%s145] %v202
                %v204 = vld [vmem:[%s152 + $0x64] sm:%s145]
                %205 = vst [vmem:[%s153 + $0x64] sm:%s145] %v204
                %v206 = vld [vmem:[%s152 + $0x68] sm:%s145]
                %207 = vst [vmem:[%s153 + $0x68] sm:%s145] %v206
                %v208 = vld [vmem:[%s152 + $0x6c] sm:%s145]
                %209 = vst [vmem:[%s153 + $0x6c] sm:%s145] %v208
                %v210 = vld [vmem:[%s152 + $0x70] sm:%s145]
                %211 = vst [vmem:[%s153 + $0x70] sm:%s145] %v210
                %v212 = vld [vmem:[%s152 + $0x74] sm:%s145]
                %213 = vst [vmem:[%s153 + $0x74] sm:%s145] %v212
                %v214 = vld [vmem:[%s152 + $0x78] sm:%s145]
                %215 = vst [vmem:[%s153 + $0x78] sm:%s145] %v214
                %v216 = vld [vmem:[%s152 + $0x7c] sm:%s145]
                %217 = vst [vmem:[%s153 + $0x7c] sm:%s145] %v216
                %v218 = vld [vmem:[%s152 + $0x100] sm:%s145]
                %219 = vst [vmem:[%s153 + $0x80] sm:%s145] %v218
                %v220 = vld [vmem:[%s152 + $0x104] sm:%s145]
                %221 = vst [vmem:[%s153 + $0x84] sm:%s145] %v220
                %v222 = vld [vmem:[%s152 + $0x108] sm:%s145]
                %223 = vst [vmem:[%s153 + $0x88] sm:%s145] %v222
                %v224 = vld [vmem:[%s152 + $0x10c] sm:%s145]
                %225 = vst [vmem:[%s153 + $0x8c] sm:%s145] %v224
                %v226 = vld [vmem:[%s152 + $0x110] sm:%s145]
                %227 = vst [vmem:[%s153 + $0x90] sm:%s145] %v226
                %v228 = vld [vmem:[%s152 + $0x114] sm:%s145]
                %229 = vst [vmem:[%s153 + $0x94] sm:%s145] %v228
                %v230 = vld [vmem:[%s152 + $0x118] sm:%s145]
                %231 = vst [vmem:[%s153 + $0x98] sm:%s145] %v230
                %v232 = vld [vmem:[%s152 + $0x11c] sm:%s145]
                %233 = vst [vmem:[%s153 + $0x9c] sm:%s145] %v232
                %v234 = vld [vmem:[%s152 + $0x120] sm:%s145]
                %235 = vst [vmem:[%s153 + $0xa0] sm:%s145] %v234
                %v236 = vld [vmem:[%s152 + $0x124] sm:%s145]
                %237 = vst [vmem:[%s153 + $0xa4] sm:%s145] %v236
                %v238 = vld [vmem:[%s152 + $0x128] sm:%s145]
                %239 = vst [vmem:[%s153 + $0xa8] sm:%s145] %v238
                %v240 = vld [vmem:[%s152 + $0x12c] sm:%s145]
                %241 = vst [vmem:[%s153 + $0xac] sm:%s145] %v240
                %v242 = vld [vmem:[%s152 + $0x130] sm:%s145]
                %243 = vst [vmem:[%s153 + $0xb0] sm:%s145] %v242
                %v244 = vld [vmem:[%s152 + $0x134] sm:%s145]
                %245 = vst [vmem:[%s153 + $0xb4] sm:%s145] %v244
                %v246 = vld [vmem:[%s152 + $0x138] sm:%s145]
                %247 = vst [vmem:[%s153 + $0xb8] sm:%s145] %v246
                %v248 = vld [vmem:[%s152 + $0x13c] sm:%s145]
                %249 = vst [vmem:[%s153 + $0xbc] sm:%s145] %v248
                %v250 = vld [vmem:[%s152 + $0x140] sm:%s145]
                %251 = vst [vmem:[%s153 + $0xc0] sm:%s145] %v250
                %v252 = vld [vmem:[%s152 + $0x144] sm:%s145]
                %253 = vst [vmem:[%s153 + $0xc4] sm:%s145] %v252
                %v254 = vld [vmem:[%s152 + $0x148] sm:%s145]
                %255 = vst [vmem:[%s153 + $0xc8] sm:%s145] %v254
                %v256 = vld [vmem:[%s152 + $0x14c] sm:%s145]
                %257 = vst [vmem:[%s153 + $0xcc] sm:%s145] %v256
                %v258 = vld [vmem:[%s152 + $0x150] sm:%s145]
                %259 = vst [vmem:[%s153 + $0xd0] sm:%s145] %v258
                %v260 = vld [vmem:[%s152 + $0x154] sm:%s145]
                %261 = vst [vmem:[%s153 + $0xd4] sm:%s145] %v260
                %v262 = vld [vmem:[%s152 + $0x158] sm:%s145]
                %263 = vst [vmem:[%s153 + $0xd8] sm:%s145] %v262
                %v264 = vld [vmem:[%s152 + $0x15c] sm:%s145]
                %265 = vst [vmem:[%s153 + $0xdc] sm:%s145] %v264
                %v266 = vld [vmem:[%s152 + $0x160] sm:%s145]
                %267 = vst [vmem:[%s153 + $0xe0] sm:%s145] %v266
                %v268 = vld [vmem:[%s152 + $0x164] sm:%s145]
                %269 = vst [vmem:[%s153 + $0xe4] sm:%s145] %v268
                %v270 = vld [vmem:[%s152 + $0x168] sm:%s145]
                %271 = vst [vmem:[%s153 + $0xe8] sm:%s145] %v270
                %v272 = vld [vmem:[%s152 + $0x16c] sm:%s145]
                %273 = vst [vmem:[%s153 + $0xec] sm:%s145] %v272
                %v274 = vld [vmem:[%s152 + $0x170] sm:%s145]
                %275 = vst [vmem:[%s153 + $0xf0] sm:%s145] %v274
                %v276 = vld [vmem:[%s152 + $0x174] sm:%s145]
                %277 = vst [vmem:[%s153 + $0xf4] sm:%s145] %v276
                %v278 = vld [vmem:[%s152 + $0x178] sm:%s145]
                %279 = vst [vmem:[%s153 + $0xf8] sm:%s145] %v278
                %v280 = vld [vmem:[%s152 + $0x17c] sm:%s145]
                %281 = vst [vmem:[%s153 + $0xfc] sm:%s145] %v280
                %v282 = vld [vmem:[%s152 + $0x200] sm:%s145]
                %283 = vst [vmem:[%s153 + $0x100] sm:%s145] %v282
                %v284 = vld [vmem:[%s152 + $0x204] sm:%s145]
                %285 = vst [vmem:[%s153 + $0x104] sm:%s145] %v284
                %v286 = vld [vmem:[%s152 + $0x208] sm:%s145]
                %287 = vst [vmem:[%s153 + $0x108] sm:%s145] %v286
                %v288 = vld [vmem:[%s152 + $0x20c] sm:%s145]
                %289 = vst [vmem:[%s153 + $0x10c] sm:%s145] %v288
                %v290 = vld [vmem:[%s152 + $0x210] sm:%s145]
                %291 = vst [vmem:[%s153 + $0x110] sm:%s145] %v290
                %v292 = vld [vmem:[%s152 + $0x214] sm:%s145]
                %293 = vst [vmem:[%s153 + $0x114] sm:%s145] %v292
                %v294 = vld [vmem:[%s152 + $0x218] sm:%s145]
                %295 = vst [vmem:[%s153 + $0x118] sm:%s145] %v294
                %v296 = vld [vmem:[%s152 + $0x21c] sm:%s145]
                %297 = vst [vmem:[%s153 + $0x11c] sm:%s145] %v296
                %v298 = vld [vmem:[%s152 + $0x220] sm:%s145]
                %299 = vst [vmem:[%s153 + $0x120] sm:%s145] %v298
                %v300 = vld [vmem:[%s152 + $0x224] sm:%s145]
                %301 = vst [vmem:[%s153 + $0x124] sm:%s145] %v300
                %v302 = vld [vmem:[%s152 + $0x228] sm:%s145]
                %303 = vst [vmem:[%s153 + $0x128] sm:%s145] %v302
                %v304 = vld [vmem:[%s152 + $0x22c] sm:%s145]
                %305 = vst [vmem:[%s153 + $0x12c] sm:%s145] %v304
                %v306 = vld [vmem:[%s152 + $0x230] sm:%s145]
                %307 = vst [vmem:[%s153 + $0x130] sm:%s145] %v306
                %v308 = vld [vmem:[%s152 + $0x234] sm:%s145]
                %309 = vst [vmem:[%s153 + $0x134] sm:%s145] %v308
                %v310 = vld [vmem:[%s152 + $0x238] sm:%s145]
                %311 = vst [vmem:[%s153 + $0x138] sm:%s145] %v310
                %v312 = vld [vmem:[%s152 + $0x23c] sm:%s145]
                %313 = vst [vmem:[%s153 + $0x13c] sm:%s145] %v312
                %v314 = vld [vmem:[%s152 + $0x240] sm:%s145]
                %315 = vst [vmem:[%s153 + $0x140] sm:%s145] %v314
                %v316 = vld [vmem:[%s152 + $0x244] sm:%s145]
                %317 = vst [vmem:[%s153 + $0x144] sm:%s145] %v316
                %v318 = vld [vmem:[%s152 + $0x248] sm:%s145]
                %319 = vst [vmem:[%s153 + $0x148] sm:%s145] %v318
                %v320 = vld [vmem:[%s152 + $0x24c] sm:%s145]
                %321 = vst [vmem:[%s153 + $0x14c] sm:%s145] %v320
                %v322 = vld [vmem:[%s152 + $0x250] sm:%s145]
                %323 = vst [vmem:[%s153 + $0x150] sm:%s145] %v322
                %v324 = vld [vmem:[%s152 + $0x254] sm:%s145]
                %325 = vst [vmem:[%s153 + $0x154] sm:%s145] %v324
                %v326 = vld [vmem:[%s152 + $0x258] sm:%s145]
                %327 = vst [vmem:[%s153 + $0x158] sm:%s145] %v326
                %v328 = vld [vmem:[%s152 + $0x25c] sm:%s145]
                %329 = vst [vmem:[%s153 + $0x15c] sm:%s145] %v328
                %v330 = vld [vmem:[%s152 + $0x260] sm:%s145]
                %331 = vst [vmem:[%s153 + $0x160] sm:%s145] %v330
                %v332 = vld [vmem:[%s152 + $0x264] sm:%s145]
                %333 = vst [vmem:[%s153 + $0x164] sm:%s145] %v332
                %v334 = vld [vmem:[%s152 + $0x268] sm:%s145]
                %335 = vst [vmem:[%s153 + $0x168] sm:%s145] %v334
                %v336 = vld [vmem:[%s152 + $0x26c] sm:%s145]
                %337 = vst [vmem:[%s153 + $0x16c] sm:%s145] %v336
                %v338 = vld [vmem:[%s152 + $0x270] sm:%s145]
                %339 = vst [vmem:[%s153 + $0x170] sm:%s145] %v338
                %v340 = vld [vmem:[%s152 + $0x274] sm:%s145]
                %341 = vst [vmem:[%s153 + $0x174] sm:%s145] %v340
                %v342 = vld [vmem:[%s152 + $0x278] sm:%s145]
                %343 = vst [vmem:[%s153 + $0x178] sm:%s145] %v342
                %v344 = vld [vmem:[%s152 + $0x27c] sm:%s145]
                %345 = vst [vmem:[%s153 + $0x17c] sm:%s145] %v344
                %v346 = vld [vmem:[%s152 + $0x300] sm:%s145]
                %347 = vst [vmem:[%s153 + $0x180] sm:%s145] %v346
                %v348 = vld [vmem:[%s152 + $0x304] sm:%s145]
                %349 = vst [vmem:[%s153 + $0x184] sm:%s145] %v348
                %v350 = vld [vmem:[%s152 + $0x308] sm:%s145]
                %351 = vst [vmem:[%s153 + $0x188] sm:%s145] %v350
                %v352 = vld [vmem:[%s152 + $0x30c] sm:%s145]
                %353 = vst [vmem:[%s153 + $0x18c] sm:%s145] %v352
                %v354 = vld [vmem:[%s152 + $0x310] sm:%s145]
                %355 = vst [vmem:[%s153 + $0x190] sm:%s145] %v354
                %v356 = vld [vmem:[%s152 + $0x314] sm:%s145]
                %357 = vst [vmem:[%s153 + $0x194] sm:%s145] %v356
                %v358 = vld [vmem:[%s152 + $0x318] sm:%s145]
                %359 = vst [vmem:[%s153 + $0x198] sm:%s145] %v358
                %v360 = vld [vmem:[%s152 + $0x31c] sm:%s145]
                %361 = vst [vmem:[%s153 + $0x19c] sm:%s145] %v360
                %v362 = vld [vmem:[%s152 + $0x320] sm:%s145]
                %363 = vst [vmem:[%s153 + $0x1a0] sm:%s145] %v362
                %v364 = vld [vmem:[%s152 + $0x324] sm:%s145]
                %365 = vst [vmem:[%s153 + $0x1a4] sm:%s145] %v364
                %v366 = vld [vmem:[%s152 + $0x328] sm:%s145]
                %367 = vst [vmem:[%s153 + $0x1a8] sm:%s145] %v366
                %v368 = vld [vmem:[%s152 + $0x32c] sm:%s145]
                %369 = vst [vmem:[%s153 + $0x1ac] sm:%s145] %v368
                %v370 = vld [vmem:[%s152 + $0x330] sm:%s145]
                %371 = vst [vmem:[%s153 + $0x1b0] sm:%s145] %v370
                %v372 = vld [vmem:[%s152 + $0x334] sm:%s145]
                %373 = vst [vmem:[%s153 + $0x1b4] sm:%s145] %v372
                %v374 = vld [vmem:[%s152 + $0x338] sm:%s145]
                %375 = vst [vmem:[%s153 + $0x1b8] sm:%s145] %v374
                %v376 = vld [vmem:[%s152 + $0x33c] sm:%s145]
                %377 = vst [vmem:[%s153 + $0x1bc] sm:%s145] %v376
                %v378 = vld [vmem:[%s152 + $0x340] sm:%s145]
                %379 = vst [vmem:[%s153 + $0x1c0] sm:%s145] %v378
                %v380 = vld [vmem:[%s152 + $0x344] sm:%s145]
                %381 = vst [vmem:[%s153 + $0x1c4] sm:%s145] %v380
                %v382 = vld [vmem:[%s152 + $0x348] sm:%s145]
                %383 = vst [vmem:[%s153 + $0x1c8] sm:%s145] %v382
                %v384 = vld [vmem:[%s152 + $0x34c] sm:%s145]
                %385 = vst [vmem:[%s153 + $0x1cc] sm:%s145] %v384
                %v386 = vld [vmem:[%s152 + $0x350] sm:%s145]
                %387 = vst [vmem:[%s153 + $0x1d0] sm:%s145] %v386
                %v388 = vld [vmem:[%s152 + $0x354] sm:%s145]
                %389 = vst [vmem:[%s153 + $0x1d4] sm:%s145] %v388
                %v390 = vld [vmem:[%s152 + $0x358] sm:%s145]
                %391 = vst [vmem:[%s153 + $0x1d8] sm:%s145] %v390
                %v392 = vld [vmem:[%s152 + $0x35c] sm:%s145]
                %393 = vst [vmem:[%s153 + $0x1dc] sm:%s145] %v392
                %v394 = vld [vmem:[%s152 + $0x360] sm:%s145]
                %395 = vst [vmem:[%s153 + $0x1e0] sm:%s145] %v394
                %v396 = vld [vmem:[%s152 + $0x364] sm:%s145]
                %397 = vst [vmem:[%s153 + $0x1e4] sm:%s145] %v396
                %v398 = vld [vmem:[%s152 + $0x368] sm:%s145]
                %399 = vst [vmem:[%s153 + $0x1e8] sm:%s145] %v398
                %v400 = vld [vmem:[%s152 + $0x36c] sm:%s145]
                %401 = vst [vmem:[%s153 + $0x1ec] sm:%s145] %v400
                %v402 = vld [vmem:[%s152 + $0x370] sm:%s145]
                %403 = vst [vmem:[%s153 + $0x1f0] sm:%s145] %v402
                %v404 = vld [vmem:[%s152 + $0x374] sm:%s145]
                %405 = vst [vmem:[%s153 + $0x1f4] sm:%s145] %v404
                %v406 = vld [vmem:[%s152 + $0x378] sm:%s145]
                %407 = vst [vmem:[%s153 + $0x1f8] sm:%s145] %v406
                %v408 = vld [vmem:[%s152 + $0x37c] sm:%s145]
                %409 = vst [vmem:[%s153 + $0x1fc] sm:%s145] %v408
              $region45: #{_lenet_apply.3} parent=39 // loop_footer
                %s151 = sadd.s32 1, %s147
              $region46: #{_lenet_apply.3} parent=39 // loop_footer_branch
                %146 = sbr.rel target = $region42
              $region47: #{_lenet_apply.3} parent=39 // loop_exit
                _
            $region40: #{_lenet_apply.3} parent=31 // pred_fallthru
              _
          $region32: #{_lenet_apply.3} parent=27 // pred_fallthru
            _
          %686 = vnop
        $region28: #{_lenet_apply.3} parent=23 // pred_fallthru
          _
      $region24: #{_lenet_apply.3} parent=5 // pred_fallthru
        _
      %p687 = scmp.le.s32.totalorder 1, %s9
      %p688 = scmp.lt.s32.totalorder %s9, 3
      %p689 = pnand %p687, %p688
      %p690 = pneg %p689
      // Predicated region
      $region66: #{_lenet_apply.3} parent=5 // pred_check
        _
      $region67: #{_lenet_apply.3} parent=5 // pred_check_branch
        %692 = sbr.rel (%p689) target = $region69
      $region68: #{_lenet_apply.3} parent=5 // pred_region
        %s693 = ssub.s32 %s9, 1
        %s694 = sand.u32 %s22, 1
        %s695 = sand.u32 %s22, 1
        %s696 = smul.addr %s695, 512
        %s697 = scalar_lea.vmem [#allocation2], %s696
        // Predicated region
        $region70: #{_lenet_apply.3} parent=68 // pred_check
          %p698 = pneg %p35
        $region71: #{_lenet_apply.3} parent=68 // pred_check_branch
          %700 = sbr.rel (%p698) target = $region73
        $region72: #{_lenet_apply.3} parent=68 // pred_region
          _
        $region73: #{_lenet_apply.3} parent=68 // pred_fallthru
          _
        %s701 = sand.u32 %s22, 1
        %s702 = sand.u32 %s22, 1
        %s703 = smul.addr %s702, 512
        %s704 = scalar_lea.vmem [#allocation2], %s703
        %p705 = pneg %p35
        %p706 = pneg %p32
        %p707 = pneg %p56
        %p708 = pneg %p53
        %p709 = pneg %p77
        %p710 = pneg %p74
        %p711 = pneg %p103
        %p712 = pneg %p100
        %s713 = smul.u32 32, %s14
        %p714 = scmp.lt.s32.totalorder %s713, 63
        %s715 = scalar_select %p714, %s713, 63
        %s716 = smul.addr %s715, 4
        %s717 = scalar_lea.vmem %s3, %s716
        %s718 = smul.u32 32, %s14
        %s719 = smul.u32 32, %s14
        %p720 = scmp.lt.s32.totalorder %s719, 63
        %s721 = scalar_select %p720, %s719, 63
        %s722 = smul.addr %s721, 4
        %s723 = scalar_lea.vmem %s3, %s722
        %s724 = smul.u32 32, %s14
        %v725 = vld [vmem:[%s1] sm:$0xf]
        %v726 = vld [vmem:[%s1 + $0x4] sm:$0xf]
        %v727 = vld [vmem:[%s1 + $0x8] sm:$0xf]
        %v728 = vld [vmem:[%s1 + $0xc] sm:$0xf]
        %v729 = vld [vmem:[%s1 + $0x10] sm:$0xf]
        %v730 = vld [vmem:[%s1 + $0x14] sm:$0xf]
        %v731 = vld [vmem:[%s1 + $0x18] sm:$0xf]
        %v732 = vld [vmem:[%s1 + $0x1c] sm:$0xf]
        %v733 = vld [vmem:[%s1 + $0x20] sm:$0xf]
        %v734 = vld [vmem:[%s1 + $0x24] sm:$0xf]
        %v735 = vld [vmem:[%s1 + $0x28] sm:$0xf]
        %v736 = vld [vmem:[%s1 + $0x2c] sm:$0xf]
        %v737 = vld [vmem:[%s1 + $0x30] sm:$0xf]
        %v738 = vld [vmem:[%s1 + $0x34] sm:$0xf]
        %v739 = vld [vmem:[%s1 + $0x38] sm:$0xf]
        %v740 = vld [vmem:[%s1 + $0x3c] sm:$0xf]
        %v741 = vld [vmem:[%s697] sm:$0xf]
        %v742 = vld [vmem:[%s697 + $0x4] sm:$0xf]
        %v743 = vld [vmem:[%s697 + $0x8] sm:$0xf]
        %v744 = vld [vmem:[%s697 + $0xc] sm:$0xf]
        %v745 = vld [vmem:[%s697 + $0x10] sm:$0xf]
        %v746 = vld [vmem:[%s697 + $0x14] sm:$0xf]
        %v747 = vld [vmem:[%s697 + $0x18] sm:$0xf]
        %v748 = vld [vmem:[%s697 + $0x1c] sm:$0xf]
        %v749 = vld [vmem:[%s697 + $0x20] sm:$0xf]
        %v750 = vld [vmem:[%s697 + $0x24] sm:$0xf]
        %v751 = vld [vmem:[%s697 + $0x28] sm:$0xf]
        %v752 = vld [vmem:[%s697 + $0x2c] sm:$0xf]
        %v753 = vld [vmem:[%s697 + $0x30] sm:$0xf]
        %v754 = vld [vmem:[%s697 + $0x34] sm:$0xf]
        %v755 = vld [vmem:[%s697 + $0x38] sm:$0xf]
        %v756 = vld [vmem:[%s697 + $0x3c] sm:$0xf]
        %v757 = vld [vmem:[%s697 + $0x40] sm:$0xf]
        %v758 = vld [vmem:[%s697 + $0x44] sm:$0xf]
        %v759 = vld [vmem:[%s697 + $0x48] sm:$0xf]
        %v760 = vld [vmem:[%s697 + $0x4c] sm:$0xf]
        %v761 = vld [vmem:[%s697 + $0x50] sm:$0xf]
        %v762 = vld [vmem:[%s697 + $0x54] sm:$0xf]
        %v763 = vld [vmem:[%s697 + $0x58] sm:$0xf]
        %v764 = vld [vmem:[%s697 + $0x5c] sm:$0xf]
        %v765 = vld [vmem:[%s697 + $0x60] sm:$0xf]
        %v766 = vld [vmem:[%s697 + $0x64] sm:$0xf]
        %v767 = vld [vmem:[%s697 + $0x68] sm:$0xf]
        %v768 = vld [vmem:[%s697 + $0x6c] sm:$0xf]
        %v769 = vld [vmem:[%s697 + $0x70] sm:$0xf]
        %v770 = vld [vmem:[%s697 + $0x74] sm:$0xf]
        %v771 = vld [vmem:[%s697 + $0x78] sm:$0xf]
        %v772 = vld [vmem:[%s697 + $0x7c] sm:$0xf]
        %v805 = vunpack.c.l.b16 %v741
        %v806 = vunpack.c.l.b16 %v742
        %v807 = vunpack.c.l.b16 %v743
        %v808 = vunpack.c.l.b16 %v744
        %v809 = vunpack.c.l.b16 %v745
        %v810 = vunpack.c.l.b16 %v746
        %v811 = vunpack.c.l.b16 %v747
        %v812 = vunpack.c.l.b16 %v748
        %v813 = vunpack.c.l.b16 %v749
        %v814 = vunpack.c.l.b16 %v750
        %v815 = vunpack.c.l.b16 %v751
        %v816 = vunpack.c.l.b16 %v752
        %v817 = vunpack.c.l.b16 %v753
        %v818 = vunpack.c.l.b16 %v754
        %v819 = vunpack.c.l.b16 %v755
        %v820 = vunpack.c.l.b16 %v756
        %v821 = vunpack.c.l.b16 %v757
        %v822 = vunpack.c.l.b16 %v758
        %v823 = vunpack.c.l.b16 %v759
        %v824 = vunpack.c.l.b16 %v760
        %v825 = vunpack.c.l.b16 %v761
        %v826 = vunpack.c.l.b16 %v762
        %v827 = vunpack.c.l.b16 %v763
        %v828 = vunpack.c.l.b16 %v764
        %v829 = vunpack.c.l.b16 %v765
        %v830 = vunpack.c.l.b16 %v766
        %v831 = vunpack.c.l.b16 %v767
        %v832 = vunpack.c.l.b16 %v768
        %v833 = vunpack.c.l.b16 %v769
        %v834 = vunpack.c.l.b16 %v770
        %v835 = vunpack.c.l.b16 %v771
        %v836 = vunpack.c.l.b16 %v772
        %v837 = vpack.c.b16 %v806, %v805
        %v838 = vpack.c.b16 %v808, %v807
        %v839 = vpack.c.b16 %v810, %v809
        %v840 = vpack.c.b16 %v812, %v811
        %v841 = vpack.c.b16 %v814, %v813
        %v842 = vpack.c.b16 %v816, %v815
        %v843 = vpack.c.b16 %v818, %v817
        %v844 = vpack.c.b16 %v820, %v819
        %v845 = vpack.c.b16 %v822, %v821
        %v846 = vpack.c.b16 %v824, %v823
        %v847 = vpack.c.b16 %v826, %v825
        %v848 = vpack.c.b16 %v828, %v827
        %v849 = vpack.c.b16 %v830, %v829
        %v850 = vpack.c.b16 %v832, %v831
        %v851 = vpack.c.b16 %v834, %v833
        %v852 = vpack.c.b16 %v836, %v835
        %v885 = vunpack.c.l.b16 %v725
        %v886 = vunpack.c.l.b16 %v726
        %v887 = vunpack.c.l.b16 %v727
        %v888 = vunpack.c.l.b16 %v728
        %v889 = vunpack.c.l.b16 %v729
        %v890 = vunpack.c.l.b16 %v730
        %v891 = vunpack.c.l.b16 %v731
        %v892 = vunpack.c.l.b16 %v732
        %v893 = vunpack.c.l.b16 %v733
        %v894 = vunpack.c.l.b16 %v734
        %v895 = vunpack.c.l.b16 %v735
        %v896 = vunpack.c.l.b16 %v736
        %v897 = vunpack.c.l.b16 %v737
        %v898 = vunpack.c.l.b16 %v738
        %v899 = vunpack.c.l.b16 %v739
        %v900 = vunpack.c.l.b16 %v740
        %v901 = vpack.c.b16 %v886, %v885
        %v902 = vpack.c.b16 %v888, %v887
        %v903 = vpack.c.b16 %v890, %v889
        %v904 = vpack.c.b16 %v892, %v891
        %v905 = vpack.c.b16 %v894, %v893
        %v906 = vpack.c.b16 %v896, %v895
        %v907 = vpack.c.b16 %v898, %v897
        %v908 = vpack.c.b16 %v900, %v899
        %917 = vmatpush.bf16.msra.mxu0 %v908
        %918 = vmatpush.bf16.msra.mxu0 %v907
        %919 = vmatpush.bf16.msra.mxu0 %v906
        %920 = vmatpush.bf16.msra.mxu0 %v905
        %921 = vmatpush.bf16.msra.mxu0 %v904
        %922 = vmatpush.bf16.msra.mxu0 %v903
        %923 = vmatpush.bf16.msra.mxu0 %v902
        %924 = vmatpush.bf16.msra.mxu0 %v901
        %925 = vmatmul.bf16.gmra.mxu0 %v837
        %v926 = vpop.f32.mrf.mxu0
        %v927 = vadd.f32 0.0, %v926
        %v928 = vpop.f32.mrf.mxu0
        %v929 = vadd.f32 0.0, %v928
        %930 = vmatmul.bf16.gmra.mxu0 %v838
        %v931 = vpop.f32.mrf.mxu0
        %v932 = vadd.f32 0.0, %v931
        %v933 = vpop.f32.mrf.mxu0
        %v934 = vadd.f32 0.0, %v933
        %935 = vmatmul.bf16.gmra.mxu0 %v839
        %v936 = vpop.f32.mrf.mxu0
        %v937 = vadd.f32 0.0, %v936
        %v938 = vpop.f32.mrf.mxu0
        %v939 = vadd.f32 0.0, %v938
        %940 = vmatmul.bf16.gmra.mxu0 %v840
        %v941 = vpop.f32.mrf.mxu0
        %v942 = vadd.f32 0.0, %v941
        %v943 = vpop.f32.mrf.mxu0
        %v944 = vadd.f32 0.0, %v943
        %945 = vmatmul.bf16.gmra.mxu0 %v841
        %v946 = vpop.f32.mrf.mxu0
        %v947 = vadd.f32 0.0, %v946
        %v948 = vpop.f32.mrf.mxu0
        %v949 = vadd.f32 0.0, %v948
        %950 = vmatmul.bf16.gmra.mxu0 %v842
        %v951 = vpop.f32.mrf.mxu0
        %v952 = vadd.f32 0.0, %v951
        %v953 = vpop.f32.mrf.mxu0
        %v954 = vadd.f32 0.0, %v953
        %955 = vmatmul.bf16.gmra.mxu0 %v843
        %v956 = vpop.f32.mrf.mxu0
        %v957 = vadd.f32 0.0, %v956
        %v958 = vpop.f32.mrf.mxu0
        %v959 = vadd.f32 0.0, %v958
        %960 = vmatmul.bf16.gmra.mxu0 %v844
        %v961 = vpop.f32.mrf.mxu0
        %v962 = vadd.f32 0.0, %v961
        %v963 = vpop.f32.mrf.mxu0
        %v964 = vadd.f32 0.0, %v963
        %965 = vmatmul.bf16.gmra.mxu0 %v845
        %v966 = vpop.f32.mrf.mxu0
        %v967 = vadd.f32 0.0, %v966
        %v968 = vpop.f32.mrf.mxu0
        %v969 = vadd.f32 0.0, %v968
        %970 = vmatmul.bf16.gmra.mxu0 %v846
        %v971 = vpop.f32.mrf.mxu0
        %v972 = vadd.f32 0.0, %v971
        %v973 = vpop.f32.mrf.mxu0
        %v974 = vadd.f32 0.0, %v973
        %975 = vmatmul.bf16.gmra.mxu0 %v847
        %v976 = vpop.f32.mrf.mxu0
        %v977 = vadd.f32 0.0, %v976
        %v978 = vpop.f32.mrf.mxu0
        %v979 = vadd.f32 0.0, %v978
        %980 = vmatmul.bf16.gmra.mxu0 %v848
        %v981 = vpop.f32.mrf.mxu0
        %v982 = vadd.f32 0.0, %v981
        %v983 = vpop.f32.mrf.mxu0
        %v984 = vadd.f32 0.0, %v983
        %985 = vmatmul.bf16.gmra.mxu0 %v849
        %v986 = vpop.f32.mrf.mxu0
        %v987 = vadd.f32 0.0, %v986
        %v988 = vpop.f32.mrf.mxu0
        %v989 = vadd.f32 0.0, %v988
        %990 = vmatmul.bf16.gmra.mxu0 %v850
        %v991 = vpop.f32.mrf.mxu0
        %v992 = vadd.f32 0.0, %v991
        %v993 = vpop.f32.mrf.mxu0
        %v994 = vadd.f32 0.0, %v993
        %995 = vmatmul.bf16.gmra.mxu0 %v851
        %v996 = vpop.f32.mrf.mxu0
        %v997 = vadd.f32 0.0, %v996
        %v998 = vpop.f32.mrf.mxu0
        %v999 = vadd.f32 0.0, %v998
        %1000 = vmatmul.bf16.gmra.mxu0 %v852
        %v1001 = vpop.f32.mrf.mxu0
        %v1002 = vadd.f32 0.0, %v1001
        %v1003 = vpop.f32.mrf.mxu0
        %v1004 = vadd.f32 0.0, %v1003
        %1005 = vdwg.mxu0
        %s1006 = scalar_lea.vmem %s697, 128 [#allocation2]
        %v1007 = vld [vmem:[%s1006] sm:$0xf]
        %v1008 = vld [vmem:[%s1006 + $0x4] sm:$0xf]
        %v1009 = vld [vmem:[%s1006 + $0x8] sm:$0xf]
        %v1010 = vld [vmem:[%s1006 + $0xc] sm:$0xf]
        %v1011 = vld [vmem:[%s1006 + $0x10] sm:$0xf]
        %v1012 = vld [vmem:[%s1006 + $0x14] sm:$0xf]
        %v1013 = vld [vmem:[%s1006 + $0x18] sm:$0xf]
        %v1014 = vld [vmem:[%s1006 + $0x1c] sm:$0xf]
        %v1015 = vld [vmem:[%s1006 + $0x20] sm:$0xf]
        %v1016 = vld [vmem:[%s1006 + $0x24] sm:$0xf]
        %v1017 = vld [vmem:[%s1006 + $0x28] sm:$0xf]
        %v1018 = vld [vmem:[%s1006 + $0x2c] sm:$0xf]
        %v1019 = vld [vmem:[%s1006 + $0x30] sm:$0xf]
        %v1020 = vld [vmem:[%s1006 + $0x34] sm:$0xf]
        %v1021 = vld [vmem:[%s1006 + $0x38] sm:$0xf]
        %v1022 = vld [vmem:[%s1006 + $0x3c] sm:$0xf]
        %v1023 = vld [vmem:[%s1006 + $0x40] sm:$0xf]
        %v1024 = vld [vmem:[%s1006 + $0x44] sm:$0xf]
        %v1025 = vld [vmem:[%s1006 + $0x48] sm:$0xf]
        %v1026 = vld [vmem:[%s1006 + $0x4c] sm:$0xf]
        %v1027 = vld [vmem:[%s1006 + $0x50] sm:$0xf]
        %v1028 = vld [vmem:[%s1006 + $0x54] sm:$0xf]
        %v1029 = vld [vmem:[%s1006 + $0x58] sm:$0xf]
        %v1030 = vld [vmem:[%s1006 + $0x5c] sm:$0xf]
        %v1031 = vld [vmem:[%s1006 + $0x60] sm:$0xf]
        %v1032 = vld [vmem:[%s1006 + $0x64] sm:$0xf]
        %v1033 = vld [vmem:[%s1006 + $0x68] sm:$0xf]
        %v1034 = vld [vmem:[%s1006 + $0x6c] sm:$0xf]
        %v1035 = vld [vmem:[%s1006 + $0x70] sm:$0xf]
        %v1036 = vld [vmem:[%s1006 + $0x74] sm:$0xf]
        %v1037 = vld [vmem:[%s1006 + $0x78] sm:$0xf]
        %v1038 = vld [vmem:[%s1006 + $0x7c] sm:$0xf]
        %v1071 = vunpack.c.l.b16 %v1007
        %v1072 = vunpack.c.l.b16 %v1008
        %v1073 = vunpack.c.l.b16 %v1009
        %v1074 = vunpack.c.l.b16 %v1010
        %v1075 = vunpack.c.l.b16 %v1011
        %v1076 = vunpack.c.l.b16 %v1012
        %v1077 = vunpack.c.l.b16 %v1013
        %v1078 = vunpack.c.l.b16 %v1014
        %v1079 = vunpack.c.l.b16 %v1015
        %v1080 = vunpack.c.l.b16 %v1016
        %v1081 = vunpack.c.l.b16 %v1017
        %v1082 = vunpack.c.l.b16 %v1018
        %v1083 = vunpack.c.l.b16 %v1019
        %v1084 = vunpack.c.l.b16 %v1020
        %v1085 = vunpack.c.l.b16 %v1021
        %v1086 = vunpack.c.l.b16 %v1022
        %v1087 = vunpack.c.l.b16 %v1023
        %v1088 = vunpack.c.l.b16 %v1024
        %v1089 = vunpack.c.l.b16 %v1025
        %v1090 = vunpack.c.l.b16 %v1026
        %v1091 = vunpack.c.l.b16 %v1027
        %v1092 = vunpack.c.l.b16 %v1028
        %v1093 = vunpack.c.l.b16 %v1029
        %v1094 = vunpack.c.l.b16 %v1030
        %v1095 = vunpack.c.l.b16 %v1031
        %v1096 = vunpack.c.l.b16 %v1032
        %v1097 = vunpack.c.l.b16 %v1033
        %v1098 = vunpack.c.l.b16 %v1034
        %v1099 = vunpack.c.l.b16 %v1035
        %v1100 = vunpack.c.l.b16 %v1036
        %v1101 = vunpack.c.l.b16 %v1037
        %v1102 = vunpack.c.l.b16 %v1038
        %v1103 = vpack.c.b16 %v1072, %v1071
        %v1104 = vpack.c.b16 %v1074, %v1073
        %v1105 = vpack.c.b16 %v1076, %v1075
        %v1106 = vpack.c.b16 %v1078, %v1077
        %v1107 = vpack.c.b16 %v1080, %v1079
        %v1108 = vpack.c.b16 %v1082, %v1081
        %v1109 = vpack.c.b16 %v1084, %v1083
        %v1110 = vpack.c.b16 %v1086, %v1085
        %v1111 = vpack.c.b16 %v1088, %v1087
        %v1112 = vpack.c.b16 %v1090, %v1089
        %v1113 = vpack.c.b16 %v1092, %v1091
        %v1114 = vpack.c.b16 %v1094, %v1093
        %v1115 = vpack.c.b16 %v1096, %v1095
        %v1116 = vpack.c.b16 %v1098, %v1097
        %v1117 = vpack.c.b16 %v1100, %v1099
        %v1118 = vpack.c.b16 %v1102, %v1101
        %1135 = vmatpush.bf16.msra.mxu0 %v908
        %1136 = vmatpush.bf16.msra.mxu0 %v907
        %1137 = vmatpush.bf16.msra.mxu0 %v906
        %1138 = vmatpush.bf16.msra.mxu0 %v905
        %1139 = vmatpush.bf16.msra.mxu0 %v904
        %1140 = vmatpush.bf16.msra.mxu0 %v903
        %1141 = vmatpush.bf16.msra.mxu0 %v902
        %1142 = vmatpush.bf16.msra.mxu0 %v901
        %1143 = vmatmul.bf16.gmra.mxu0 %v1103
        %v1144 = vpop.f32.mrf.mxu0
        %v1145 = vadd.f32 0.0, %v1144
        %v1146 = vpop.f32.mrf.mxu0
        %v1147 = vadd.f32 0.0, %v1146
        %1148 = vmatmul.bf16.gmra.mxu0 %v1104
        %v1149 = vpop.f32.mrf.mxu0
        %v1150 = vadd.f32 0.0, %v1149
        %v1151 = vpop.f32.mrf.mxu0
        %v1152 = vadd.f32 0.0, %v1151
        %1153 = vmatmul.bf16.gmra.mxu0 %v1105
        %v1154 = vpop.f32.mrf.mxu0
        %v1155 = vadd.f32 0.0, %v1154
        %v1156 = vpop.f32.mrf.mxu0
        %v1157 = vadd.f32 0.0, %v1156
        %1158 = vmatmul.bf16.gmra.mxu0 %v1106
        %v1159 = vpop.f32.mrf.mxu0
        %v1160 = vadd.f32 0.0, %v1159
        %v1161 = vpop.f32.mrf.mxu0
        %v1162 = vadd.f32 0.0, %v1161
        %1163 = vmatmul.bf16.gmra.mxu0 %v1107
        %v1164 = vpop.f32.mrf.mxu0
        %v1165 = vadd.f32 0.0, %v1164
        %v1166 = vpop.f32.mrf.mxu0
        %v1167 = vadd.f32 0.0, %v1166
        %1168 = vmatmul.bf16.gmra.mxu0 %v1108
        %v1169 = vpop.f32.mrf.mxu0
        %v1170 = vadd.f32 0.0, %v1169
        %v1171 = vpop.f32.mrf.mxu0
        %v1172 = vadd.f32 0.0, %v1171
        %1173 = vmatmul.bf16.gmra.mxu0 %v1109
        %v1174 = vpop.f32.mrf.mxu0
        %v1175 = vadd.f32 0.0, %v1174
        %v1176 = vpop.f32.mrf.mxu0
        %v1177 = vadd.f32 0.0, %v1176
        %1178 = vmatmul.bf16.gmra.mxu0 %v1110
        %v1179 = vpop.f32.mrf.mxu0
        %v1180 = vadd.f32 0.0, %v1179
        %v1181 = vpop.f32.mrf.mxu0
        %v1182 = vadd.f32 0.0, %v1181
        %1183 = vmatmul.bf16.gmra.mxu0 %v1111
        %v1184 = vpop.f32.mrf.mxu0
        %v1185 = vadd.f32 0.0, %v1184
        %v1186 = vpop.f32.mrf.mxu0
        %v1187 = vadd.f32 0.0, %v1186
        %1188 = vmatmul.bf16.gmra.mxu0 %v1112
        %v1189 = vpop.f32.mrf.mxu0
        %v1190 = vadd.f32 0.0, %v1189
        %v1191 = vpop.f32.mrf.mxu0
        %v1192 = vadd.f32 0.0, %v1191
        %1193 = vmatmul.bf16.gmra.mxu0 %v1113
        %v1194 = vpop.f32.mrf.mxu0
        %v1195 = vadd.f32 0.0, %v1194
        %v1196 = vpop.f32.mrf.mxu0
        %v1197 = vadd.f32 0.0, %v1196
        %1198 = vmatmul.bf16.gmra.mxu0 %v1114
        %v1199 = vpop.f32.mrf.mxu0
        %v1200 = vadd.f32 0.0, %v1199
        %v1201 = vpop.f32.mrf.mxu0
        %v1202 = vadd.f32 0.0, %v1201
        %1203 = vmatmul.bf16.gmra.mxu0 %v1115
        %v1204 = vpop.f32.mrf.mxu0
        %v1205 = vadd.f32 0.0, %v1204
        %v1206 = vpop.f32.mrf.mxu0
        %v1207 = vadd.f32 0.0, %v1206
        %1208 = vmatmul.bf16.gmra.mxu0 %v1116
        %v1209 = vpop.f32.mrf.mxu0
        %v1210 = vadd.f32 0.0, %v1209
        %v1211 = vpop.f32.mrf.mxu0
        %v1212 = vadd.f32 0.0, %v1211
        %1213 = vmatmul.bf16.gmra.mxu0 %v1117
        %v1214 = vpop.f32.mrf.mxu0
        %v1215 = vadd.f32 0.0, %v1214
        %v1216 = vpop.f32.mrf.mxu0
        %v1217 = vadd.f32 0.0, %v1216
        %1218 = vmatmul.bf16.gmra.mxu0 %v1118
        %v1219 = vpop.f32.mrf.mxu0
        %v1220 = vadd.f32 0.0, %v1219
        %v1221 = vpop.f32.mrf.mxu0
        %v1222 = vadd.f32 0.0, %v1221
        %1223 = vdwg.mxu0
        %s1224 = scalar_lea.vmem %s697, 256 [#allocation2]
        %v1225 = vld [vmem:[%s1224] sm:$0xf]
        %v1226 = vld [vmem:[%s1224 + $0x4] sm:$0xf]
        %v1227 = vld [vmem:[%s1224 + $0x8] sm:$0xf]
        %v1228 = vld [vmem:[%s1224 + $0xc] sm:$0xf]
        %v1229 = vld [vmem:[%s1224 + $0x10] sm:$0xf]
        %v1230 = vld [vmem:[%s1224 + $0x14] sm:$0xf]
        %v1231 = vld [vmem:[%s1224 + $0x18] sm:$0xf]
        %v1232 = vld [vmem:[%s1224 + $0x1c] sm:$0xf]
        %v1233 = vld [vmem:[%s1224 + $0x20] sm:$0xf]
        %v1234 = vld [vmem:[%s1224 + $0x24] sm:$0xf]
        %v1235 = vld [vmem:[%s1224 + $0x28] sm:$0xf]
        %v1236 = vld [vmem:[%s1224 + $0x2c] sm:$0xf]
        %v1237 = vld [vmem:[%s1224 + $0x30] sm:$0xf]
        %v1238 = vld [vmem:[%s1224 + $0x34] sm:$0xf]
        %v1239 = vld [vmem:[%s1224 + $0x38] sm:$0xf]
        %v1240 = vld [vmem:[%s1224 + $0x3c] sm:$0xf]
        %v1241 = vld [vmem:[%s1224 + $0x40] sm:$0xf]
        %v1242 = vld [vmem:[%s1224 + $0x44] sm:$0xf]
        %v1243 = vld [vmem:[%s1224 + $0x48] sm:$0xf]
        %v1244 = vld [vmem:[%s1224 + $0x4c] sm:$0xf]
        %v1245 = vld [vmem:[%s1224 + $0x50] sm:$0xf]
        %v1246 = vld [vmem:[%s1224 + $0x54] sm:$0xf]
        %v1247 = vld [vmem:[%s1224 + $0x58] sm:$0xf]
        %v1248 = vld [vmem:[%s1224 + $0x5c] sm:$0xf]
        %v1249 = vld [vmem:[%s1224 + $0x60] sm:$0xf]
        %v1250 = vld [vmem:[%s1224 + $0x64] sm:$0xf]
        %v1251 = vld [vmem:[%s1224 + $0x68] sm:$0xf]
        %v1252 = vld [vmem:[%s1224 + $0x6c] sm:$0xf]
        %v1253 = vld [vmem:[%s1224 + $0x70] sm:$0xf]
        %v1254 = vld [vmem:[%s1224 + $0x74] sm:$0xf]
        %v1255 = vld [vmem:[%s1224 + $0x78] sm:$0xf]
        %v1256 = vld [vmem:[%s1224 + $0x7c] sm:$0xf]
        %v1289 = vunpack.c.l.b16 %v1225
        %v1290 = vunpack.c.l.b16 %v1226
        %v1291 = vunpack.c.l.b16 %v1227
        %v1292 = vunpack.c.l.b16 %v1228
        %v1293 = vunpack.c.l.b16 %v1229
        %v1294 = vunpack.c.l.b16 %v1230
        %v1295 = vunpack.c.l.b16 %v1231
        %v1296 = vunpack.c.l.b16 %v1232
        %v1297 = vunpack.c.l.b16 %v1233
        %v1298 = vunpack.c.l.b16 %v1234
        %v1299 = vunpack.c.l.b16 %v1235
        %v1300 = vunpack.c.l.b16 %v1236
        %v1301 = vunpack.c.l.b16 %v1237
        %v1302 = vunpack.c.l.b16 %v1238
        %v1303 = vunpack.c.l.b16 %v1239
        %v1304 = vunpack.c.l.b16 %v1240
        %v1305 = vunpack.c.l.b16 %v1241
        %v1306 = vunpack.c.l.b16 %v1242
        %v1307 = vunpack.c.l.b16 %v1243
        %v1308 = vunpack.c.l.b16 %v1244
        %v1309 = vunpack.c.l.b16 %v1245
        %v1310 = vunpack.c.l.b16 %v1246
        %v1311 = vunpack.c.l.b16 %v1247
        %v1312 = vunpack.c.l.b16 %v1248
        %v1313 = vunpack.c.l.b16 %v1249
        %v1314 = vunpack.c.l.b16 %v1250
        %v1315 = vunpack.c.l.b16 %v1251
        %v1316 = vunpack.c.l.b16 %v1252
        %v1317 = vunpack.c.l.b16 %v1253
        %v1318 = vunpack.c.l.b16 %v1254
        %v1319 = vunpack.c.l.b16 %v1255
        %v1320 = vunpack.c.l.b16 %v1256
        %v1321 = vpack.c.b16 %v1290, %v1289
        %v1322 = vpack.c.b16 %v1292, %v1291
        %v1323 = vpack.c.b16 %v1294, %v1293
        %v1324 = vpack.c.b16 %v1296, %v1295
        %v1325 = vpack.c.b16 %v1298, %v1297
        %v1326 = vpack.c.b16 %v1300, %v1299
        %v1327 = vpack.c.b16 %v1302, %v1301
        %v1328 = vpack.c.b16 %v1304, %v1303
        %v1329 = vpack.c.b16 %v1306, %v1305
        %v1330 = vpack.c.b16 %v1308, %v1307
        %v1331 = vpack.c.b16 %v1310, %v1309
        %v1332 = vpack.c.b16 %v1312, %v1311
        %v1333 = vpack.c.b16 %v1314, %v1313
        %v1334 = vpack.c.b16 %v1316, %v1315
        %v1335 = vpack.c.b16 %v1318, %v1317
        %v1336 = vpack.c.b16 %v1320, %v1319
        %1353 = vmatpush.bf16.msra.mxu0 %v908
        %1354 = vmatpush.bf16.msra.mxu0 %v907
        %1355 = vmatpush.bf16.msra.mxu0 %v906
        %1356 = vmatpush.bf16.msra.mxu0 %v905
        %1357 = vmatpush.bf16.msra.mxu0 %v904
        %1358 = vmatpush.bf16.msra.mxu0 %v903
        %1359 = vmatpush.bf16.msra.mxu0 %v902
        %1360 = vmatpush.bf16.msra.mxu0 %v901
        %1361 = vmatmul.bf16.gmra.mxu0 %v1321
        %v1362 = vpop.f32.mrf.mxu0
        %v1363 = vadd.f32 0.0, %v1362
        %v1364 = vpop.f32.mrf.mxu0
        %v1365 = vadd.f32 0.0, %v1364
        %1366 = vmatmul.bf16.gmra.mxu0 %v1322
        %v1367 = vpop.f32.mrf.mxu0
        %v1368 = vadd.f32 0.0, %v1367
        %v1369 = vpop.f32.mrf.mxu0
        %v1370 = vadd.f32 0.0, %v1369
        %1371 = vmatmul.bf16.gmra.mxu0 %v1323
        %v1372 = vpop.f32.mrf.mxu0
        %v1373 = vadd.f32 0.0, %v1372
        %v1374 = vpop.f32.mrf.mxu0
        %v1375 = vadd.f32 0.0, %v1374
        %1376 = vmatmul.bf16.gmra.mxu0 %v1324
        %v1377 = vpop.f32.mrf.mxu0
        %v1378 = vadd.f32 0.0, %v1377
        %v1379 = vpop.f32.mrf.mxu0
        %v1380 = vadd.f32 0.0, %v1379
        %1381 = vmatmul.bf16.gmra.mxu0 %v1325
        %v1382 = vpop.f32.mrf.mxu0
        %v1383 = vadd.f32 0.0, %v1382
        %v1384 = vpop.f32.mrf.mxu0
        %v1385 = vadd.f32 0.0, %v1384
        %1386 = vmatmul.bf16.gmra.mxu0 %v1326
        %v1387 = vpop.f32.mrf.mxu0
        %v1388 = vadd.f32 0.0, %v1387
        %v1389 = vpop.f32.mrf.mxu0
        %v1390 = vadd.f32 0.0, %v1389
        %1391 = vmatmul.bf16.gmra.mxu0 %v1327
        %v1392 = vpop.f32.mrf.mxu0
        %v1393 = vadd.f32 0.0, %v1392
        %v1394 = vpop.f32.mrf.mxu0
        %v1395 = vadd.f32 0.0, %v1394
        %1396 = vmatmul.bf16.gmra.mxu0 %v1328
        %v1397 = vpop.f32.mrf.mxu0
        %v1398 = vadd.f32 0.0, %v1397
        %v1399 = vpop.f32.mrf.mxu0
        %v1400 = vadd.f32 0.0, %v1399
        %1401 = vmatmul.bf16.gmra.mxu0 %v1329
        %v1402 = vpop.f32.mrf.mxu0
        %v1403 = vadd.f32 0.0, %v1402
        %v1404 = vpop.f32.mrf.mxu0
        %v1405 = vadd.f32 0.0, %v1404
        %1406 = vmatmul.bf16.gmra.mxu0 %v1330
        %v1407 = vpop.f32.mrf.mxu0
        %v1408 = vadd.f32 0.0, %v1407
        %v1409 = vpop.f32.mrf.mxu0
        %v1410 = vadd.f32 0.0, %v1409
        %1411 = vmatmul.bf16.gmra.mxu0 %v1331
        %v1412 = vpop.f32.mrf.mxu0
        %v1413 = vadd.f32 0.0, %v1412
        %v1414 = vpop.f32.mrf.mxu0
        %v1415 = vadd.f32 0.0, %v1414
        %1416 = vmatmul.bf16.gmra.mxu0 %v1332
        %v1417 = vpop.f32.mrf.mxu0
        %v1418 = vadd.f32 0.0, %v1417
        %v1419 = vpop.f32.mrf.mxu0
        %v1420 = vadd.f32 0.0, %v1419
        %1421 = vmatmul.bf16.gmra.mxu0 %v1333
        %v1422 = vpop.f32.mrf.mxu0
        %v1423 = vadd.f32 0.0, %v1422
        %v1424 = vpop.f32.mrf.mxu0
        %v1425 = vadd.f32 0.0, %v1424
        %1426 = vmatmul.bf16.gmra.mxu0 %v1334
        %v1427 = vpop.f32.mrf.mxu0
        %v1428 = vadd.f32 0.0, %v1427
        %v1429 = vpop.f32.mrf.mxu0
        %v1430 = vadd.f32 0.0, %v1429
        %1431 = vmatmul.bf16.gmra.mxu0 %v1335
        %v1432 = vpop.f32.mrf.mxu0
        %v1433 = vadd.f32 0.0, %v1432
        %v1434 = vpop.f32.mrf.mxu0
        %v1435 = vadd.f32 0.0, %v1434
        %1436 = vmatmul.bf16.gmra.mxu0 %v1336
        %v1437 = vpop.f32.mrf.mxu0
        %v1438 = vadd.f32 0.0, %v1437
        %v1439 = vpop.f32.mrf.mxu0
        %v1440 = vadd.f32 0.0, %v1439
        %1441 = vdwg.mxu0
        %s1442 = scalar_lea.vmem %s697, 384 [#allocation2]
        %v1443 = vld [vmem:[%s1442] sm:$0xf]
        %v1444 = vld [vmem:[%s1442 + $0x4] sm:$0xf]
        %v1445 = vld [vmem:[%s1442 + $0x8] sm:$0xf]
        %v1446 = vld [vmem:[%s1442 + $0xc] sm:$0xf]
        %v1447 = vld [vmem:[%s1442 + $0x10] sm:$0xf]
        %v1448 = vld [vmem:[%s1442 + $0x14] sm:$0xf]
        %v1449 = vld [vmem:[%s1442 + $0x18] sm:$0xf]
        %v1450 = vld [vmem:[%s1442 + $0x1c] sm:$0xf]
        %v1451 = vld [vmem:[%s1442 + $0x20] sm:$0xf]
        %v1452 = vld [vmem:[%s1442 + $0x24] sm:$0xf]
        %v1453 = vld [vmem:[%s1442 + $0x28] sm:$0xf]
        %v1454 = vld [vmem:[%s1442 + $0x2c] sm:$0xf]
        %v1455 = vld [vmem:[%s1442 + $0x30] sm:$0xf]
        %v1456 = vld [vmem:[%s1442 + $0x34] sm:$0xf]
        %v1457 = vld [vmem:[%s1442 + $0x38] sm:$0xf]
        %v1458 = vld [vmem:[%s1442 + $0x3c] sm:$0xf]
        %v1459 = vld [vmem:[%s1442 + $0x40] sm:$0xf]
        %v1460 = vld [vmem:[%s1442 + $0x44] sm:$0xf]
        %v1461 = vld [vmem:[%s1442 + $0x48] sm:$0xf]
        %v1462 = vld [vmem:[%s1442 + $0x4c] sm:$0xf]
        %v1463 = vld [vmem:[%s1442 + $0x50] sm:$0xf]
        %v1464 = vld [vmem:[%s1442 + $0x54] sm:$0xf]
        %v1465 = vld [vmem:[%s1442 + $0x58] sm:$0xf]
        %v1466 = vld [vmem:[%s1442 + $0x5c] sm:$0xf]
        %v1467 = vld [vmem:[%s1442 + $0x60] sm:$0xf]
        %v1468 = vld [vmem:[%s1442 + $0x64] sm:$0xf]
        %v1469 = vld [vmem:[%s1442 + $0x68] sm:$0xf]
        %v1470 = vld [vmem:[%s1442 + $0x6c] sm:$0xf]
        %v1471 = vld [vmem:[%s1442 + $0x70] sm:$0xf]
        %v1472 = vld [vmem:[%s1442 + $0x74] sm:$0xf]
        %v1473 = vld [vmem:[%s1442 + $0x78] sm:$0xf]
        %v1474 = vld [vmem:[%s1442 + $0x7c] sm:$0xf]
        %v1507 = vunpack.c.l.b16 %v1443
        %v1508 = vunpack.c.l.b16 %v1444
        %v1509 = vunpack.c.l.b16 %v1445
        %v1510 = vunpack.c.l.b16 %v1446
        %v1511 = vunpack.c.l.b16 %v1447
        %v1512 = vunpack.c.l.b16 %v1448
        %v1513 = vunpack.c.l.b16 %v1449
        %v1514 = vunpack.c.l.b16 %v1450
        %v1515 = vunpack.c.l.b16 %v1451
        %v1516 = vunpack.c.l.b16 %v1452
        %v1517 = vunpack.c.l.b16 %v1453
        %v1518 = vunpack.c.l.b16 %v1454
        %v1519 = vunpack.c.l.b16 %v1455
        %v1520 = vunpack.c.l.b16 %v1456
        %v1521 = vunpack.c.l.b16 %v1457
        %v1522 = vunpack.c.l.b16 %v1458
        %v1523 = vunpack.c.l.b16 %v1459
        %v1524 = vunpack.c.l.b16 %v1460
        %v1525 = vunpack.c.l.b16 %v1461
        %v1526 = vunpack.c.l.b16 %v1462
        %v1527 = vunpack.c.l.b16 %v1463
        %v1528 = vunpack.c.l.b16 %v1464
        %v1529 = vunpack.c.l.b16 %v1465
        %v1530 = vunpack.c.l.b16 %v1466
        %v1531 = vunpack.c.l.b16 %v1467
        %v1532 = vunpack.c.l.b16 %v1468
        %v1533 = vunpack.c.l.b16 %v1469
        %v1534 = vunpack.c.l.b16 %v1470
        %v1535 = vunpack.c.l.b16 %v1471
        %v1536 = vunpack.c.l.b16 %v1472
        %v1537 = vunpack.c.l.b16 %v1473
        %v1538 = vunpack.c.l.b16 %v1474
        %v1539 = vpack.c.b16 %v1508, %v1507
        %v1540 = vpack.c.b16 %v1510, %v1509
        %v1541 = vpack.c.b16 %v1512, %v1511
        %v1542 = vpack.c.b16 %v1514, %v1513
        %v1543 = vpack.c.b16 %v1516, %v1515
        %v1544 = vpack.c.b16 %v1518, %v1517
        %v1545 = vpack.c.b16 %v1520, %v1519
        %v1546 = vpack.c.b16 %v1522, %v1521
        %v1547 = vpack.c.b16 %v1524, %v1523
        %v1548 = vpack.c.b16 %v1526, %v1525
        %v1549 = vpack.c.b16 %v1528, %v1527
        %v1550 = vpack.c.b16 %v1530, %v1529
        %v1551 = vpack.c.b16 %v1532, %v1531
        %v1552 = vpack.c.b16 %v1534, %v1533
        %v1553 = vpack.c.b16 %v1536, %v1535
        %v1554 = vpack.c.b16 %v1538, %v1537
        %1571 = vmatpush.bf16.msra.mxu0 %v908
        %1572 = vmatpush.bf16.msra.mxu0 %v907
        %1573 = vmatpush.bf16.msra.mxu0 %v906
        %1574 = vmatpush.bf16.msra.mxu0 %v905
        %1575 = vmatpush.bf16.msra.mxu0 %v904
        %1576 = vmatpush.bf16.msra.mxu0 %v903
        %1577 = vmatpush.bf16.msra.mxu0 %v902
        %1578 = vmatpush.bf16.msra.mxu0 %v901
        %1579 = vmatmul.bf16.gmra.mxu0 %v1539
        %v1580 = vpop.f32.mrf.mxu0
        %v1581 = vadd.f32 0.0, %v1580
        %v1582 = vpop.f32.mrf.mxu0
        %v1583 = vadd.f32 0.0, %v1582
        %1584 = vmatmul.bf16.gmra.mxu0 %v1540
        %v1585 = vpop.f32.mrf.mxu0
        %v1586 = vadd.f32 0.0, %v1585
        %v1587 = vpop.f32.mrf.mxu0
        %v1588 = vadd.f32 0.0, %v1587
        %1589 = vmatmul.bf16.gmra.mxu0 %v1541
        %v1590 = vpop.f32.mrf.mxu0
        %v1591 = vadd.f32 0.0, %v1590
        %v1592 = vpop.f32.mrf.mxu0
        %v1593 = vadd.f32 0.0, %v1592
        %1594 = vmatmul.bf16.gmra.mxu0 %v1542
        %v1595 = vpop.f32.mrf.mxu0
        %v1596 = vadd.f32 0.0, %v1595
        %v1597 = vpop.f32.mrf.mxu0
        %v1598 = vadd.f32 0.0, %v1597
        %1599 = vmatmul.bf16.gmra.mxu0 %v1543
        %v1600 = vpop.f32.mrf.mxu0
        %v1601 = vadd.f32 0.0, %v1600
        %v1602 = vpop.f32.mrf.mxu0
        %v1603 = vadd.f32 0.0, %v1602
        %1604 = vmatmul.bf16.gmra.mxu0 %v1544
        %v1605 = vpop.f32.mrf.mxu0
        %v1606 = vadd.f32 0.0, %v1605
        %v1607 = vpop.f32.mrf.mxu0
        %v1608 = vadd.f32 0.0, %v1607
        %1609 = vmatmul.bf16.gmra.mxu0 %v1545
        %v1610 = vpop.f32.mrf.mxu0
        %v1611 = vadd.f32 0.0, %v1610
        %v1612 = vpop.f32.mrf.mxu0
        %v1613 = vadd.f32 0.0, %v1612
        %1614 = vmatmul.bf16.gmra.mxu0 %v1546
        %v1615 = vpop.f32.mrf.mxu0
        %v1616 = vadd.f32 0.0, %v1615
        %v1617 = vpop.f32.mrf.mxu0
        %v1618 = vadd.f32 0.0, %v1617
        %1619 = vmatmul.bf16.gmra.mxu0 %v1547
        %v1620 = vpop.f32.mrf.mxu0
        %v1621 = vadd.f32 0.0, %v1620
        %v1622 = vpop.f32.mrf.mxu0
        %v1623 = vadd.f32 0.0, %v1622
        %1624 = vmatmul.bf16.gmra.mxu0 %v1548
        %v1625 = vpop.f32.mrf.mxu0
        %v1626 = vadd.f32 0.0, %v1625
        %v1627 = vpop.f32.mrf.mxu0
        %v1628 = vadd.f32 0.0, %v1627
        %1629 = vmatmul.bf16.gmra.mxu0 %v1549
        %v1630 = vpop.f32.mrf.mxu0
        %v1631 = vadd.f32 0.0, %v1630
        %v1632 = vpop.f32.mrf.mxu0
        %v1633 = vadd.f32 0.0, %v1632
        %1634 = vmatmul.bf16.gmra.mxu0 %v1550
        %v1635 = vpop.f32.mrf.mxu0
        %v1636 = vadd.f32 0.0, %v1635
        %v1637 = vpop.f32.mrf.mxu0
        %v1638 = vadd.f32 0.0, %v1637
        %1639 = vmatmul.bf16.gmra.mxu0 %v1551
        %v1640 = vpop.f32.mrf.mxu0
        %v1641 = vadd.f32 0.0, %v1640
        %v1642 = vpop.f32.mrf.mxu0
        %v1643 = vadd.f32 0.0, %v1642
        %1644 = vmatmul.bf16.gmra.mxu0 %v1552
        %v1645 = vpop.f32.mrf.mxu0
        %v1646 = vadd.f32 0.0, %v1645
        %v1647 = vpop.f32.mrf.mxu0
        %v1648 = vadd.f32 0.0, %v1647
        %1649 = vmatmul.bf16.gmra.mxu0 %v1553
        %v1650 = vpop.f32.mrf.mxu0
        %v1651 = vadd.f32 0.0, %v1650
        %v1652 = vpop.f32.mrf.mxu0
        %v1653 = vadd.f32 0.0, %v1652
        %1654 = vmatmul.bf16.gmra.mxu0 %v1554
        %v1655 = vpop.f32.mrf.mxu0
        %v1656 = vadd.f32 0.0, %v1655
        %v1657 = vpop.f32.mrf.mxu0
        %v1658 = vadd.f32 0.0, %v1657
        %1659 = vdwg.mxu0
        %v1660 = vmax.f32 %v927, %v1145
        %v1661 = vmax.f32 %v929, %v1147
        %v1662 = vmax.f32 %v932, %v1150
        %v1663 = vmax.f32 %v934, %v1152
        %v1664 = vmax.f32 %v937, %v1155
        %v1665 = vmax.f32 %v939, %v1157
        %v1666 = vmax.f32 %v942, %v1160
        %v1667 = vmax.f32 %v944, %v1162
        %v1668 = vmax.f32 %v947, %v1165
        %v1669 = vmax.f32 %v949, %v1167
        %v1670 = vmax.f32 %v952, %v1170
        %v1671 = vmax.f32 %v954, %v1172
        %v1672 = vmax.f32 %v957, %v1175
        %v1673 = vmax.f32 %v959, %v1177
        %v1674 = vmax.f32 %v962, %v1180
        %v1675 = vmax.f32 %v964, %v1182
        %v1676 = vmax.f32 %v967, %v1185
        %v1677 = vmax.f32 %v969, %v1187
        %v1678 = vmax.f32 %v972, %v1190
        %v1679 = vmax.f32 %v974, %v1192
        %v1680 = vmax.f32 %v977, %v1195
        %v1681 = vmax.f32 %v979, %v1197
        %v1682 = vmax.f32 %v982, %v1200
        %v1683 = vmax.f32 %v984, %v1202
        %v1684 = vmax.f32 %v987, %v1205
        %v1685 = vmax.f32 %v989, %v1207
        %v1686 = vmax.f32 %v992, %v1210
        %v1687 = vmax.f32 %v994, %v1212
        %v1688 = vmax.f32 %v997, %v1215
        %v1689 = vmax.f32 %v999, %v1217
        %v1690 = vmax.f32 %v1002, %v1220
        %v1691 = vmax.f32 %v1004, %v1222
        %v1692 = vmax.f32 %v1363, %v1581
        %v1693 = vmax.f32 %v1365, %v1583
        %v1694 = vmax.f32 %v1368, %v1586
        %v1695 = vmax.f32 %v1370, %v1588
        %v1696 = vmax.f32 %v1373, %v1591
        %v1697 = vmax.f32 %v1375, %v1593
        %v1698 = vmax.f32 %v1378, %v1596
        %v1699 = vmax.f32 %v1380, %v1598
        %v1700 = vmax.f32 %v1383, %v1601
        %v1701 = vmax.f32 %v1385, %v1603
        %v1702 = vmax.f32 %v1388, %v1606
        %v1703 = vmax.f32 %v1390, %v1608
        %v1704 = vmax.f32 %v1393, %v1611
        %v1705 = vmax.f32 %v1395, %v1613
        %v1706 = vmax.f32 %v1398, %v1616
        %v1707 = vmax.f32 %v1400, %v1618
        %v1708 = vmax.f32 %v1403, %v1621
        %v1709 = vmax.f32 %v1405, %v1623
        %v1710 = vmax.f32 %v1408, %v1626
        %v1711 = vmax.f32 %v1410, %v1628
        %v1712 = vmax.f32 %v1413, %v1631
        %v1713 = vmax.f32 %v1415, %v1633
        %v1714 = vmax.f32 %v1418, %v1636
        %v1715 = vmax.f32 %v1420, %v1638
        %v1716 = vmax.f32 %v1423, %v1641
        %v1717 = vmax.f32 %v1425, %v1643
        %v1718 = vmax.f32 %v1428, %v1646
        %v1719 = vmax.f32 %v1430, %v1648
        %v1720 = vmax.f32 %v1433, %v1651
        %v1721 = vmax.f32 %v1435, %v1653
        %v1722 = vmax.f32 %v1438, %v1656
        %v1723 = vmax.f32 %v1440, %v1658
        %v1724 = vmax.f32 %v1660, %v1692
        %v1725 = vmax.f32 %v1661, %v1693
        %v1726 = vmax.f32 %v1662, %v1694
        %v1727 = vmax.f32 %v1663, %v1695
        %v1728 = vmax.f32 %v1664, %v1696
        %v1729 = vmax.f32 %v1665, %v1697
        %v1730 = vmax.f32 %v1666, %v1698
        %v1731 = vmax.f32 %v1667, %v1699
        %v1732 = vmax.f32 %v1668, %v1700
        %v1733 = vmax.f32 %v1669, %v1701
        %v1734 = vmax.f32 %v1670, %v1702
        %v1735 = vmax.f32 %v1671, %v1703
        %v1736 = vmax.f32 %v1672, %v1704
        %v1737 = vmax.f32 %v1673, %v1705
        %v1738 = vmax.f32 %v1674, %v1706
        %v1739 = vmax.f32 %v1675, %v1707
        %v1740 = vmax.f32 %v1676, %v1708
        %v1741 = vmax.f32 %v1677, %v1709
        %v1742 = vmax.f32 %v1678, %v1710
        %v1743 = vmax.f32 %v1679, %v1711
        %v1744 = vmax.f32 %v1680, %v1712
        %v1745 = vmax.f32 %v1681, %v1713
        %v1746 = vmax.f32 %v1682, %v1714
        %v1747 = vmax.f32 %v1683, %v1715
        %v1748 = vmax.f32 %v1684, %v1716
        %v1749 = vmax.f32 %v1685, %v1717
        %v1750 = vmax.f32 %v1686, %v1718
        %v1751 = vmax.f32 %v1687, %v1719
        %v1752 = vmax.f32 %v1688, %v1720
        %v1753 = vmax.f32 %v1689, %v1721
        %v1754 = vmax.f32 %v1690, %v1722
        %v1755 = vmax.f32 %v1691, %v1723
        %v1756 = vld [vmem:[%s2] sm:$0x1]
        %v1758 = vperm.slane %v1756, 0
        %v1760 = vadd.f32 %v1724, %v1758
        %v1761 = vadd.f32 %v1725, %v1758
        %v1762 = vadd.f32 %v1726, %v1758
        %v1763 = vadd.f32 %v1727, %v1758
        %v1764 = vadd.f32 %v1728, %v1758
        %v1765 = vadd.f32 %v1729, %v1758
        %v1766 = vadd.f32 %v1730, %v1758
        %v1767 = vadd.f32 %v1731, %v1758
        %v1768 = vadd.f32 %v1732, %v1758
        %v1769 = vadd.f32 %v1733, %v1758
        %v1770 = vadd.f32 %v1734, %v1758
        %v1771 = vadd.f32 %v1735, %v1758
        %v1772 = vadd.f32 %v1736, %v1758
        %v1773 = vadd.f32 %v1737, %v1758
        %v1774 = vadd.f32 %v1738, %v1758
        %v1775 = vadd.f32 %v1739, %v1758
        %v1776 = vadd.f32 %v1740, %v1758
        %v1777 = vadd.f32 %v1741, %v1758
        %v1778 = vadd.f32 %v1742, %v1758
        %v1779 = vadd.f32 %v1743, %v1758
        %v1780 = vadd.f32 %v1744, %v1758
        %v1781 = vadd.f32 %v1745, %v1758
        %v1782 = vadd.f32 %v1746, %v1758
        %v1783 = vadd.f32 %v1747, %v1758
        %v1784 = vadd.f32 %v1748, %v1758
        %v1785 = vadd.f32 %v1749, %v1758
        %v1786 = vadd.f32 %v1750, %v1758
        %v1787 = vadd.f32 %v1751, %v1758
        %v1788 = vadd.f32 %v1752, %v1758
        %v1789 = vadd.f32 %v1753, %v1758
        %v1790 = vadd.f32 %v1754, %v1758
        %v1791 = vadd.f32 %v1755, %v1758
        %v1792 = vmax.f32 %v1760, 0.0
        %v1793 = vmax.f32 %v1761, 0.0
        %v1794 = vmax.f32 %v1762, 0.0
        %v1795 = vmax.f32 %v1763, 0.0
        %v1796 = vmax.f32 %v1764, 0.0
        %v1797 = vmax.f32 %v1765, 0.0
        %v1798 = vmax.f32 %v1766, 0.0
        %v1799 = vmax.f32 %v1767, 0.0
        %v1800 = vmax.f32 %v1768, 0.0
        %v1801 = vmax.f32 %v1769, 0.0
        %v1802 = vmax.f32 %v1770, 0.0
        %v1803 = vmax.f32 %v1771, 0.0
        %v1804 = vmax.f32 %v1772, 0.0
        %v1805 = vmax.f32 %v1773, 0.0
        %v1806 = vmax.f32 %v1774, 0.0
        %v1807 = vmax.f32 %v1775, 0.0
        %v1808 = vmax.f32 %v1776, 0.0
        %v1809 = vmax.f32 %v1777, 0.0
        %v1810 = vmax.f32 %v1778, 0.0
        %v1811 = vmax.f32 %v1779, 0.0
        %v1812 = vmax.f32 %v1780, 0.0
        %v1813 = vmax.f32 %v1781, 0.0
        %v1814 = vmax.f32 %v1782, 0.0
        %v1815 = vmax.f32 %v1783, 0.0
        %v1816 = vmax.f32 %v1784, 0.0
        %v1817 = vmax.f32 %v1785, 0.0
        %v1818 = vmax.f32 %v1786, 0.0
        %v1819 = vmax.f32 %v1787, 0.0
        %v1820 = vmax.f32 %v1788, 0.0
        %v1821 = vmax.f32 %v1789, 0.0
        %v1822 = vmax.f32 %v1790, 0.0
        %v1823 = vmax.f32 %v1791, 0.0
        %v1824 = vpack.c.bf16 %v1792, %v1792
        %v1825 = vpack.c.bf16 %v1793, %v1793
        %v1826 = vpack.c.bf16 %v1794, %v1794
        %v1827 = vpack.c.bf16 %v1795, %v1795
        %v1828 = vpack.c.bf16 %v1796, %v1796
        %v1829 = vpack.c.bf16 %v1797, %v1797
        %v1830 = vpack.c.bf16 %v1798, %v1798
        %v1831 = vpack.c.bf16 %v1799, %v1799
        %v1832 = vpack.c.bf16 %v1800, %v1800
        %v1833 = vpack.c.bf16 %v1801, %v1801
        %v1834 = vpack.c.bf16 %v1802, %v1802
        %v1835 = vpack.c.bf16 %v1803, %v1803
        %v1836 = vpack.c.bf16 %v1804, %v1804
        %v1837 = vpack.c.bf16 %v1805, %v1805
        %v1838 = vpack.c.bf16 %v1806, %v1806
        %v1839 = vpack.c.bf16 %v1807, %v1807
        %v1840 = vpack.c.bf16 %v1808, %v1808
        %v1841 = vpack.c.bf16 %v1809, %v1809
        %v1842 = vpack.c.bf16 %v1810, %v1810
        %v1843 = vpack.c.bf16 %v1811, %v1811
        %v1844 = vpack.c.bf16 %v1812, %v1812
        %v1845 = vpack.c.bf16 %v1813, %v1813
        %v1846 = vpack.c.bf16 %v1814, %v1814
        %v1847 = vpack.c.bf16 %v1815, %v1815
        %v1848 = vpack.c.bf16 %v1816, %v1816
        %v1849 = vpack.c.bf16 %v1817, %v1817
        %v1850 = vpack.c.bf16 %v1818, %v1818
        %v1851 = vpack.c.bf16 %v1819, %v1819
        %v1852 = vpack.c.bf16 %v1820, %v1820
        %v1853 = vpack.c.bf16 %v1821, %v1821
        %v1854 = vpack.c.bf16 %v1822, %v1822
        %v1855 = vpack.c.bf16 %v1823, %v1823
        %1856 = vst [vmem:[%s723] sm:$0xf] %v1824
        %1857 = vst [vmem:[%s723 + $0x4] sm:$0xf] %v1825
        %1858 = vst [vmem:[%s723 + $0x8] sm:$0xf] %v1826
        %1859 = vst [vmem:[%s723 + $0xc] sm:$0xf] %v1827
        %1860 = vst [vmem:[%s723 + $0x10] sm:$0xf] %v1828
        %1861 = vst [vmem:[%s723 + $0x14] sm:$0xf] %v1829
        %1862 = vst [vmem:[%s723 + $0x18] sm:$0xf] %v1830
        %1863 = vst [vmem:[%s723 + $0x1c] sm:$0xf] %v1831
        %1864 = vst [vmem:[%s723 + $0x20] sm:$0xf] %v1832
        %1865 = vst [vmem:[%s723 + $0x24] sm:$0xf] %v1833
        %1866 = vst [vmem:[%s723 + $0x28] sm:$0xf] %v1834
        %1867 = vst [vmem:[%s723 + $0x2c] sm:$0xf] %v1835
        %1868 = vst [vmem:[%s723 + $0x30] sm:$0xf] %v1836
        %1869 = vst [vmem:[%s723 + $0x34] sm:$0xf] %v1837
        %1870 = vst [vmem:[%s723 + $0x38] sm:$0xf] %v1838
        %1871 = vst [vmem:[%s723 + $0x3c] sm:$0xf] %v1839
        %1872 = vst [vmem:[%s723 + $0x40] sm:$0xf] %v1840
        %1873 = vst [vmem:[%s723 + $0x44] sm:$0xf] %v1841
        %1874 = vst [vmem:[%s723 + $0x48] sm:$0xf] %v1842
        %1875 = vst [vmem:[%s723 + $0x4c] sm:$0xf] %v1843
        %1876 = vst [vmem:[%s723 + $0x50] sm:$0xf] %v1844
        %1877 = vst [vmem:[%s723 + $0x54] sm:$0xf] %v1845
        %1878 = vst [vmem:[%s723 + $0x58] sm:$0xf] %v1846
        %1879 = vst [vmem:[%s723 + $0x5c] sm:$0xf] %v1847
        %1880 = vst [vmem:[%s723 + $0x60] sm:$0xf] %v1848
        %1881 = vst [vmem:[%s723 + $0x64] sm:$0xf] %v1849
        %1882 = vst [vmem:[%s723 + $0x68] sm:$0xf] %v1850
        %1883 = vst [vmem:[%s723 + $0x6c] sm:$0xf] %v1851
        %1884 = vst [vmem:[%s723 + $0x70] sm:$0xf] %v1852
        %1885 = vst [vmem:[%s723 + $0x74] sm:$0xf] %v1853
        %1886 = vst [vmem:[%s723 + $0x78] sm:$0xf] %v1854
        %1887 = vst [vmem:[%s723 + $0x7c] sm:$0xf] %v1855
        %s1888 = smul.u32 32, %s14
        %p1889 = scmp.lt.s32.totalorder %s1888, 63
        %s1890 = scalar_select %p1889, %s1888, 63
        %s1891 = smul.addr %s1890, 4
        %s1892 = scalar_lea.vmem %s3, %s1891
        // Predicated region
        $region74: #{_lenet_apply.3} parent=68 // pred_check
          %p1893 = pneg %p100
        $region75: #{_lenet_apply.3} parent=68 // pred_check_branch
          %1895 = sbr.rel (%p1893) target = $region77
        $region76: #{_lenet_apply.3} parent=68 // pred_region
          %s1896 = smul.u32 32, %s14
        $region77: #{_lenet_apply.3} parent=68 // pred_fallthru
          _
      $region69: #{_lenet_apply.3} parent=5 // pred_fallthru
        _
      %p1897 = scmp.le.s32.totalorder 2, %s9
      // Predicated region
      $region78: #{_lenet_apply.3} parent=5 // pred_check
        %p1898 = pneg %p1897
      $region79: #{_lenet_apply.3} parent=5 // pred_check_branch
        %1900 = sbr.rel (%p1898) target = $region81
      $region80: #{_lenet_apply.3} parent=5 // pred_region
        %s1901 = ssub.s32 %s9, 2
        // Predicated region
        $region82: #{_lenet_apply.3} parent=80 // pred_check
          %p1902 = pneg %p106
        $region83: #{_lenet_apply.3} parent=80 // pred_check_branch
          %1904 = sbr.rel (%p1902) target = $region85
        $region84: #{_lenet_apply.3} parent=80 // pred_region
          %s1905 = smul.u32 32, %s15
          %p1906 = scmp.lt.s32.totalorder %s1905, 63
          %s1907 = scalar_select %p1906, %s1905, 63
          %s1908 = smul.addr %s1907, 4
          %s1909 = scalar_lea.vmem %s3, %s1908
        $region85: #{_lenet_apply.3} parent=80 // pred_fallthru
          _
      $region81: #{_lenet_apply.3} parent=5 // pred_fallthru
        _
    $region6: #{_lenet_apply.3} parent=1 // loop_footer
      %s13 = sadd.s32 1, %s9
    $region7: #{_lenet_apply.3} parent=1 // loop_footer_branch
      %8 = sbr.rel target = $region3
    $region8: #{_lenet_apply.3} parent=1 // loop_exit
      _

// kernel: _lenet_apply.4
$region0: #{_lenet_apply.4}
  #allocation0 [shape = 'u32[]', space=smem, size = 0x4, offset = 0x4, fixed_abs, tag = 'smem constant byte address 0x4 - core index']
  #allocation1 [shape = 'u32[72,128]{1,0:T(1,128)}', space=vmem, size = 0x9000, scoped, tag = 'internal scratch']
  %s0 = inlined_call_operand.vmem [shape: bf16[4,64,256], index: 0, kind: input, shape index: {}]
  %s1 = inlined_call_operand.vmem [shape: bf16[256,128], index: 1, kind: input, shape index: {}]
  %s2 = inlined_call_operand.vmem [shape: f32[1,128], index: 2, kind: input, shape index: {}]
  %s3 = inlined_call_operand.vmem [shape: bf16[64,128], index: 3, kind: output, shape index: {}]
  %s4 = sld [smem:[#allocation0]]
  $region22: #{_lenet_apply.4} parent=0
    _
  %s6 = ssub.s32 1, %s4
  %s7 = scalar_select 0, %s6, %s4
  // Predicated region
  $region2: #{_lenet_apply.4} parent=0 // pred_check
    _
  $region3: #{_lenet_apply.4} parent=0 // pred_check_branch
    %9 = sbr.rel (0) target = $region5
  $region4: #{_lenet_apply.4} parent=0 // pred_region
    _
  $region5: #{_lenet_apply.4} parent=0 // pred_fallthru
    _
  // Predicated region
  $region6: #{_lenet_apply.4} parent=0 // pred_check
    _
  $region7: #{_lenet_apply.4} parent=0 // pred_check_branch
    %11 = sbr.rel (0) target = $region9
  $region8: #{_lenet_apply.4} parent=0 // pred_region
    _
  $region9: #{_lenet_apply.4} parent=0 // pred_fallthru
    _
  // Predicated region
  $region10: #{_lenet_apply.4} parent=0 // pred_check
    _
  $region11: #{_lenet_apply.4} parent=0 // pred_check_branch
    %13 = sbr.rel (0) target = $region13
  $region12: #{_lenet_apply.4} parent=0 // pred_region
    _
  $region13: #{_lenet_apply.4} parent=0 // pred_fallthru
    _
  %v14 = vld [vmem:[%s1] sm:$0xf]
  %v15 = vld [vmem:[%s1 + $0x4] sm:$0xf]
  %v16 = vld [vmem:[%s1 + $0x8] sm:$0xf]
  %v17 = vld [vmem:[%s1 + $0xc] sm:$0xf]
  %v18 = vld [vmem:[%s1 + $0x10] sm:$0xf]
  %v19 = vld [vmem:[%s1 + $0x14] sm:$0xf]
  %v20 = vld [vmem:[%s1 + $0x18] sm:$0xf]
  %v21 = vld [vmem:[%s1 + $0x1c] sm:$0xf]
  %v22 = vld [vmem:[%s1 + $0x20] sm:$0xf]
  %v23 = vld [vmem:[%s1 + $0x24] sm:$0xf]
  %v24 = vld [vmem:[%s1 + $0x28] sm:$0xf]
  %v25 = vld [vmem:[%s1 + $0x2c] sm:$0xf]
  %v26 = vld [vmem:[%s1 + $0x30] sm:$0xf]
  %v27 = vld [vmem:[%s1 + $0x34] sm:$0xf]
  %v28 = vld [vmem:[%s1 + $0x38] sm:$0xf]
  %v29 = vld [vmem:[%s1 + $0x3c] sm:$0xf]
  %v30 = vld [vmem:[%s1 + $0x40] sm:$0xf]
  %v31 = vld [vmem:[%s1 + $0x44] sm:$0xf]
  %v32 = vld [vmem:[%s1 + $0x48] sm:$0xf]
  %v33 = vld [vmem:[%s1 + $0x4c] sm:$0xf]
  %v34 = vld [vmem:[%s1 + $0x50] sm:$0xf]
  %v35 = vld [vmem:[%s1 + $0x54] sm:$0xf]
  %v36 = vld [vmem:[%s1 + $0x58] sm:$0xf]
  %v37 = vld [vmem:[%s1 + $0x5c] sm:$0xf]
  %v38 = vld [vmem:[%s1 + $0x60] sm:$0xf]
  %v39 = vld [vmem:[%s1 + $0x64] sm:$0xf]
  %v40 = vld [vmem:[%s1 + $0x68] sm:$0xf]
  %v41 = vld [vmem:[%s1 + $0x6c] sm:$0xf]
  %v42 = vld [vmem:[%s1 + $0x70] sm:$0xf]
  %v43 = vld [vmem:[%s1 + $0x74] sm:$0xf]
  %v44 = vld [vmem:[%s1 + $0x78] sm:$0xf]
  %v45 = vld [vmem:[%s1 + $0x7c] sm:$0xf]
  %v46 = vld [vmem:[%s0] sm:$0xff]
  %v47 = vld [vmem:[%s0 + $0x8] sm:$0xff]
  %v48 = vld [vmem:[%s0 + $0x10] sm:$0xff]
  %v49 = vld [vmem:[%s0 + $0x18] sm:$0xff]
  %v50 = vld [vmem:[%s0 + $0x20] sm:$0xff]
  %v51 = vld [vmem:[%s0 + $0x28] sm:$0xff]
  %v52 = vld [vmem:[%s0 + $0x30] sm:$0xff]
  %v53 = vld [vmem:[%s0 + $0x38] sm:$0xff]
  %v62 = vunpack.c.l.b16 %v46
  %v63 = vunpack.c.h.b16 %v46
  %v64 = vunpack.c.l.b16 %v47
  %v65 = vunpack.c.h.b16 %v47
  %v66 = vunpack.c.l.b16 %v48
  %v67 = vunpack.c.h.b16 %v48
  %v68 = vunpack.c.l.b16 %v49
  %v69 = vunpack.c.h.b16 %v49
  %v70 = vunpack.c.l.b16 %v50
  %v71 = vunpack.c.h.b16 %v50
  %v72 = vunpack.c.l.b16 %v51
  %v73 = vunpack.c.h.b16 %v51
  %v74 = vunpack.c.l.b16 %v52
  %v75 = vunpack.c.h.b16 %v52
  %v76 = vunpack.c.l.b16 %v53
  %v77 = vunpack.c.h.b16 %v53
  %v78 = vpack.c.b16 %v64, %v62
  %v79 = vpack.c.b16 %v65, %v63
  %v80 = vpack.c.b16 %v68, %v66
  %v81 = vpack.c.b16 %v69, %v67
  %v82 = vpack.c.b16 %v72, %v70
  %v83 = vpack.c.b16 %v73, %v71
  %v84 = vpack.c.b16 %v76, %v74
  %v85 = vpack.c.b16 %v77, %v75
  %v126 = vunpack.c.l.b16 %v14
  %v127 = vunpack.c.l.b16 %v15
  %v128 = vunpack.c.l.b16 %v16
  %v129 = vunpack.c.l.b16 %v17
  %v130 = vunpack.c.l.b16 %v18
  %v131 = vunpack.c.l.b16 %v19
  %v132 = vunpack.c.l.b16 %v20
  %v133 = vunpack.c.l.b16 %v21
  %v134 = vunpack.c.l.b16 %v22
  %v135 = vunpack.c.l.b16 %v23
  %v136 = vunpack.c.l.b16 %v24
  %v137 = vunpack.c.l.b16 %v25
  %v138 = vunpack.c.l.b16 %v26
  %v139 = vunpack.c.l.b16 %v27
  %v140 = vunpack.c.l.b16 %v28
  %v141 = vunpack.c.l.b16 %v29
  %v142 = vunpack.c.l.b16 %v30
  %v143 = vunpack.c.l.b16 %v31
  %v144 = vunpack.c.l.b16 %v32
  %v145 = vunpack.c.l.b16 %v33
  %v146 = vunpack.c.l.b16 %v34
  %v147 = vunpack.c.l.b16 %v35
  %v148 = vunpack.c.l.b16 %v36
  %v149 = vunpack.c.l.b16 %v37
  %v150 = vunpack.c.l.b16 %v38
  %v151 = vunpack.c.l.b16 %v39
  %v152 = vunpack.c.l.b16 %v40
  %v153 = vunpack.c.l.b16 %v41
  %v154 = vunpack.c.l.b16 %v42
  %v155 = vunpack.c.l.b16 %v43
  %v156 = vunpack.c.l.b16 %v44
  %v157 = vunpack.c.l.b16 %v45
  %v158 = vpack.c.b16 %v127, %v126
  %v159 = vpack.c.b16 %v129, %v128
  %v160 = vpack.c.b16 %v131, %v130
  %v161 = vpack.c.b16 %v133, %v132
  %v162 = vpack.c.b16 %v135, %v134
  %v163 = vpack.c.b16 %v137, %v136
  %v164 = vpack.c.b16 %v139, %v138
  %v165 = vpack.c.b16 %v141, %v140
  %v166 = vpack.c.b16 %v143, %v142
  %v167 = vpack.c.b16 %v145, %v144
  %v168 = vpack.c.b16 %v147, %v146
  %v169 = vpack.c.b16 %v149, %v148
  %v170 = vpack.c.b16 %v151, %v150
  %v171 = vpack.c.b16 %v153, %v152
  %v172 = vpack.c.b16 %v155, %v154
  %v173 = vpack.c.b16 %v157, %v156
  %190 = vmatpush.bf16.msra.mxu0 %v165
  %191 = vmatpush.bf16.msra.mxu0 %v164
  %192 = vmatpush.bf16.msra.mxu0 %v163
  %193 = vmatpush.bf16.msra.mxu0 %v162
  %194 = vmatpush.bf16.msra.mxu0 %v161
  %195 = vmatpush.bf16.msra.mxu0 %v160
  %196 = vmatpush.bf16.msra.mxu0 %v159
  %197 = vmatpush.bf16.msra.mxu0 %v158
  %198 = vmatmul.bf16.gmra.mxu0 %v78
  %v199 = vpop.f32.mrf.mxu0
  %v200 = vadd.f32 0.0, %v199
  %v201 = vpop.f32.mrf.mxu0
  %v202 = vadd.f32 0.0, %v201
  %203 = vmatmul.bf16.gmra.mxu0 %v80
  %v204 = vpop.f32.mrf.mxu0
  %v205 = vadd.f32 0.0, %v204
  %v206 = vpop.f32.mrf.mxu0
  %v207 = vadd.f32 0.0, %v206
  %208 = vmatmul.bf16.gmra.mxu0 %v82
  %v209 = vpop.f32.mrf.mxu0
  %v210 = vadd.f32 0.0, %v209
  %v211 = vpop.f32.mrf.mxu0
  %v212 = vadd.f32 0.0, %v211
  %213 = vmatmul.bf16.gmra.mxu0 %v84
  %v214 = vpop.f32.mrf.mxu0
  %v215 = vadd.f32 0.0, %v214
  %v216 = vpop.f32.mrf.mxu0
  %v217 = vadd.f32 0.0, %v216
  %218 = vdwg.mxu0
  %219 = vmatpush.bf16.msra.mxu0 %v173
  %220 = vmatpush.bf16.msra.mxu0 %v172
  %221 = vmatpush.bf16.msra.mxu0 %v171
  %222 = vmatpush.bf16.msra.mxu0 %v170
  %223 = vmatpush.bf16.msra.mxu0 %v169
  %224 = vmatpush.bf16.msra.mxu0 %v168
  %225 = vmatpush.bf16.msra.mxu0 %v167
  %226 = vmatpush.bf16.msra.mxu0 %v166
  %227 = vmatmul.bf16.gmra.mxu0 %v79
  %v228 = vpop.f32.mrf.mxu0
  %v229 = vadd.f32 %v200, %v228
  %v230 = vpop.f32.mrf.mxu0
  %v231 = vadd.f32 %v202, %v230
  %232 = vmatmul.bf16.gmra.mxu0 %v81
  %v233 = vpop.f32.mrf.mxu0
  %v234 = vadd.f32 %v205, %v233
  %v235 = vpop.f32.mrf.mxu0
  %v236 = vadd.f32 %v207, %v235
  %237 = vmatmul.bf16.gmra.mxu0 %v83
  %v238 = vpop.f32.mrf.mxu0
  %v239 = vadd.f32 %v210, %v238
  %v240 = vpop.f32.mrf.mxu0
  %v241 = vadd.f32 %v212, %v240
  %242 = vmatmul.bf16.gmra.mxu0 %v85
  %v243 = vpop.f32.mrf.mxu0
  %v244 = vadd.f32 %v215, %v243
  %v245 = vpop.f32.mrf.mxu0
  %v246 = vadd.f32 %v217, %v245
  %247 = vdwg.mxu0
  %s248 = scalar_lea.vmem %s0, 64
  %v249 = vld [vmem:[%s248] sm:$0xff]
  %v250 = vld [vmem:[%s248 + $0x8] sm:$0xff]
  %v251 = vld [vmem:[%s248 + $0x10] sm:$0xff]
  %v252 = vld [vmem:[%s248 + $0x18] sm:$0xff]
  %v253 = vld [vmem:[%s248 + $0x20] sm:$0xff]
  %v254 = vld [vmem:[%s248 + $0x28] sm:$0xff]
  %v255 = vld [vmem:[%s248 + $0x30] sm:$0xff]
  %v256 = vld [vmem:[%s248 + $0x38] sm:$0xff]
  %v265 = vunpack.c.l.b16 %v249
  %v266 = vunpack.c.h.b16 %v249
  %v267 = vunpack.c.l.b16 %v250
  %v268 = vunpack.c.h.b16 %v250
  %v269 = vunpack.c.l.b16 %v251
  %v270 = vunpack.c.h.b16 %v251
  %v271 = vunpack.c.l.b16 %v252
  %v272 = vunpack.c.h.b16 %v252
  %v273 = vunpack.c.l.b16 %v253
  %v274 = vunpack.c.h.b16 %v253
  %v275 = vunpack.c.l.b16 %v254
  %v276 = vunpack.c.h.b16 %v254
  %v277 = vunpack.c.l.b16 %v255
  %v278 = vunpack.c.h.b16 %v255
  %v279 = vunpack.c.l.b16 %v256
  %v280 = vunpack.c.h.b16 %v256
  %v281 = vpack.c.b16 %v267, %v265
  %v282 = vpack.c.b16 %v268, %v266
  %v283 = vpack.c.b16 %v271, %v269
  %v284 = vpack.c.b16 %v272, %v270
  %v285 = vpack.c.b16 %v275, %v273
  %v286 = vpack.c.b16 %v276, %v274
  %v287 = vpack.c.b16 %v279, %v277
  %v288 = vpack.c.b16 %v280, %v278
  %297 = vmatpush.bf16.msra.mxu0 %v165
  %298 = vmatpush.bf16.msra.mxu0 %v164
  %299 = vmatpush.bf16.msra.mxu0 %v163
  %300 = vmatpush.bf16.msra.mxu0 %v162
  %301 = vmatpush.bf16.msra.mxu0 %v161
  %302 = vmatpush.bf16.msra.mxu0 %v160
  %303 = vmatpush.bf16.msra.mxu0 %v159
  %304 = vmatpush.bf16.msra.mxu0 %v158
  %305 = vmatmul.bf16.gmra.mxu0 %v281
  %v306 = vpop.f32.mrf.mxu0
  %v307 = vadd.f32 0.0, %v306
  %v308 = vpop.f32.mrf.mxu0
  %v309 = vadd.f32 0.0, %v308
  %310 = vmatmul.bf16.gmra.mxu0 %v283
  %v311 = vpop.f32.mrf.mxu0
  %v312 = vadd.f32 0.0, %v311
  %v313 = vpop.f32.mrf.mxu0
  %v314 = vadd.f32 0.0, %v313
  %315 = vmatmul.bf16.gmra.mxu0 %v285
  %v316 = vpop.f32.mrf.mxu0
  %v317 = vadd.f32 0.0, %v316
  %v318 = vpop.f32.mrf.mxu0
  %v319 = vadd.f32 0.0, %v318
  %320 = vmatmul.bf16.gmra.mxu0 %v287
  %v321 = vpop.f32.mrf.mxu0
  %v322 = vadd.f32 0.0, %v321
  %v323 = vpop.f32.mrf.mxu0
  %v324 = vadd.f32 0.0, %v323
  %325 = vdwg.mxu0
  %326 = vmatpush.bf16.msra.mxu0 %v173
  %327 = vmatpush.bf16.msra.mxu0 %v172
  %328 = vmatpush.bf16.msra.mxu0 %v171
  %329 = vmatpush.bf16.msra.mxu0 %v170
  %330 = vmatpush.bf16.msra.mxu0 %v169
  %331 = vmatpush.bf16.msra.mxu0 %v168
  %332 = vmatpush.bf16.msra.mxu0 %v167
  %333 = vmatpush.bf16.msra.mxu0 %v166
  %334 = vmatmul.bf16.gmra.mxu0 %v282
  %v335 = vpop.f32.mrf.mxu0
  %v336 = vadd.f32 %v307, %v335
  %v337 = vpop.f32.mrf.mxu0
  %v338 = vadd.f32 %v309, %v337
  %339 = vmatmul.bf16.gmra.mxu0 %v284
  %v340 = vpop.f32.mrf.mxu0
  %v341 = vadd.f32 %v312, %v340
  %v342 = vpop.f32.mrf.mxu0
  %v343 = vadd.f32 %v314, %v342
  %344 = vmatmul.bf16.gmra.mxu0 %v286
  %v345 = vpop.f32.mrf.mxu0
  %v346 = vadd.f32 %v317, %v345
  %v347 = vpop.f32.mrf.mxu0
  %v348 = vadd.f32 %v319, %v347
  %349 = vmatmul.bf16.gmra.mxu0 %v288
  %v350 = vpop.f32.mrf.mxu0
  %v351 = vadd.f32 %v322, %v350
  %v352 = vpop.f32.mrf.mxu0
  %v353 = vadd.f32 %v324, %v352
  %354 = vdwg.mxu0
  %s355 = scalar_lea.vmem %s0, 128
  %v356 = vld [vmem:[%s355] sm:$0xff]
  %v357 = vld [vmem:[%s355 + $0x8] sm:$0xff]
  %v358 = vld [vmem:[%s355 + $0x10] sm:$0xff]
  %v359 = vld [vmem:[%s355 + $0x18] sm:$0xff]
  %v360 = vld [vmem:[%s355 + $0x20] sm:$0xff]
  %v361 = vld [vmem:[%s355 + $0x28] sm:$0xff]
  %v362 = vld [vmem:[%s355 + $0x30] sm:$0xff]
  %v363 = vld [vmem:[%s355 + $0x38] sm:$0xff]
  %v372 = vunpack.c.l.b16 %v356
  %v373 = vunpack.c.h.b16 %v356
  %v374 = vunpack.c.l.b16 %v357
  %v375 = vunpack.c.h.b16 %v357
  %v376 = vunpack.c.l.b16 %v358
  %v377 = vunpack.c.h.b16 %v358
  %v378 = vunpack.c.l.b16 %v359
  %v379 = vunpack.c.h.b16 %v359
  %v380 = vunpack.c.l.b16 %v360
  %v381 = vunpack.c.h.b16 %v360
  %v382 = vunpack.c.l.b16 %v361
  %v383 = vunpack.c.h.b16 %v361
  %v384 = vunpack.c.l.b16 %v362
  %v385 = vunpack.c.h.b16 %v362
  %v386 = vunpack.c.l.b16 %v363
  %v387 = vunpack.c.h.b16 %v363
  %v388 = vpack.c.b16 %v374, %v372
  %v389 = vpack.c.b16 %v375, %v373
  %v390 = vpack.c.b16 %v378, %v376
  %v391 = vpack.c.b16 %v379, %v377
  %v392 = vpack.c.b16 %v382, %v380
  %v393 = vpack.c.b16 %v383, %v381
  %v394 = vpack.c.b16 %v386, %v384
  %v395 = vpack.c.b16 %v387, %v385
  %404 = vmatpush.bf16.msra.mxu0 %v165
  %405 = vmatpush.bf16.msra.mxu0 %v164
  %406 = vmatpush.bf16.msra.mxu0 %v163
  %407 = vmatpush.bf16.msra.mxu0 %v162
  %408 = vmatpush.bf16.msra.mxu0 %v161
  %409 = vmatpush.bf16.msra.mxu0 %v160
  %410 = vmatpush.bf16.msra.mxu0 %v159
  %411 = vmatpush.bf16.msra.mxu0 %v158
  %412 = vmatmul.bf16.gmra.mxu0 %v388
  %v413 = vpop.f32.mrf.mxu0
  %v414 = vadd.f32 0.0, %v413
  %v415 = vpop.f32.mrf.mxu0
  %v416 = vadd.f32 0.0, %v415
  %417 = vmatmul.bf16.gmra.mxu0 %v390
  %v418 = vpop.f32.mrf.mxu0
  %v419 = vadd.f32 0.0, %v418
  %v420 = vpop.f32.mrf.mxu0
  %v421 = vadd.f32 0.0, %v420
  %422 = vmatmul.bf16.gmra.mxu0 %v392
  %v423 = vpop.f32.mrf.mxu0
  %v424 = vadd.f32 0.0, %v423
  %v425 = vpop.f32.mrf.mxu0
  %v426 = vadd.f32 0.0, %v425
  %427 = vmatmul.bf16.gmra.mxu0 %v394
  %v428 = vpop.f32.mrf.mxu0
  %v429 = vadd.f32 0.0, %v428
  %v430 = vpop.f32.mrf.mxu0
  %v431 = vadd.f32 0.0, %v430
  %432 = vdwg.mxu0
  %433 = vmatpush.bf16.msra.mxu0 %v173
  %434 = vmatpush.bf16.msra.mxu0 %v172
  %435 = vmatpush.bf16.msra.mxu0 %v171
  %436 = vmatpush.bf16.msra.mxu0 %v170
  %437 = vmatpush.bf16.msra.mxu0 %v169
  %438 = vmatpush.bf16.msra.mxu0 %v168
  %439 = vmatpush.bf16.msra.mxu0 %v167
  %440 = vmatpush.bf16.msra.mxu0 %v166
  %441 = vmatmul.bf16.gmra.mxu0 %v389
  %v442 = vpop.f32.mrf.mxu0
  %v443 = vadd.f32 %v414, %v442
  %v444 = vpop.f32.mrf.mxu0
  %v445 = vadd.f32 %v416, %v444
  %446 = vmatmul.bf16.gmra.mxu0 %v391
  %v447 = vpop.f32.mrf.mxu0
  %v448 = vadd.f32 %v419, %v447
  %v449 = vpop.f32.mrf.mxu0
  %v450 = vadd.f32 %v421, %v449
  %451 = vmatmul.bf16.gmra.mxu0 %v393
  %v452 = vpop.f32.mrf.mxu0
  %v453 = vadd.f32 %v424, %v452
  %v454 = vpop.f32.mrf.mxu0
  %v455 = vadd.f32 %v426, %v454
  %456 = vmatmul.bf16.gmra.mxu0 %v395
  %v457 = vpop.f32.mrf.mxu0
  %v458 = vadd.f32 %v429, %v457
  %v459 = vpop.f32.mrf.mxu0
  %v460 = vadd.f32 %v431, %v459
  %461 = vdwg.mxu0
  %s462 = scalar_lea.vmem %s0, 192
  %v463 = vld [vmem:[%s462] sm:$0xff]
  %v464 = vld [vmem:[%s462 + $0x8] sm:$0xff]
  %v465 = vld [vmem:[%s462 + $0x10] sm:$0xff]
  %v466 = vld [vmem:[%s462 + $0x18] sm:$0xff]
  %v467 = vld [vmem:[%s462 + $0x20] sm:$0xff]
  %v468 = vld [vmem:[%s462 + $0x28] sm:$0xff]
  %v469 = vld [vmem:[%s462 + $0x30] sm:$0xff]
  %v470 = vld [vmem:[%s462 + $0x38] sm:$0xff]
  %v479 = vunpack.c.l.b16 %v463
  %v480 = vunpack.c.h.b16 %v463
  %v481 = vunpack.c.l.b16 %v464
  %v482 = vunpack.c.h.b16 %v464
  %v483 = vunpack.c.l.b16 %v465
  %v484 = vunpack.c.h.b16 %v465
  %v485 = vunpack.c.l.b16 %v466
  %v486 = vunpack.c.h.b16 %v466
  %v487 = vunpack.c.l.b16 %v467
  %v488 = vunpack.c.h.b16 %v467
  %v489 = vunpack.c.l.b16 %v468
  %v490 = vunpack.c.h.b16 %v468
  %v491 = vunpack.c.l.b16 %v469
  %v492 = vunpack.c.h.b16 %v469
  %v493 = vunpack.c.l.b16 %v470
  %v494 = vunpack.c.h.b16 %v470
  %v495 = vpack.c.b16 %v481, %v479
  %v496 = vpack.c.b16 %v482, %v480
  %v497 = vpack.c.b16 %v485, %v483
  %v498 = vpack.c.b16 %v486, %v484
  %v499 = vpack.c.b16 %v489, %v487
  %v500 = vpack.c.b16 %v490, %v488
  %v501 = vpack.c.b16 %v493, %v491
  %v502 = vpack.c.b16 %v494, %v492
  %511 = vmatpush.bf16.msra.mxu0 %v165
  %512 = vmatpush.bf16.msra.mxu0 %v164
  %513 = vmatpush.bf16.msra.mxu0 %v163
  %514 = vmatpush.bf16.msra.mxu0 %v162
  %515 = vmatpush.bf16.msra.mxu0 %v161
  %516 = vmatpush.bf16.msra.mxu0 %v160
  %517 = vmatpush.bf16.msra.mxu0 %v159
  %518 = vmatpush.bf16.msra.mxu0 %v158
  %519 = vmatmul.bf16.gmra.mxu0 %v495
  %v520 = vpop.f32.mrf.mxu0
  %v521 = vadd.f32 0.0, %v520
  %v522 = vpop.f32.mrf.mxu0
  %v523 = vadd.f32 0.0, %v522
  %524 = vmatmul.bf16.gmra.mxu0 %v497
  %v525 = vpop.f32.mrf.mxu0
  %v526 = vadd.f32 0.0, %v525
  %v527 = vpop.f32.mrf.mxu0
  %v528 = vadd.f32 0.0, %v527
  %529 = vmatmul.bf16.gmra.mxu0 %v499
  %v530 = vpop.f32.mrf.mxu0
  %v531 = vadd.f32 0.0, %v530
  %v532 = vpop.f32.mrf.mxu0
  %v533 = vadd.f32 0.0, %v532
  %534 = vmatmul.bf16.gmra.mxu0 %v501
  %v535 = vpop.f32.mrf.mxu0
  %v536 = vadd.f32 0.0, %v535
  %v537 = vpop.f32.mrf.mxu0
  %v538 = vadd.f32 0.0, %v537
  %539 = vdwg.mxu0
  %540 = vmatpush.bf16.msra.mxu0 %v173
  %541 = vmatpush.bf16.msra.mxu0 %v172
  %542 = vmatpush.bf16.msra.mxu0 %v171
  %543 = vmatpush.bf16.msra.mxu0 %v170
  %544 = vmatpush.bf16.msra.mxu0 %v169
  %545 = vmatpush.bf16.msra.mxu0 %v168
  %546 = vmatpush.bf16.msra.mxu0 %v167
  %547 = vmatpush.bf16.msra.mxu0 %v166
  %548 = vmatmul.bf16.gmra.mxu0 %v496
  %v549 = vpop.f32.mrf.mxu0
  %v550 = vadd.f32 %v521, %v549
  %v551 = vpop.f32.mrf.mxu0
  %v552 = vadd.f32 %v523, %v551
  %553 = vmatmul.bf16.gmra.mxu0 %v498
  %v554 = vpop.f32.mrf.mxu0
  %v555 = vadd.f32 %v526, %v554
  %v556 = vpop.f32.mrf.mxu0
  %v557 = vadd.f32 %v528, %v556
  %558 = vmatmul.bf16.gmra.mxu0 %v500
  %v559 = vpop.f32.mrf.mxu0
  %v560 = vadd.f32 %v531, %v559
  %v561 = vpop.f32.mrf.mxu0
  %v562 = vadd.f32 %v533, %v561
  %563 = vmatmul.bf16.gmra.mxu0 %v502
  %v564 = vpop.f32.mrf.mxu0
  %v565 = vadd.f32 %v536, %v564
  %v566 = vpop.f32.mrf.mxu0
  %v567 = vadd.f32 %v538, %v566
  %568 = vdwg.mxu0
  %v569 = vmax.f32 %v229, %v336
  %v570 = vmax.f32 %v231, %v338
  %v571 = vmax.f32 %v234, %v341
  %v572 = vmax.f32 %v236, %v343
  %v573 = vmax.f32 %v239, %v346
  %v574 = vmax.f32 %v241, %v348
  %v575 = vmax.f32 %v244, %v351
  %v576 = vmax.f32 %v246, %v353
  %v577 = vmax.f32 %v443, %v550
  %v578 = vmax.f32 %v445, %v552
  %v579 = vmax.f32 %v448, %v555
  %v580 = vmax.f32 %v450, %v557
  %v581 = vmax.f32 %v453, %v560
  %v582 = vmax.f32 %v455, %v562
  %v583 = vmax.f32 %v458, %v565
  %v584 = vmax.f32 %v460, %v567
  %v585 = vmax.f32 %v569, %v577
  %v586 = vmax.f32 %v570, %v578
  %v587 = vmax.f32 %v571, %v579
  %v588 = vmax.f32 %v572, %v580
  %v589 = vmax.f32 %v573, %v581
  %v590 = vmax.f32 %v574, %v582
  %v591 = vmax.f32 %v575, %v583
  %v592 = vmax.f32 %v576, %v584
  %v593 = vld [vmem:[%s2] sm:$0x1]
  %v595 = vperm.slane %v593, 0
  %v597 = vadd.f32 %v585, %v595
  %v598 = vadd.f32 %v586, %v595
  %v599 = vadd.f32 %v587, %v595
  %v600 = vadd.f32 %v588, %v595
  %v601 = vadd.f32 %v589, %v595
  %v602 = vadd.f32 %v590, %v595
  %v603 = vadd.f32 %v591, %v595
  %v604 = vadd.f32 %v592, %v595
  %v605 = vmax.f32 %v597, 0.0
  %v606 = vmax.f32 %v598, 0.0
  %v607 = vmax.f32 %v599, 0.0
  %v608 = vmax.f32 %v600, 0.0
  %v609 = vmax.f32 %v601, 0.0
  %v610 = vmax.f32 %v602, 0.0
  %v611 = vmax.f32 %v603, 0.0
  %v612 = vmax.f32 %v604, 0.0
  %v613 = vpack.c.bf16 %v605, %v605
  %v614 = vpack.c.bf16 %v606, %v606
  %v615 = vpack.c.bf16 %v607, %v607
  %v616 = vpack.c.bf16 %v608, %v608
  %v617 = vpack.c.bf16 %v609, %v609
  %v618 = vpack.c.bf16 %v610, %v610
  %v619 = vpack.c.bf16 %v611, %v611
  %v620 = vpack.c.bf16 %v612, %v612
  %621 = vst [vmem:[%s3] sm:$0xf] %v613
  %622 = vst [vmem:[%s3 + $0x4] sm:$0xf] %v614
  %623 = vst [vmem:[%s3 + $0x8] sm:$0xf] %v615
  %624 = vst [vmem:[%s3 + $0xc] sm:$0xf] %v616
  %625 = vst [vmem:[%s3 + $0x10] sm:$0xf] %v617
  %626 = vst [vmem:[%s3 + $0x14] sm:$0xf] %v618
  %627 = vst [vmem:[%s3 + $0x18] sm:$0xf] %v619
  %628 = vst [vmem:[%s3 + $0x1c] sm:$0xf] %v620
  // Predicated region
  $region14: #{_lenet_apply.4} parent=0 // pred_check
    _
  $region15: #{_lenet_apply.4} parent=0 // pred_check_branch
    %630 = sbr.rel (0) target = $region17
  $region16: #{_lenet_apply.4} parent=0 // pred_region
    _
  $region17: #{_lenet_apply.4} parent=0 // pred_fallthru
    _
  // Predicated region
  $region18: #{_lenet_apply.4} parent=0 // pred_check
    _
  $region19: #{_lenet_apply.4} parent=0 // pred_check_branch
    %632 = sbr.rel (0) target = $region21
  $region20: #{_lenet_apply.4} parent=0 // pred_region
    _
  $region21: #{_lenet_apply.4} parent=0 // pred_fallthru
    _

// kernel: _lenet_apply.5
$region0: #{_lenet_apply.5}
  #allocation0 [shape = 'u32[]', space=smem, size = 0x4, offset = 0x4, fixed_abs, tag = 'smem constant byte address 0x4 - core index']
  #allocation1 [shape = 'u32[72,128]{1,0:T(1,128)}', space=vmem, size = 0x9000, scoped, tag = 'internal scratch']
  %s0 = inlined_call_operand.vmem [shape: bf16[16,3200], index: 0, kind: input, shape index: {}]
  %s1 = inlined_call_operand.vmem [shape: bf16[3200,256], index: 1, kind: input, shape index: {}]
  %s2 = inlined_call_operand.vmem [shape: f32[1,256], index: 2, kind: input, shape index: {}]
  %s3 = inlined_call_operand.vmem [shape: bf16[256,128], index: 3, kind: input, shape index: {}]
  %s4 = inlined_call_operand.vmem [shape: f32[1,128], index: 4, kind: input, shape index: {}]
  %s5 = inlined_call_operand.vmem [shape: bf16[128,128], index: 5, kind: input, shape index: {}]
  %s6 = inlined_call_operand.vmem [shape: f32[1,128], index: 6, kind: input, shape index: {}]
  %s7 = inlined_call_operand.vmem [shape: f32[16,128], index: 7, kind: output, shape index: {}]
  %s8 = sld [smem:[#allocation0]]
  $region38: #{_lenet_apply.5} parent=0
    _
  %s10 = ssub.s32 1, %s8
  %s11 = scalar_select 0, %s10, %s8
  // Predicated region
  $region2: #{_lenet_apply.5} parent=0 // pred_check
    _
  $region3: #{_lenet_apply.5} parent=0 // pred_check_branch
    %13 = sbr.rel (0) target = $region5
  $region4: #{_lenet_apply.5} parent=0 // pred_region
    _
  $region5: #{_lenet_apply.5} parent=0 // pred_fallthru
    _
  // Predicated region
  $region6: #{_lenet_apply.5} parent=0 // pred_check
    _
  $region7: #{_lenet_apply.5} parent=0 // pred_check_branch
    %15 = sbr.rel (0) target = $region9
  $region8: #{_lenet_apply.5} parent=0 // pred_region
    _
  $region9: #{_lenet_apply.5} parent=0 // pred_fallthru
    _
  // Predicated region
  $region10: #{_lenet_apply.5} parent=0 // pred_check
    _
  $region11: #{_lenet_apply.5} parent=0 // pred_check_branch
    %17 = sbr.rel (0) target = $region13
  $region12: #{_lenet_apply.5} parent=0 // pred_region
    _
  $region13: #{_lenet_apply.5} parent=0 // pred_fallthru
    _
  // Predicated region
  $region14: #{_lenet_apply.5} parent=0 // pred_check
    _
  $region15: #{_lenet_apply.5} parent=0 // pred_check_branch
    %19 = sbr.rel (0) target = $region17
  $region16: #{_lenet_apply.5} parent=0 // pred_region
    _
  $region17: #{_lenet_apply.5} parent=0 // pred_fallthru
    _
  // Predicated region
  $region18: #{_lenet_apply.5} parent=0 // pred_check
    _
  $region19: #{_lenet_apply.5} parent=0 // pred_check_branch
    %21 = sbr.rel (0) target = $region21
  $region20: #{_lenet_apply.5} parent=0 // pred_region
    _
  $region21: #{_lenet_apply.5} parent=0 // pred_fallthru
    _
  // Predicated region
  $region22: #{_lenet_apply.5} parent=0 // pred_check
    _
  $region23: #{_lenet_apply.5} parent=0 // pred_check_branch
    %23 = sbr.rel (0) target = $region25
  $region24: #{_lenet_apply.5} parent=0 // pred_region
    _
  $region25: #{_lenet_apply.5} parent=0 // pred_fallthru
    _
  // Predicated region
  $region26: #{_lenet_apply.5} parent=0 // pred_check
    _
  $region27: #{_lenet_apply.5} parent=0 // pred_check_branch
    %25 = sbr.rel (0) target = $region29
  $region28: #{_lenet_apply.5} parent=0 // pred_region
    _
  $region29: #{_lenet_apply.5} parent=0 // pred_fallthru
    _
  %v26 = vld [vmem:[%s0] sm:$0xff]
  %v27 = vld [vmem:[%s0 + $0x8] sm:$0xff]
  %v28 = vld [vmem:[%s0 + $0x10] sm:$0xff]
  %v29 = vld [vmem:[%s0 + $0x18] sm:$0xff]
  %v30 = vld [vmem:[%s0 + $0x20] sm:$0xff]
  %v31 = vld [vmem:[%s0 + $0x28] sm:$0xff]
  %v32 = vld [vmem:[%s0 + $0x30] sm:$0xff]
  %v33 = vld [vmem:[%s0 + $0x38] sm:$0xff]
  %v34 = vld [vmem:[%s0 + $0x40] sm:$0xff]
  %v35 = vld [vmem:[%s0 + $0x48] sm:$0xff]
  %v36 = vld [vmem:[%s0 + $0x50] sm:$0xff]
  %v37 = vld [vmem:[%s0 + $0x58] sm:$0xff]
  %v38 = vld [vmem:[%s0 + $0x60] sm:$0xf]
  %v39 = vld [vmem:[%s0 + $0x64] sm:$0xff]
  %v40 = vld [vmem:[%s0 + $0x6c] sm:$0xff]
  %v41 = vld [vmem:[%s0 + $0x74] sm:$0xff]
  %v42 = vld [vmem:[%s0 + $0x7c] sm:$0xff]
  %v43 = vld [vmem:[%s0 + $0x84] sm:$0xff]
  %v44 = vld [vmem:[%s0 + $0x8c] sm:$0xff]
  %v45 = vld [vmem:[%s0 + $0x94] sm:$0xff]
  %v46 = vld [vmem:[%s0 + $0x9c] sm:$0xff]
  %v47 = vld [vmem:[%s0 + $0xa4] sm:$0xff]
  %v48 = vld [vmem:[%s0 + $0xac] sm:$0xff]
  %v49 = vld [vmem:[%s0 + $0xb4] sm:$0xff]
  %v50 = vld [vmem:[%s0 + $0xbc] sm:$0xff]
  %v51 = vld [vmem:[%s0 + $0xc4] sm:$0xf]
  %v52 = vld [vmem:[%s1] sm:$0xff]
  %v53 = vld [vmem:[%s1 + $0x8] sm:$0xff]
  %v54 = vld [vmem:[%s1 + $0x10] sm:$0xff]
  %v55 = vld [vmem:[%s1 + $0x18] sm:$0xff]
  %v56 = vld [vmem:[%s1 + $0x20] sm:$0xff]
  %v57 = vld [vmem:[%s1 + $0x28] sm:$0xff]
  %v58 = vld [vmem:[%s1 + $0x30] sm:$0xff]
  %v59 = vld [vmem:[%s1 + $0x38] sm:$0xff]
  %v60 = vld [vmem:[%s1 + $0x40] sm:$0xff]
  %v61 = vld [vmem:[%s1 + $0x48] sm:$0xff]
  %v62 = vld [vmem:[%s1 + $0x50] sm:$0xff]
  %v63 = vld [vmem:[%s1 + $0x58] sm:$0xff]
  %v64 = vld [vmem:[%s1 + $0x60] sm:$0xff]
  %v65 = vld [vmem:[%s1 + $0x68] sm:$0xff]
  %v66 = vld [vmem:[%s1 + $0x70] sm:$0xff]
  %v67 = vld [vmem:[%s1 + $0x78] sm:$0xff]
  %v68 = vld [vmem:[%s1 + $0x80] sm:$0xff]
  %v69 = vld [vmem:[%s1 + $0x88] sm:$0xff]
  %v70 = vld [vmem:[%s1 + $0x90] sm:$0xff]
  %v71 = vld [vmem:[%s1 + $0x98] sm:$0xff]
  %v72 = vld [vmem:[%s1 + $0xa0] sm:$0xff]
  %v73 = vld [vmem:[%s1 + $0xa8] sm:$0xff]
  %v74 = vld [vmem:[%s1 + $0xb0] sm:$0xff]
  %v75 = vld [vmem:[%s1 + $0xb8] sm:$0xff]
  %v76 = vld [vmem:[%s1 + $0xc0] sm:$0xff]
  %v77 = vld [vmem:[%s1 + $0xc8] sm:$0xff]
  %v78 = vld [vmem:[%s1 + $0xd0] sm:$0xff]
  %v79 = vld [vmem:[%s1 + $0xd8] sm:$0xff]
  %v80 = vld [vmem:[%s1 + $0xe0] sm:$0xff]
  %v81 = vld [vmem:[%s1 + $0xe8] sm:$0xff]
  %v82 = vld [vmem:[%s1 + $0xf0] sm:$0xff]
  %v83 = vld [vmem:[%s1 + $0xf8] sm:$0xff]
  %v84 = vld [vmem:[%s1 + $0x100] sm:$0xff]
  %v85 = vld [vmem:[%s1 + $0x108] sm:$0xff]
  %v86 = vld [vmem:[%s1 + $0x110] sm:$0xff]
  %v87 = vld [vmem:[%s1 + $0x118] sm:$0xff]
  %v88 = vld [vmem:[%s1 + $0x120] sm:$0xff]
  %v89 = vld [vmem:[%s1 + $0x128] sm:$0xff]
  %v90 = vld [vmem:[%s1 + $0x130] sm:$0xff]
  %v91 = vld [vmem:[%s1 + $0x138] sm:$0xff]
  %v92 = vld [vmem:[%s1 + $0x140] sm:$0xff]
  %v93 = vld [vmem:[%s1 + $0x148] sm:$0xff]
  %v94 = vld [vmem:[%s1 + $0x150] sm:$0xff]
  %v95 = vld [vmem:[%s1 + $0x158] sm:$0xff]
  %v96 = vld [vmem:[%s1 + $0x160] sm:$0xff]
  %v97 = vld [vmem:[%s1 + $0x168] sm:$0xff]
  %v98 = vld [vmem:[%s1 + $0x170] sm:$0xff]
  %v99 = vld [vmem:[%s1 + $0x178] sm:$0xff]
  %v100 = vld [vmem:[%s1 + $0x180] sm:$0xff]
  %v101 = vld [vmem:[%s1 + $0x188] sm:$0xff]
  %v102 = vld [vmem:[%s1 + $0x190] sm:$0xff]
  %v103 = vld [vmem:[%s1 + $0x198] sm:$0xff]
  %v104 = vld [vmem:[%s1 + $0x1a0] sm:$0xff]
  %v105 = vld [vmem:[%s1 + $0x1a8] sm:$0xff]
  %v106 = vld [vmem:[%s1 + $0x1b0] sm:$0xff]
  %v107 = vld [vmem:[%s1 + $0x1b8] sm:$0xff]
  %v108 = vld [vmem:[%s1 + $0x1c0] sm:$0xff]
  %v109 = vld [vmem:[%s1 + $0x1c8] sm:$0xff]
  %v110 = vld [vmem:[%s1 + $0x1d0] sm:$0xff]
  %v111 = vld [vmem:[%s1 + $0x1d8] sm:$0xff]
  %v112 = vld [vmem:[%s1 + $0x1e0] sm:$0xff]
  %v113 = vld [vmem:[%s1 + $0x1e8] sm:$0xff]
  %v114 = vld [vmem:[%s1 + $0x1f0] sm:$0xff]
  %v115 = vld [vmem:[%s1 + $0x1f8] sm:$0xff]
  %v116 = vld [vmem:[%s1 + $0x200] sm:$0xff]
  %v117 = vld [vmem:[%s1 + $0x208] sm:$0xff]
  %v118 = vld [vmem:[%s1 + $0x210] sm:$0xff]
  %v119 = vld [vmem:[%s1 + $0x218] sm:$0xff]
  %v120 = vld [vmem:[%s1 + $0x220] sm:$0xff]
  %v121 = vld [vmem:[%s1 + $0x228] sm:$0xff]
  %v122 = vld [vmem:[%s1 + $0x230] sm:$0xff]
  %v123 = vld [vmem:[%s1 + $0x238] sm:$0xff]
  %v124 = vld [vmem:[%s1 + $0x240] sm:$0xff]
  %v125 = vld [vmem:[%s1 + $0x248] sm:$0xff]
  %v126 = vld [vmem:[%s1 + $0x250] sm:$0xff]
  %v127 = vld [vmem:[%s1 + $0x258] sm:$0xff]
  %v128 = vld [vmem:[%s1 + $0x260] sm:$0xff]
  %v129 = vld [vmem:[%s1 + $0x268] sm:$0xff]
  %v130 = vld [vmem:[%s1 + $0x270] sm:$0xff]
  %v131 = vld [vmem:[%s1 + $0x278] sm:$0xff]
  %v132 = vld [vmem:[%s1 + $0x280] sm:$0xff]
  %v133 = vld [vmem:[%s1 + $0x288] sm:$0xff]
  %v134 = vld [vmem:[%s1 + $0x290] sm:$0xff]
  %v135 = vld [vmem:[%s1 + $0x298] sm:$0xff]
  %v136 = vld [vmem:[%s1 + $0x2a0] sm:$0xff]
  %v137 = vld [vmem:[%s1 + $0x2a8] sm:$0xff]
  %v138 = vld [vmem:[%s1 + $0x2b0] sm:$0xff]
  %v139 = vld [vmem:[%s1 + $0x2b8] sm:$0xff]
  %v140 = vld [vmem:[%s1 + $0x2c0] sm:$0xff]
  %v141 = vld [vmem:[%s1 + $0x2c8] sm:$0xff]
  %v142 = vld [vmem:[%s1 + $0x2d0] sm:$0xff]
  %v143 = vld [vmem:[%s1 + $0x2d8] sm:$0xff]
  %v144 = vld [vmem:[%s1 + $0x2e0] sm:$0xff]
  %v145 = vld [vmem:[%s1 + $0x2e8] sm:$0xff]
  %v146 = vld [vmem:[%s1 + $0x2f0] sm:$0xff]
  %v147 = vld [vmem:[%s1 + $0x2f8] sm:$0xff]
  %v148 = vld [vmem:[%s1 + $0x300] sm:$0xff]
  %v149 = vld [vmem:[%s1 + $0x308] sm:$0xff]
  %v150 = vld [vmem:[%s1 + $0x310] sm:$0xff]
  %v151 = vld [vmem:[%s1 + $0x318] sm:$0xff]
  %v152 = vld [vmem:[%s1 + $0x320] sm:$0xff]
  %v153 = vld [vmem:[%s1 + $0x328] sm:$0xff]
  %v154 = vld [vmem:[%s1 + $0x330] sm:$0xff]
  %v155 = vld [vmem:[%s1 + $0x338] sm:$0xff]
  %v156 = vld [vmem:[%s1 + $0x340] sm:$0xff]
  %v157 = vld [vmem:[%s1 + $0x348] sm:$0xff]
  %v158 = vld [vmem:[%s1 + $0x350] sm:$0xff]
  %v159 = vld [vmem:[%s1 + $0x358] sm:$0xff]
  %v160 = vld [vmem:[%s1 + $0x360] sm:$0xff]
  %v161 = vld [vmem:[%s1 + $0x368] sm:$0xff]
  %v162 = vld [vmem:[%s1 + $0x370] sm:$0xff]
  %v163 = vld [vmem:[%s1 + $0x378] sm:$0xff]
  %v164 = vld [vmem:[%s1 + $0x380] sm:$0xff]
  %v165 = vld [vmem:[%s1 + $0x388] sm:$0xff]
  %v166 = vld [vmem:[%s1 + $0x390] sm:$0xff]
  %v167 = vld [vmem:[%s1 + $0x398] sm:$0xff]
  %v168 = vld [vmem:[%s1 + $0x3a0] sm:$0xff]
  %v169 = vld [vmem:[%s1 + $0x3a8] sm:$0xff]
  %v170 = vld [vmem:[%s1 + $0x3b0] sm:$0xff]
  %v171 = vld [vmem:[%s1 + $0x3b8] sm:$0xff]
  %v172 = vld [vmem:[%s1 + $0x3c0] sm:$0xff]
  %v173 = vld [vmem:[%s1 + $0x3c8] sm:$0xff]
  %v174 = vld [vmem:[%s1 + $0x3d0] sm:$0xff]
  %v175 = vld [vmem:[%s1 + $0x3d8] sm:$0xff]
  %v176 = vld [vmem:[%s1 + $0x3e0] sm:$0xff]
  %v177 = vld [vmem:[%s1 + $0x3e8] sm:$0xff]
  %v178 = vld [vmem:[%s1 + $0x3f0] sm:$0xff]
  %v179 = vld [vmem:[%s1 + $0x3f8] sm:$0xff]
  %v180 = vld [vmem:[%s1 + $0x400] sm:$0xff]
  %v181 = vld [vmem:[%s1 + $0x408] sm:$0xff]
  %v182 = vld [vmem:[%s1 + $0x410] sm:$0xff]
  %v183 = vld [vmem:[%s1 + $0x418] sm:$0xff]
  %v184 = vld [vmem:[%s1 + $0x420] sm:$0xff]
  %v185 = vld [vmem:[%s1 + $0x428] sm:$0xff]
  %v186 = vld [vmem:[%s1 + $0x430] sm:$0xff]
  %v187 = vld [vmem:[%s1 + $0x438] sm:$0xff]
  %v188 = vld [vmem:[%s1 + $0x440] sm:$0xff]
  %v189 = vld [vmem:[%s1 + $0x448] sm:$0xff]
  %v190 = vld [vmem:[%s1 + $0x450] sm:$0xff]
  %v191 = vld [vmem:[%s1 + $0x458] sm:$0xff]
  %v192 = vld [vmem:[%s1 + $0x460] sm:$0xff]
  %v193 = vld [vmem:[%s1 + $0x468] sm:$0xff]
  %v194 = vld [vmem:[%s1 + $0x470] sm:$0xff]
  %v195 = vld [vmem:[%s1 + $0x478] sm:$0xff]
  %v196 = vld [vmem:[%s1 + $0x480] sm:$0xff]
  %v197 = vld [vmem:[%s1 + $0x488] sm:$0xff]
  %v198 = vld [vmem:[%s1 + $0x490] sm:$0xff]
  %v199 = vld [vmem:[%s1 + $0x498] sm:$0xff]
  %v200 = vld [vmem:[%s1 + $0x4a0] sm:$0xff]
  %v201 = vld [vmem:[%s1 + $0x4a8] sm:$0xff]
  %v202 = vld [vmem:[%s1 + $0x4b0] sm:$0xff]
  %v203 = vld [vmem:[%s1 + $0x4b8] sm:$0xff]
  %v204 = vld [vmem:[%s1 + $0x4c0] sm:$0xff]
  %v205 = vld [vmem:[%s1 + $0x4c8] sm:$0xff]
  %v206 = vld [vmem:[%s1 + $0x4d0] sm:$0xff]
  %v207 = vld [vmem:[%s1 + $0x4d8] sm:$0xff]
  %v208 = vld [vmem:[%s1 + $0x4e0] sm:$0xff]
  %v209 = vld [vmem:[%s1 + $0x4e8] sm:$0xff]
  %v210 = vld [vmem:[%s1 + $0x4f0] sm:$0xff]
  %v211 = vld [vmem:[%s1 + $0x4f8] sm:$0xff]
  %v212 = vld [vmem:[%s1 + $0x500] sm:$0xff]
  %v213 = vld [vmem:[%s1 + $0x508] sm:$0xff]
  %v214 = vld [vmem:[%s1 + $0x510] sm:$0xff]
  %v215 = vld [vmem:[%s1 + $0x518] sm:$0xff]
  %v216 = vld [vmem:[%s1 + $0x520] sm:$0xff]
  %v217 = vld [vmem:[%s1 + $0x528] sm:$0xff]
  %v218 = vld [vmem:[%s1 + $0x530] sm:$0xff]
  %v219 = vld [vmem:[%s1 + $0x538] sm:$0xff]
  %v220 = vld [vmem:[%s1 + $0x540] sm:$0xff]
  %v221 = vld [vmem:[%s1 + $0x548] sm:$0xff]
  %v222 = vld [vmem:[%s1 + $0x550] sm:$0xff]
  %v223 = vld [vmem:[%s1 + $0x558] sm:$0xff]
  %v224 = vld [vmem:[%s1 + $0x560] sm:$0xff]
  %v225 = vld [vmem:[%s1 + $0x568] sm:$0xff]
  %v226 = vld [vmem:[%s1 + $0x570] sm:$0xff]
  %v227 = vld [vmem:[%s1 + $0x578] sm:$0xff]
  %v228 = vld [vmem:[%s1 + $0x580] sm:$0xff]
  %v229 = vld [vmem:[%s1 + $0x588] sm:$0xff]
  %v230 = vld [vmem:[%s1 + $0x590] sm:$0xff]
  %v231 = vld [vmem:[%s1 + $0x598] sm:$0xff]
  %v232 = vld [vmem:[%s1 + $0x5a0] sm:$0xff]
  %v233 = vld [vmem:[%s1 + $0x5a8] sm:$0xff]
  %v234 = vld [vmem:[%s1 + $0x5b0] sm:$0xff]
  %v235 = vld [vmem:[%s1 + $0x5b8] sm:$0xff]
  %v236 = vld [vmem:[%s1 + $0x5c0] sm:$0xff]
  %v237 = vld [vmem:[%s1 + $0x5c8] sm:$0xff]
  %v238 = vld [vmem:[%s1 + $0x5d0] sm:$0xff]
  %v239 = vld [vmem:[%s1 + $0x5d8] sm:$0xff]
  %v240 = vld [vmem:[%s1 + $0x5e0] sm:$0xff]
  %v241 = vld [vmem:[%s1 + $0x5e8] sm:$0xff]
  %v242 = vld [vmem:[%s1 + $0x5f0] sm:$0xff]
  %v243 = vld [vmem:[%s1 + $0x5f8] sm:$0xff]
  %v244 = vld [vmem:[%s1 + $0x600] sm:$0xff]
  %v245 = vld [vmem:[%s1 + $0x608] sm:$0xff]
  %v246 = vld [vmem:[%s1 + $0x610] sm:$0xff]
  %v247 = vld [vmem:[%s1 + $0x618] sm:$0xff]
  %v248 = vld [vmem:[%s1 + $0x620] sm:$0xff]
  %v249 = vld [vmem:[%s1 + $0x628] sm:$0xff]
  %v250 = vld [vmem:[%s1 + $0x630] sm:$0xff]
  %v251 = vld [vmem:[%s1 + $0x638] sm:$0xff]
  %v252 = vld [vmem:[%s1 + $0x640] sm:$0xff]
  %v253 = vld [vmem:[%s1 + $0x648] sm:$0xff]
  %v254 = vld [vmem:[%s1 + $0x650] sm:$0xff]
  %v255 = vld [vmem:[%s1 + $0x658] sm:$0xff]
  %v256 = vld [vmem:[%s1 + $0x660] sm:$0xff]
  %v257 = vld [vmem:[%s1 + $0x668] sm:$0xff]
  %v258 = vld [vmem:[%s1 + $0x670] sm:$0xff]
  %v259 = vld [vmem:[%s1 + $0x678] sm:$0xff]
  %v260 = vld [vmem:[%s1 + $0x680] sm:$0xff]
  %v261 = vld [vmem:[%s1 + $0x688] sm:$0xff]
  %v262 = vld [vmem:[%s1 + $0x690] sm:$0xff]
  %v263 = vld [vmem:[%s1 + $0x698] sm:$0xff]
  %v264 = vld [vmem:[%s1 + $0x6a0] sm:$0xff]
  %v265 = vld [vmem:[%s1 + $0x6a8] sm:$0xff]
  %v266 = vld [vmem:[%s1 + $0x6b0] sm:$0xff]
  %v267 = vld [vmem:[%s1 + $0x6b8] sm:$0xff]
  %v268 = vld [vmem:[%s1 + $0x6c0] sm:$0xff]
  %v269 = vld [vmem:[%s1 + $0x6c8] sm:$0xff]
  %v270 = vld [vmem:[%s1 + $0x6d0] sm:$0xff]
  %v271 = vld [vmem:[%s1 + $0x6d8] sm:$0xff]
  %v272 = vld [vmem:[%s1 + $0x6e0] sm:$0xff]
  %v273 = vld [vmem:[%s1 + $0x6e8] sm:$0xff]
  %v274 = vld [vmem:[%s1 + $0x6f0] sm:$0xff]
  %v275 = vld [vmem:[%s1 + $0x6f8] sm:$0xff]
  %v276 = vld [vmem:[%s1 + $0x700] sm:$0xff]
  %v277 = vld [vmem:[%s1 + $0x708] sm:$0xff]
  %v278 = vld [vmem:[%s1 + $0x710] sm:$0xff]
  %v279 = vld [vmem:[%s1 + $0x718] sm:$0xff]
  %v280 = vld [vmem:[%s1 + $0x720] sm:$0xff]
  %v281 = vld [vmem:[%s1 + $0x728] sm:$0xff]
  %v282 = vld [vmem:[%s1 + $0x730] sm:$0xff]
  %v283 = vld [vmem:[%s1 + $0x738] sm:$0xff]
  %v284 = vld [vmem:[%s1 + $0x740] sm:$0xff]
  %v285 = vld [vmem:[%s1 + $0x748] sm:$0xff]
  %v286 = vld [vmem:[%s1 + $0x750] sm:$0xff]
  %v287 = vld [vmem:[%s1 + $0x758] sm:$0xff]
  %v288 = vld [vmem:[%s1 + $0x760] sm:$0xff]
  %v289 = vld [vmem:[%s1 + $0x768] sm:$0xff]
  %v290 = vld [vmem:[%s1 + $0x770] sm:$0xff]
  %v291 = vld [vmem:[%s1 + $0x778] sm:$0xff]
  %v292 = vld [vmem:[%s1 + $0x780] sm:$0xff]
  %v293 = vld [vmem:[%s1 + $0x788] sm:$0xff]
  %v294 = vld [vmem:[%s1 + $0x790] sm:$0xff]
  %v295 = vld [vmem:[%s1 + $0x798] sm:$0xff]
  %v296 = vld [vmem:[%s1 + $0x7a0] sm:$0xff]
  %v297 = vld [vmem:[%s1 + $0x7a8] sm:$0xff]
  %v298 = vld [vmem:[%s1 + $0x7b0] sm:$0xff]
  %v299 = vld [vmem:[%s1 + $0x7b8] sm:$0xff]
  %v300 = vld [vmem:[%s1 + $0x7c0] sm:$0xff]
  %v301 = vld [vmem:[%s1 + $0x7c8] sm:$0xff]
  %v302 = vld [vmem:[%s1 + $0x7d0] sm:$0xff]
  %v303 = vld [vmem:[%s1 + $0x7d8] sm:$0xff]
  %v304 = vld [vmem:[%s1 + $0x7e0] sm:$0xff]
  %v305 = vld [vmem:[%s1 + $0x7e8] sm:$0xff]
  %v306 = vld [vmem:[%s1 + $0x7f0] sm:$0xff]
  %v307 = vld [vmem:[%s1 + $0x7f8] sm:$0xff]
  %v308 = vld [vmem:[%s1 + $0x800] sm:$0xff]
  %v309 = vld [vmem:[%s1 + $0x808] sm:$0xff]
  %v310 = vld [vmem:[%s1 + $0x810] sm:$0xff]
  %v311 = vld [vmem:[%s1 + $0x818] sm:$0xff]
  %v312 = vld [vmem:[%s1 + $0x820] sm:$0xff]
  %v313 = vld [vmem:[%s1 + $0x828] sm:$0xff]
  %v314 = vld [vmem:[%s1 + $0x830] sm:$0xff]
  %v315 = vld [vmem:[%s1 + $0x838] sm:$0xff]
  %v316 = vld [vmem:[%s1 + $0x840] sm:$0xff]
  %v317 = vld [vmem:[%s1 + $0x848] sm:$0xff]
  %v318 = vld [vmem:[%s1 + $0x850] sm:$0xff]
  %v319 = vld [vmem:[%s1 + $0x858] sm:$0xff]
  %v320 = vld [vmem:[%s1 + $0x860] sm:$0xff]
  %v321 = vld [vmem:[%s1 + $0x868] sm:$0xff]
  %v322 = vld [vmem:[%s1 + $0x870] sm:$0xff]
  %v323 = vld [vmem:[%s1 + $0x878] sm:$0xff]
  %v324 = vld [vmem:[%s1 + $0x880] sm:$0xff]
  %v325 = vld [vmem:[%s1 + $0x888] sm:$0xff]
  %v326 = vld [vmem:[%s1 + $0x890] sm:$0xff]
  %v327 = vld [vmem:[%s1 + $0x898] sm:$0xff]
  %v328 = vld [vmem:[%s1 + $0x8a0] sm:$0xff]
  %v329 = vld [vmem:[%s1 + $0x8a8] sm:$0xff]
  %v330 = vld [vmem:[%s1 + $0x8b0] sm:$0xff]
  %v331 = vld [vmem:[%s1 + $0x8b8] sm:$0xff]
  %v332 = vld [vmem:[%s1 + $0x8c0] sm:$0xff]
  %v333 = vld [vmem:[%s1 + $0x8c8] sm:$0xff]
  %v334 = vld [vmem:[%s1 + $0x8d0] sm:$0xff]
  %v335 = vld [vmem:[%s1 + $0x8d8] sm:$0xff]
  %v336 = vld [vmem:[%s1 + $0x8e0] sm:$0xff]
  %v337 = vld [vmem:[%s1 + $0x8e8] sm:$0xff]
  %v338 = vld [vmem:[%s1 + $0x8f0] sm:$0xff]
  %v339 = vld [vmem:[%s1 + $0x8f8] sm:$0xff]
  %v340 = vld [vmem:[%s1 + $0x900] sm:$0xff]
  %v341 = vld [vmem:[%s1 + $0x908] sm:$0xff]
  %v342 = vld [vmem:[%s1 + $0x910] sm:$0xff]
  %v343 = vld [vmem:[%s1 + $0x918] sm:$0xff]
  %v344 = vld [vmem:[%s1 + $0x920] sm:$0xff]
  %v345 = vld [vmem:[%s1 + $0x928] sm:$0xff]
  %v346 = vld [vmem:[%s1 + $0x930] sm:$0xff]
  %v347 = vld [vmem:[%s1 + $0x938] sm:$0xff]
  %v348 = vld [vmem:[%s1 + $0x940] sm:$0xff]
  %v349 = vld [vmem:[%s1 + $0x948] sm:$0xff]
  %v350 = vld [vmem:[%s1 + $0x950] sm:$0xff]
  %v351 = vld [vmem:[%s1 + $0x958] sm:$0xff]
  %v352 = vld [vmem:[%s1 + $0x960] sm:$0xff]
  %v353 = vld [vmem:[%s1 + $0x968] sm:$0xff]
  %v354 = vld [vmem:[%s1 + $0x970] sm:$0xff]
  %v355 = vld [vmem:[%s1 + $0x978] sm:$0xff]
  %v356 = vld [vmem:[%s1 + $0x980] sm:$0xff]
  %v357 = vld [vmem:[%s1 + $0x988] sm:$0xff]
  %v358 = vld [vmem:[%s1 + $0x990] sm:$0xff]
  %v359 = vld [vmem:[%s1 + $0x998] sm:$0xff]
  %v360 = vld [vmem:[%s1 + $0x9a0] sm:$0xff]
  %v361 = vld [vmem:[%s1 + $0x9a8] sm:$0xff]
  %v362 = vld [vmem:[%s1 + $0x9b0] sm:$0xff]
  %v363 = vld [vmem:[%s1 + $0x9b8] sm:$0xff]
  %v364 = vld [vmem:[%s1 + $0x9c0] sm:$0xff]
  %v365 = vld [vmem:[%s1 + $0x9c8] sm:$0xff]
  %v366 = vld [vmem:[%s1 + $0x9d0] sm:$0xff]
  %v367 = vld [vmem:[%s1 + $0x9d8] sm:$0xff]
  %v368 = vld [vmem:[%s1 + $0x9e0] sm:$0xff]
  %v369 = vld [vmem:[%s1 + $0x9e8] sm:$0xff]
  %v370 = vld [vmem:[%s1 + $0x9f0] sm:$0xff]
  %v371 = vld [vmem:[%s1 + $0x9f8] sm:$0xff]
  %v372 = vld [vmem:[%s1 + $0xa00] sm:$0xff]
  %v373 = vld [vmem:[%s1 + $0xa08] sm:$0xff]
  %v374 = vld [vmem:[%s1 + $0xa10] sm:$0xff]
  %v375 = vld [vmem:[%s1 + $0xa18] sm:$0xff]
  %v376 = vld [vmem:[%s1 + $0xa20] sm:$0xff]
  %v377 = vld [vmem:[%s1 + $0xa28] sm:$0xff]
  %v378 = vld [vmem:[%s1 + $0xa30] sm:$0xff]
  %v379 = vld [vmem:[%s1 + $0xa38] sm:$0xff]
  %v380 = vld [vmem:[%s1 + $0xa40] sm:$0xff]
  %v381 = vld [vmem:[%s1 + $0xa48] sm:$0xff]
  %v382 = vld [vmem:[%s1 + $0xa50] sm:$0xff]
  %v383 = vld [vmem:[%s1 + $0xa58] sm:$0xff]
  %v384 = vld [vmem:[%s1 + $0xa60] sm:$0xff]
  %v385 = vld [vmem:[%s1 + $0xa68] sm:$0xff]
  %v386 = vld [vmem:[%s1 + $0xa70] sm:$0xff]
  %v387 = vld [vmem:[%s1 + $0xa78] sm:$0xff]
  %v388 = vld [vmem:[%s1 + $0xa80] sm:$0xff]
  %v389 = vld [vmem:[%s1 + $0xa88] sm:$0xff]
  %v390 = vld [vmem:[%s1 + $0xa90] sm:$0xff]
  %v391 = vld [vmem:[%s1 + $0xa98] sm:$0xff]
  %v392 = vld [vmem:[%s1 + $0xaa0] sm:$0xff]
  %v393 = vld [vmem:[%s1 + $0xaa8] sm:$0xff]
  %v394 = vld [vmem:[%s1 + $0xab0] sm:$0xff]
  %v395 = vld [vmem:[%s1 + $0xab8] sm:$0xff]
  %v396 = vld [vmem:[%s1 + $0xac0] sm:$0xff]
  %v397 = vld [vmem:[%s1 + $0xac8] sm:$0xff]
  %v398 = vld [vmem:[%s1 + $0xad0] sm:$0xff]
  %v399 = vld [vmem:[%s1 + $0xad8] sm:$0xff]
  %v400 = vld [vmem:[%s1 + $0xae0] sm:$0xff]
  %v401 = vld [vmem:[%s1 + $0xae8] sm:$0xff]
  %v402 = vld [vmem:[%s1 + $0xaf0] sm:$0xff]
  %v403 = vld [vmem:[%s1 + $0xaf8] sm:$0xff]
  %v404 = vld [vmem:[%s1 + $0xb00] sm:$0xff]
  %v405 = vld [vmem:[%s1 + $0xb08] sm:$0xff]
  %v406 = vld [vmem:[%s1 + $0xb10] sm:$0xff]
  %v407 = vld [vmem:[%s1 + $0xb18] sm:$0xff]
  %v408 = vld [vmem:[%s1 + $0xb20] sm:$0xff]
  %v409 = vld [vmem:[%s1 + $0xb28] sm:$0xff]
  %v410 = vld [vmem:[%s1 + $0xb30] sm:$0xff]
  %v411 = vld [vmem:[%s1 + $0xb38] sm:$0xff]
  %v412 = vld [vmem:[%s1 + $0xb40] sm:$0xff]
  %v413 = vld [vmem:[%s1 + $0xb48] sm:$0xff]
  %v414 = vld [vmem:[%s1 + $0xb50] sm:$0xff]
  %v415 = vld [vmem:[%s1 + $0xb58] sm:$0xff]
  %v416 = vld [vmem:[%s1 + $0xb60] sm:$0xff]
  %v417 = vld [vmem:[%s1 + $0xb68] sm:$0xff]
  %v418 = vld [vmem:[%s1 + $0xb70] sm:$0xff]
  %v419 = vld [vmem:[%s1 + $0xb78] sm:$0xff]
  %v420 = vld [vmem:[%s1 + $0xb80] sm:$0xff]
  %v421 = vld [vmem:[%s1 + $0xb88] sm:$0xff]
  %v422 = vld [vmem:[%s1 + $0xb90] sm:$0xff]
  %v423 = vld [vmem:[%s1 + $0xb98] sm:$0xff]
  %v424 = vld [vmem:[%s1 + $0xba0] sm:$0xff]
  %v425 = vld [vmem:[%s1 + $0xba8] sm:$0xff]
  %v426 = vld [vmem:[%s1 + $0xbb0] sm:$0xff]
  %v427 = vld [vmem:[%s1 + $0xbb8] sm:$0xff]
  %v428 = vld [vmem:[%s1 + $0xbc0] sm:$0xff]
  %v429 = vld [vmem:[%s1 + $0xbc8] sm:$0xff]
  %v430 = vld [vmem:[%s1 + $0xbd0] sm:$0xff]
  %v431 = vld [vmem:[%s1 + $0xbd8] sm:$0xff]
  %v432 = vld [vmem:[%s1 + $0xbe0] sm:$0xff]
  %v433 = vld [vmem:[%s1 + $0xbe8] sm:$0xff]
  %v434 = vld [vmem:[%s1 + $0xbf0] sm:$0xff]
  %v435 = vld [vmem:[%s1 + $0xbf8] sm:$0xff]
  %v436 = vld [vmem:[%s1 + $0xc00] sm:$0xff]
  %v437 = vld [vmem:[%s1 + $0xc08] sm:$0xff]
  %v438 = vld [vmem:[%s1 + $0xc10] sm:$0xff]
  %v439 = vld [vmem:[%s1 + $0xc18] sm:$0xff]
  %v440 = vld [vmem:[%s1 + $0xc20] sm:$0xff]
  %v441 = vld [vmem:[%s1 + $0xc28] sm:$0xff]
  %v442 = vld [vmem:[%s1 + $0xc30] sm:$0xff]
  %v443 = vld [vmem:[%s1 + $0xc38] sm:$0xff]
  %v444 = vld [vmem:[%s1 + $0xc40] sm:$0xff]
  %v445 = vld [vmem:[%s1 + $0xc48] sm:$0xff]
  %v446 = vld [vmem:[%s1 + $0xc50] sm:$0xff]
  %v447 = vld [vmem:[%s1 + $0xc58] sm:$0xff]
  %v448 = vld [vmem:[%s1 + $0xc60] sm:$0xff]
  %v449 = vld [vmem:[%s1 + $0xc68] sm:$0xff]
  %v450 = vld [vmem:[%s1 + $0xc70] sm:$0xff]
  %v451 = vld [vmem:[%s1 + $0xc78] sm:$0xff]
  %v452 = vld [vmem:[%s2] sm:$0x3]
  %v454 = vperm.slane %v452, 0
  %v455 = vperm.slane %v452, 1
  %v484 = vunpack.c.l.b16 %v26
  %v485 = vunpack.c.h.b16 %v26
  %v486 = vunpack.c.l.b16 %v27
  %v487 = vunpack.c.h.b16 %v27
  %v488 = vunpack.c.l.b16 %v28
  %v489 = vunpack.c.h.b16 %v28
  %v490 = vunpack.c.l.b16 %v29
  %v491 = vunpack.c.h.b16 %v29
  %v492 = vunpack.c.l.b16 %v30
  %v493 = vunpack.c.h.b16 %v30
  %v494 = vunpack.c.l.b16 %v31
  %v495 = vunpack.c.h.b16 %v31
  %v496 = vunpack.c.l.b16 %v32
  %v497 = vunpack.c.h.b16 %v32
  %v498 = vunpack.c.l.b16 %v33
  %v499 = vunpack.c.h.b16 %v33
  %v500 = vunpack.c.l.b16 %v34
  %v501 = vunpack.c.h.b16 %v34
  %v502 = vunpack.c.l.b16 %v35
  %v503 = vunpack.c.h.b16 %v35
  %v504 = vunpack.c.l.b16 %v36
  %v505 = vunpack.c.h.b16 %v36
  %v506 = vunpack.c.l.b16 %v37
  %v507 = vunpack.c.h.b16 %v37
  %v508 = vunpack.c.l.b16 %v38
  %v509 = vunpack.c.l.b16 %v39
  %v510 = vunpack.c.h.b16 %v39
  %v511 = vunpack.c.l.b16 %v40
  %v512 = vunpack.c.h.b16 %v40
  %v513 = vunpack.c.l.b16 %v41
  %v514 = vunpack.c.h.b16 %v41
  %v515 = vunpack.c.l.b16 %v42
  %v516 = vunpack.c.h.b16 %v42
  %v517 = vunpack.c.l.b16 %v43
  %v518 = vunpack.c.h.b16 %v43
  %v519 = vunpack.c.l.b16 %v44
  %v520 = vunpack.c.h.b16 %v44
  %v521 = vunpack.c.l.b16 %v45
  %v522 = vunpack.c.h.b16 %v45
  %v523 = vunpack.c.l.b16 %v46
  %v524 = vunpack.c.h.b16 %v46
  %v525 = vunpack.c.l.b16 %v47
  %v526 = vunpack.c.h.b16 %v47
  %v527 = vunpack.c.l.b16 %v48
  %v528 = vunpack.c.h.b16 %v48
  %v529 = vunpack.c.l.b16 %v49
  %v530 = vunpack.c.h.b16 %v49
  %v531 = vunpack.c.l.b16 %v50
  %v532 = vunpack.c.h.b16 %v50
  %v533 = vunpack.c.l.b16 %v51
  %v534 = vpack.c.b16 %v509, %v484
  %v535 = vpack.c.b16 %v510, %v485
  %v536 = vpack.c.b16 %v511, %v486
  %v537 = vpack.c.b16 %v512, %v487
  %v538 = vpack.c.b16 %v513, %v488
  %v539 = vpack.c.b16 %v514, %v489
  %v540 = vpack.c.b16 %v515, %v490
  %v541 = vpack.c.b16 %v516, %v491
  %v542 = vpack.c.b16 %v517, %v492
  %v543 = vpack.c.b16 %v518, %v493
  %v544 = vpack.c.b16 %v519, %v494
  %v545 = vpack.c.b16 %v520, %v495
  %v546 = vpack.c.b16 %v521, %v496
  %v547 = vpack.c.b16 %v522, %v497
  %v548 = vpack.c.b16 %v523, %v498
  %v549 = vpack.c.b16 %v524, %v499
  %v550 = vpack.c.b16 %v525, %v500
  %v551 = vpack.c.b16 %v526, %v501
  %v552 = vpack.c.b16 %v527, %v502
  %v553 = vpack.c.b16 %v528, %v503
  %v554 = vpack.c.b16 %v529, %v504
  %v555 = vpack.c.b16 %v530, %v505
  %v556 = vpack.c.b16 %v531, %v506
  %v557 = vpack.c.b16 %v532, %v507
  %v558 = vpack.c.b16 %v533, %v508
  %v984 = vunpack.c.l.b16 %v52
  %v985 = vunpack.c.h.b16 %v52
  %v986 = vunpack.c.l.b16 %v53
  %v987 = vunpack.c.h.b16 %v53
  %v988 = vunpack.c.l.b16 %v54
  %v989 = vunpack.c.h.b16 %v54
  %v990 = vunpack.c.l.b16 %v55
  %v991 = vunpack.c.h.b16 %v55
  %v992 = vunpack.c.l.b16 %v56
  %v993 = vunpack.c.h.b16 %v56
  %v994 = vunpack.c.l.b16 %v57
  %v995 = vunpack.c.h.b16 %v57
  %v996 = vunpack.c.l.b16 %v58
  %v997 = vunpack.c.h.b16 %v58
  %v998 = vunpack.c.l.b16 %v59
  %v999 = vunpack.c.h.b16 %v59
  %v1000 = vunpack.c.l.b16 %v60
  %v1001 = vunpack.c.h.b16 %v60
  %v1002 = vunpack.c.l.b16 %v61
  %v1003 = vunpack.c.h.b16 %v61
  %v1004 = vunpack.c.l.b16 %v62
  %v1005 = vunpack.c.h.b16 %v62
  %v1006 = vunpack.c.l.b16 %v63
  %v1007 = vunpack.c.h.b16 %v63
  %v1008 = vunpack.c.l.b16 %v64
  %v1009 = vunpack.c.h.b16 %v64
  %v1010 = vunpack.c.l.b16 %v65
  %v1011 = vunpack.c.h.b16 %v65
  %v1012 = vunpack.c.l.b16 %v66
  %v1013 = vunpack.c.h.b16 %v66
  %v1014 = vunpack.c.l.b16 %v67
  %v1015 = vunpack.c.h.b16 %v67
  %v1016 = vunpack.c.l.b16 %v68
  %v1017 = vunpack.c.h.b16 %v68
  %v1018 = vunpack.c.l.b16 %v69
  %v1019 = vunpack.c.h.b16 %v69
  %v1020 = vunpack.c.l.b16 %v70
  %v1021 = vunpack.c.h.b16 %v70
  %v1022 = vunpack.c.l.b16 %v71
  %v1023 = vunpack.c.h.b16 %v71
  %v1024 = vunpack.c.l.b16 %v72
  %v1025 = vunpack.c.h.b16 %v72
  %v1026 = vunpack.c.l.b16 %v73
  %v1027 = vunpack.c.h.b16 %v73
  %v1028 = vunpack.c.l.b16 %v74
  %v1029 = vunpack.c.h.b16 %v74
  %v1030 = vunpack.c.l.b16 %v75
  %v1031 = vunpack.c.h.b16 %v75
  %v1032 = vunpack.c.l.b16 %v76
  %v1033 = vunpack.c.h.b16 %v76
  %v1034 = vunpack.c.l.b16 %v77
  %v1035 = vunpack.c.h.b16 %v77
  %v1036 = vunpack.c.l.b16 %v78
  %v1037 = vunpack.c.h.b16 %v78
  %v1038 = vunpack.c.l.b16 %v79
  %v1039 = vunpack.c.h.b16 %v79
  %v1040 = vunpack.c.l.b16 %v80
  %v1041 = vunpack.c.h.b16 %v80
  %v1042 = vunpack.c.l.b16 %v81
  %v1043 = vunpack.c.h.b16 %v81
  %v1044 = vunpack.c.l.b16 %v82
  %v1045 = vunpack.c.h.b16 %v82
  %v1046 = vunpack.c.l.b16 %v83
  %v1047 = vunpack.c.h.b16 %v83
  %v1048 = vunpack.c.l.b16 %v84
  %v1049 = vunpack.c.h.b16 %v84
  %v1050 = vunpack.c.l.b16 %v85
  %v1051 = vunpack.c.h.b16 %v85
  %v1052 = vunpack.c.l.b16 %v86
  %v1053 = vunpack.c.h.b16 %v86
  %v1054 = vunpack.c.l.b16 %v87
  %v1055 = vunpack.c.h.b16 %v87
  %v1056 = vunpack.c.l.b16 %v88
  %v1057 = vunpack.c.h.b16 %v88
  %v1058 = vunpack.c.l.b16 %v89
  %v1059 = vunpack.c.h.b16 %v89
  %v1060 = vunpack.c.l.b16 %v90
  %v1061 = vunpack.c.h.b16 %v90
  %v1062 = vunpack.c.l.b16 %v91
  %v1063 = vunpack.c.h.b16 %v91
  %v1064 = vunpack.c.l.b16 %v92
  %v1065 = vunpack.c.h.b16 %v92
  %v1066 = vunpack.c.l.b16 %v93
  %v1067 = vunpack.c.h.b16 %v93
  %v1068 = vunpack.c.l.b16 %v94
  %v1069 = vunpack.c.h.b16 %v94
  %v1070 = vunpack.c.l.b16 %v95
  %v1071 = vunpack.c.h.b16 %v95
  %v1072 = vunpack.c.l.b16 %v96
  %v1073 = vunpack.c.h.b16 %v96
  %v1074 = vunpack.c.l.b16 %v97
  %v1075 = vunpack.c.h.b16 %v97
  %v1076 = vunpack.c.l.b16 %v98
  %v1077 = vunpack.c.h.b16 %v98
  %v1078 = vunpack.c.l.b16 %v99
  %v1079 = vunpack.c.h.b16 %v99
  %v1080 = vunpack.c.l.b16 %v100
  %v1081 = vunpack.c.h.b16 %v100
  %v1082 = vunpack.c.l.b16 %v101
  %v1083 = vunpack.c.h.b16 %v101
  %v1084 = vunpack.c.l.b16 %v102
  %v1085 = vunpack.c.h.b16 %v102
  %v1086 = vunpack.c.l.b16 %v103
  %v1087 = vunpack.c.h.b16 %v103
  %v1088 = vunpack.c.l.b16 %v104
  %v1089 = vunpack.c.h.b16 %v104
  %v1090 = vunpack.c.l.b16 %v105
  %v1091 = vunpack.c.h.b16 %v105
  %v1092 = vunpack.c.l.b16 %v106
  %v1093 = vunpack.c.h.b16 %v106
  %v1094 = vunpack.c.l.b16 %v107
  %v1095 = vunpack.c.h.b16 %v107
  %v1096 = vunpack.c.l.b16 %v108
  %v1097 = vunpack.c.h.b16 %v108
  %v1098 = vunpack.c.l.b16 %v109
  %v1099 = vunpack.c.h.b16 %v109
  %v1100 = vunpack.c.l.b16 %v110
  %v1101 = vunpack.c.h.b16 %v110
  %v1102 = vunpack.c.l.b16 %v111
  %v1103 = vunpack.c.h.b16 %v111
  %v1104 = vunpack.c.l.b16 %v112
  %v1105 = vunpack.c.h.b16 %v112
  %v1106 = vunpack.c.l.b16 %v113
  %v1107 = vunpack.c.h.b16 %v113
  %v1108 = vunpack.c.l.b16 %v114
  %v1109 = vunpack.c.h.b16 %v114
  %v1110 = vunpack.c.l.b16 %v115
  %v1111 = vunpack.c.h.b16 %v115
  %v1112 = vunpack.c.l.b16 %v116
  %v1113 = vunpack.c.h.b16 %v116
  %v1114 = vunpack.c.l.b16 %v117
  %v1115 = vunpack.c.h.b16 %v117
  %v1116 = vunpack.c.l.b16 %v118
  %v1117 = vunpack.c.h.b16 %v118
  %v1118 = vunpack.c.l.b16 %v119
  %v1119 = vunpack.c.h.b16 %v119
  %v1120 = vunpack.c.l.b16 %v120
  %v1121 = vunpack.c.h.b16 %v120
  %v1122 = vunpack.c.l.b16 %v121
  %v1123 = vunpack.c.h.b16 %v121
  %v1124 = vunpack.c.l.b16 %v122
  %v1125 = vunpack.c.h.b16 %v122
  %v1126 = vunpack.c.l.b16 %v123
  %v1127 = vunpack.c.h.b16 %v123
  %v1128 = vunpack.c.l.b16 %v124
  %v1129 = vunpack.c.h.b16 %v124
  %v1130 = vunpack.c.l.b16 %v125
  %v1131 = vunpack.c.h.b16 %v125
  %v1132 = vunpack.c.l.b16 %v126
  %v1133 = vunpack.c.h.b16 %v126
  %v1134 = vunpack.c.l.b16 %v127
  %v1135 = vunpack.c.h.b16 %v127
  %v1136 = vunpack.c.l.b16 %v128
  %v1137 = vunpack.c.h.b16 %v128
  %v1138 = vunpack.c.l.b16 %v129
  %v1139 = vunpack.c.h.b16 %v129
  %v1140 = vunpack.c.l.b16 %v130
  %v1141 = vunpack.c.h.b16 %v130
  %v1142 = vunpack.c.l.b16 %v131
  %v1143 = vunpack.c.h.b16 %v131
  %v1144 = vunpack.c.l.b16 %v132
  %v1145 = vunpack.c.h.b16 %v132
  %v1146 = vunpack.c.l.b16 %v133
  %v1147 = vunpack.c.h.b16 %v133
  %v1148 = vunpack.c.l.b16 %v134
  %v1149 = vunpack.c.h.b16 %v134
  %v1150 = vunpack.c.l.b16 %v135
  %v1151 = vunpack.c.h.b16 %v135
  %v1152 = vunpack.c.l.b16 %v136
  %v1153 = vunpack.c.h.b16 %v136
  %v1154 = vunpack.c.l.b16 %v137
  %v1155 = vunpack.c.h.b16 %v137
  %v1156 = vunpack.c.l.b16 %v138
  %v1157 = vunpack.c.h.b16 %v138
  %v1158 = vunpack.c.l.b16 %v139
  %v1159 = vunpack.c.h.b16 %v139
  %v1160 = vunpack.c.l.b16 %v140
  %v1161 = vunpack.c.h.b16 %v140
  %v1162 = vunpack.c.l.b16 %v141
  %v1163 = vunpack.c.h.b16 %v141
  %v1164 = vunpack.c.l.b16 %v142
  %v1165 = vunpack.c.h.b16 %v142
  %v1166 = vunpack.c.l.b16 %v143
  %v1167 = vunpack.c.h.b16 %v143
  %v1168 = vunpack.c.l.b16 %v144
  %v1169 = vunpack.c.h.b16 %v144
  %v1170 = vunpack.c.l.b16 %v145
  %v1171 = vunpack.c.h.b16 %v145
  %v1172 = vunpack.c.l.b16 %v146
  %v1173 = vunpack.c.h.b16 %v146
  %v1174 = vunpack.c.l.b16 %v147
  %v1175 = vunpack.c.h.b16 %v147
  %v1176 = vunpack.c.l.b16 %v148
  %v1177 = vunpack.c.h.b16 %v148
  %v1178 = vunpack.c.l.b16 %v149
  %v1179 = vunpack.c.h.b16 %v149
  %v1180 = vunpack.c.l.b16 %v150
  %v1181 = vunpack.c.h.b16 %v150
  %v1182 = vunpack.c.l.b16 %v151
  %v1183 = vunpack.c.h.b16 %v151
  %v1184 = vunpack.c.l.b16 %v152
  %v1185 = vunpack.c.h.b16 %v152
  %v1186 = vunpack.c.l.b16 %v153
  %v1187 = vunpack.c.h.b16 %v153
  %v1188 = vunpack.c.l.b16 %v154
  %v1189 = vunpack.c.h.b16 %v154
  %v1190 = vunpack.c.l.b16 %v155
  %v1191 = vunpack.c.h.b16 %v155
  %v1192 = vunpack.c.l.b16 %v156
  %v1193 = vunpack.c.h.b16 %v156
  %v1194 = vunpack.c.l.b16 %v157
  %v1195 = vunpack.c.h.b16 %v157
  %v1196 = vunpack.c.l.b16 %v158
  %v1197 = vunpack.c.h.b16 %v158
  %v1198 = vunpack.c.l.b16 %v159
  %v1199 = vunpack.c.h.b16 %v159
  %v1200 = vunpack.c.l.b16 %v160
  %v1201 = vunpack.c.h.b16 %v160
  %v1202 = vunpack.c.l.b16 %v161
  %v1203 = vunpack.c.h.b16 %v161
  %v1204 = vunpack.c.l.b16 %v162
  %v1205 = vunpack.c.h.b16 %v162
  %v1206 = vunpack.c.l.b16 %v163
  %v1207 = vunpack.c.h.b16 %v163
  %v1208 = vunpack.c.l.b16 %v164
  %v1209 = vunpack.c.h.b16 %v164
  %v1210 = vunpack.c.l.b16 %v165
  %v1211 = vunpack.c.h.b16 %v165
  %v1212 = vunpack.c.l.b16 %v166
  %v1213 = vunpack.c.h.b16 %v166
  %v1214 = vunpack.c.l.b16 %v167
  %v1215 = vunpack.c.h.b16 %v167
  %v1216 = vunpack.c.l.b16 %v168
  %v1217 = vunpack.c.h.b16 %v168
  %v1218 = vunpack.c.l.b16 %v169
  %v1219 = vunpack.c.h.b16 %v169
  %v1220 = vunpack.c.l.b16 %v170
  %v1221 = vunpack.c.h.b16 %v170
  %v1222 = vunpack.c.l.b16 %v171
  %v1223 = vunpack.c.h.b16 %v171
  %v1224 = vunpack.c.l.b16 %v172
  %v1225 = vunpack.c.h.b16 %v172
  %v1226 = vunpack.c.l.b16 %v173
  %v1227 = vunpack.c.h.b16 %v173
  %v1228 = vunpack.c.l.b16 %v174
  %v1229 = vunpack.c.h.b16 %v174
  %v1230 = vunpack.c.l.b16 %v175
  %v1231 = vunpack.c.h.b16 %v175
  %v1232 = vunpack.c.l.b16 %v176
  %v1233 = vunpack.c.h.b16 %v176
  %v1234 = vunpack.c.l.b16 %v177
  %v1235 = vunpack.c.h.b16 %v177
  %v1236 = vunpack.c.l.b16 %v178
  %v1237 = vunpack.c.h.b16 %v178
  %v1238 = vunpack.c.l.b16 %v179
  %v1239 = vunpack.c.h.b16 %v179
  %v1240 = vunpack.c.l.b16 %v180
  %v1241 = vunpack.c.h.b16 %v180
  %v1242 = vunpack.c.l.b16 %v181
  %v1243 = vunpack.c.h.b16 %v181
  %v1244 = vunpack.c.l.b16 %v182
  %v1245 = vunpack.c.h.b16 %v182
  %v1246 = vunpack.c.l.b16 %v183
  %v1247 = vunpack.c.h.b16 %v183
  %v1248 = vunpack.c.l.b16 %v184
  %v1249 = vunpack.c.h.b16 %v184
  %v1250 = vunpack.c.l.b16 %v185
  %v1251 = vunpack.c.h.b16 %v185
  %v1252 = vunpack.c.l.b16 %v186
  %v1253 = vunpack.c.h.b16 %v186
  %v1254 = vunpack.c.l.b16 %v187
  %v1255 = vunpack.c.h.b16 %v187
  %v1256 = vunpack.c.l.b16 %v188
  %v1257 = vunpack.c.h.b16 %v188
  %v1258 = vunpack.c.l.b16 %v189
  %v1259 = vunpack.c.h.b16 %v189
  %v1260 = vunpack.c.l.b16 %v190
  %v1261 = vunpack.c.h.b16 %v190
  %v1262 = vunpack.c.l.b16 %v191
  %v1263 = vunpack.c.h.b16 %v191
  %v1264 = vunpack.c.l.b16 %v192
  %v1265 = vunpack.c.h.b16 %v192
  %v1266 = vunpack.c.l.b16 %v193
  %v1267 = vunpack.c.h.b16 %v193
  %v1268 = vunpack.c.l.b16 %v194
  %v1269 = vunpack.c.h.b16 %v194
  %v1270 = vunpack.c.l.b16 %v195
  %v1271 = vunpack.c.h.b16 %v195
  %v1272 = vunpack.c.l.b16 %v196
  %v1273 = vunpack.c.h.b16 %v196
  %v1274 = vunpack.c.l.b16 %v197
  %v1275 = vunpack.c.h.b16 %v197
  %v1276 = vunpack.c.l.b16 %v198
  %v1277 = vunpack.c.h.b16 %v198
  %v1278 = vunpack.c.l.b16 %v199
  %v1279 = vunpack.c.h.b16 %v199
  %v1280 = vunpack.c.l.b16 %v200
  %v1281 = vunpack.c.h.b16 %v200
  %v1282 = vunpack.c.l.b16 %v201
  %v1283 = vunpack.c.h.b16 %v201
  %v1284 = vunpack.c.l.b16 %v202
  %v1285 = vunpack.c.h.b16 %v202
  %v1286 = vunpack.c.l.b16 %v203
  %v1287 = vunpack.c.h.b16 %v203
  %v1288 = vunpack.c.l.b16 %v204
  %v1289 = vunpack.c.h.b16 %v204
  %v1290 = vunpack.c.l.b16 %v205
  %v1291 = vunpack.c.h.b16 %v205
  %v1292 = vunpack.c.l.b16 %v206
  %v1293 = vunpack.c.h.b16 %v206
  %v1294 = vunpack.c.l.b16 %v207
  %v1295 = vunpack.c.h.b16 %v207
  %v1296 = vunpack.c.l.b16 %v208
  %v1297 = vunpack.c.h.b16 %v208
  %v1298 = vunpack.c.l.b16 %v209
  %v1299 = vunpack.c.h.b16 %v209
  %v1300 = vunpack.c.l.b16 %v210
  %v1301 = vunpack.c.h.b16 %v210
  %v1302 = vunpack.c.l.b16 %v211
  %v1303 = vunpack.c.h.b16 %v211
  %v1304 = vunpack.c.l.b16 %v212
  %v1305 = vunpack.c.h.b16 %v212
  %v1306 = vunpack.c.l.b16 %v213
  %v1307 = vunpack.c.h.b16 %v213
  %v1308 = vunpack.c.l.b16 %v214
  %v1309 = vunpack.c.h.b16 %v214
  %v1310 = vunpack.c.l.b16 %v215
  %v1311 = vunpack.c.h.b16 %v215
  %v1312 = vunpack.c.l.b16 %v216
  %v1313 = vunpack.c.h.b16 %v216
  %v1314 = vunpack.c.l.b16 %v217
  %v1315 = vunpack.c.h.b16 %v217
  %v1316 = vunpack.c.l.b16 %v218
  %v1317 = vunpack.c.h.b16 %v218
  %v1318 = vunpack.c.l.b16 %v219
  %v1319 = vunpack.c.h.b16 %v219
  %v1320 = vunpack.c.l.b16 %v220
  %v1321 = vunpack.c.h.b16 %v220
  %v1322 = vunpack.c.l.b16 %v221
  %v1323 = vunpack.c.h.b16 %v221
  %v1324 = vunpack.c.l.b16 %v222
  %v1325 = vunpack.c.h.b16 %v222
  %v1326 = vunpack.c.l.b16 %v223
  %v1327 = vunpack.c.h.b16 %v223
  %v1328 = vunpack.c.l.b16 %v224
  %v1329 = vunpack.c.h.b16 %v224
  %v1330 = vunpack.c.l.b16 %v225
  %v1331 = vunpack.c.h.b16 %v225
  %v1332 = vunpack.c.l.b16 %v226
  %v1333 = vunpack.c.h.b16 %v226
  %v1334 = vunpack.c.l.b16 %v227
  %v1335 = vunpack.c.h.b16 %v227
  %v1336 = vunpack.c.l.b16 %v228
  %v1337 = vunpack.c.h.b16 %v228
  %v1338 = vunpack.c.l.b16 %v229
  %v1339 = vunpack.c.h.b16 %v229
  %v1340 = vunpack.c.l.b16 %v230
  %v1341 = vunpack.c.h.b16 %v230
  %v1342 = vunpack.c.l.b16 %v231
  %v1343 = vunpack.c.h.b16 %v231
  %v1344 = vunpack.c.l.b16 %v232
  %v1345 = vunpack.c.h.b16 %v232
  %v1346 = vunpack.c.l.b16 %v233
  %v1347 = vunpack.c.h.b16 %v233
  %v1348 = vunpack.c.l.b16 %v234
  %v1349 = vunpack.c.h.b16 %v234
  %v1350 = vunpack.c.l.b16 %v235
  %v1351 = vunpack.c.h.b16 %v235
  %v1352 = vunpack.c.l.b16 %v236
  %v1353 = vunpack.c.h.b16 %v236
  %v1354 = vunpack.c.l.b16 %v237
  %v1355 = vunpack.c.h.b16 %v237
  %v1356 = vunpack.c.l.b16 %v238
  %v1357 = vunpack.c.h.b16 %v238
  %v1358 = vunpack.c.l.b16 %v239
  %v1359 = vunpack.c.h.b16 %v239
  %v1360 = vunpack.c.l.b16 %v240
  %v1361 = vunpack.c.h.b16 %v240
  %v1362 = vunpack.c.l.b16 %v241
  %v1363 = vunpack.c.h.b16 %v241
  %v1364 = vunpack.c.l.b16 %v242
  %v1365 = vunpack.c.h.b16 %v242
  %v1366 = vunpack.c.l.b16 %v243
  %v1367 = vunpack.c.h.b16 %v243
  %v1368 = vunpack.c.l.b16 %v244
  %v1369 = vunpack.c.h.b16 %v244
  %v1370 = vunpack.c.l.b16 %v245
  %v1371 = vunpack.c.h.b16 %v245
  %v1372 = vunpack.c.l.b16 %v246
  %v1373 = vunpack.c.h.b16 %v246
  %v1374 = vunpack.c.l.b16 %v247
  %v1375 = vunpack.c.h.b16 %v247
  %v1376 = vunpack.c.l.b16 %v248
  %v1377 = vunpack.c.h.b16 %v248
  %v1378 = vunpack.c.l.b16 %v249
  %v1379 = vunpack.c.h.b16 %v249
  %v1380 = vunpack.c.l.b16 %v250
  %v1381 = vunpack.c.h.b16 %v250
  %v1382 = vunpack.c.l.b16 %v251
  %v1383 = vunpack.c.h.b16 %v251
  %v1384 = vunpack.c.l.b16 %v252
  %v1385 = vunpack.c.h.b16 %v252
  %v1386 = vunpack.c.l.b16 %v253
  %v1387 = vunpack.c.h.b16 %v253
  %v1388 = vunpack.c.l.b16 %v254
  %v1389 = vunpack.c.h.b16 %v254
  %v1390 = vunpack.c.l.b16 %v255
  %v1391 = vunpack.c.h.b16 %v255
  %v1392 = vunpack.c.l.b16 %v256
  %v1393 = vunpack.c.h.b16 %v256
  %v1394 = vunpack.c.l.b16 %v257
  %v1395 = vunpack.c.h.b16 %v257
  %v1396 = vunpack.c.l.b16 %v258
  %v1397 = vunpack.c.h.b16 %v258
  %v1398 = vunpack.c.l.b16 %v259
  %v1399 = vunpack.c.h.b16 %v259
  %v1400 = vunpack.c.l.b16 %v260
  %v1401 = vunpack.c.h.b16 %v260
  %v1402 = vunpack.c.l.b16 %v261
  %v1403 = vunpack.c.h.b16 %v261
  %v1404 = vunpack.c.l.b16 %v262
  %v1405 = vunpack.c.h.b16 %v262
  %v1406 = vunpack.c.l.b16 %v263
  %v1407 = vunpack.c.h.b16 %v263
  %v1408 = vunpack.c.l.b16 %v264
  %v1409 = vunpack.c.h.b16 %v264
  %v1410 = vunpack.c.l.b16 %v265
  %v1411 = vunpack.c.h.b16 %v265
  %v1412 = vunpack.c.l.b16 %v266
  %v1413 = vunpack.c.h.b16 %v266
  %v1414 = vunpack.c.l.b16 %v267
  %v1415 = vunpack.c.h.b16 %v267
  %v1416 = vunpack.c.l.b16 %v268
  %v1417 = vunpack.c.h.b16 %v268
  %v1418 = vunpack.c.l.b16 %v269
  %v1419 = vunpack.c.h.b16 %v269
  %v1420 = vunpack.c.l.b16 %v270
  %v1421 = vunpack.c.h.b16 %v270
  %v1422 = vunpack.c.l.b16 %v271
  %v1423 = vunpack.c.h.b16 %v271
  %v1424 = vunpack.c.l.b16 %v272
  %v1425 = vunpack.c.h.b16 %v272
  %v1426 = vunpack.c.l.b16 %v273
  %v1427 = vunpack.c.h.b16 %v273
  %v1428 = vunpack.c.l.b16 %v274
  %v1429 = vunpack.c.h.b16 %v274
  %v1430 = vunpack.c.l.b16 %v275
  %v1431 = vunpack.c.h.b16 %v275
  %v1432 = vunpack.c.l.b16 %v276
  %v1433 = vunpack.c.h.b16 %v276
  %v1434 = vunpack.c.l.b16 %v277
  %v1435 = vunpack.c.h.b16 %v277
  %v1436 = vunpack.c.l.b16 %v278
  %v1437 = vunpack.c.h.b16 %v278
  %v1438 = vunpack.c.l.b16 %v279
  %v1439 = vunpack.c.h.b16 %v279
  %v1440 = vunpack.c.l.b16 %v280
  %v1441 = vunpack.c.h.b16 %v280
  %v1442 = vunpack.c.l.b16 %v281
  %v1443 = vunpack.c.h.b16 %v281
  %v1444 = vunpack.c.l.b16 %v282
  %v1445 = vunpack.c.h.b16 %v282
  %v1446 = vunpack.c.l.b16 %v283
  %v1447 = vunpack.c.h.b16 %v283
  %v1448 = vunpack.c.l.b16 %v284
  %v1449 = vunpack.c.h.b16 %v284
  %v1450 = vunpack.c.l.b16 %v285
  %v1451 = vunpack.c.h.b16 %v285
  %v1452 = vunpack.c.l.b16 %v286
  %v1453 = vunpack.c.h.b16 %v286
  %v1454 = vunpack.c.l.b16 %v287
  %v1455 = vunpack.c.h.b16 %v287
  %v1456 = vunpack.c.l.b16 %v288
  %v1457 = vunpack.c.h.b16 %v288
  %v1458 = vunpack.c.l.b16 %v289
  %v1459 = vunpack.c.h.b16 %v289
  %v1460 = vunpack.c.l.b16 %v290
  %v1461 = vunpack.c.h.b16 %v290
  %v1462 = vunpack.c.l.b16 %v291
  %v1463 = vunpack.c.h.b16 %v291
  %v1464 = vunpack.c.l.b16 %v292
  %v1465 = vunpack.c.h.b16 %v292
  %v1466 = vunpack.c.l.b16 %v293
  %v1467 = vunpack.c.h.b16 %v293
  %v1468 = vunpack.c.l.b16 %v294
  %v1469 = vunpack.c.h.b16 %v294
  %v1470 = vunpack.c.l.b16 %v295
  %v1471 = vunpack.c.h.b16 %v295
  %v1472 = vunpack.c.l.b16 %v296
  %v1473 = vunpack.c.h.b16 %v296
  %v1474 = vunpack.c.l.b16 %v297
  %v1475 = vunpack.c.h.b16 %v297
  %v1476 = vunpack.c.l.b16 %v298
  %v1477 = vunpack.c.h.b16 %v298
  %v1478 = vunpack.c.l.b16 %v299
  %v1479 = vunpack.c.h.b16 %v299
  %v1480 = vunpack.c.l.b16 %v300
  %v1481 = vunpack.c.h.b16 %v300
  %v1482 = vunpack.c.l.b16 %v301
  %v1483 = vunpack.c.h.b16 %v301
  %v1484 = vunpack.c.l.b16 %v302
  %v1485 = vunpack.c.h.b16 %v302
  %v1486 = vunpack.c.l.b16 %v303
  %v1487 = vunpack.c.h.b16 %v303
  %v1488 = vunpack.c.l.b16 %v304
  %v1489 = vunpack.c.h.b16 %v304
  %v1490 = vunpack.c.l.b16 %v305
  %v1491 = vunpack.c.h.b16 %v305
  %v1492 = vunpack.c.l.b16 %v306
  %v1493 = vunpack.c.h.b16 %v306
  %v1494 = vunpack.c.l.b16 %v307
  %v1495 = vunpack.c.h.b16 %v307
  %v1496 = vunpack.c.l.b16 %v308
  %v1497 = vunpack.c.h.b16 %v308
  %v1498 = vunpack.c.l.b16 %v309
  %v1499 = vunpack.c.h.b16 %v309
  %v1500 = vunpack.c.l.b16 %v310
  %v1501 = vunpack.c.h.b16 %v310
  %v1502 = vunpack.c.l.b16 %v311
  %v1503 = vunpack.c.h.b16 %v311
  %v1504 = vunpack.c.l.b16 %v312
  %v1505 = vunpack.c.h.b16 %v312
  %v1506 = vunpack.c.l.b16 %v313
  %v1507 = vunpack.c.h.b16 %v313
  %v1508 = vunpack.c.l.b16 %v314
  %v1509 = vunpack.c.h.b16 %v314
  %v1510 = vunpack.c.l.b16 %v315
  %v1511 = vunpack.c.h.b16 %v315
  %v1512 = vunpack.c.l.b16 %v316
  %v1513 = vunpack.c.h.b16 %v316
  %v1514 = vunpack.c.l.b16 %v317
  %v1515 = vunpack.c.h.b16 %v317
  %v1516 = vunpack.c.l.b16 %v318
  %v1517 = vunpack.c.h.b16 %v318
  %v1518 = vunpack.c.l.b16 %v319
  %v1519 = vunpack.c.h.b16 %v319
  %v1520 = vunpack.c.l.b16 %v320
  %v1521 = vunpack.c.h.b16 %v320
  %v1522 = vunpack.c.l.b16 %v321
  %v1523 = vunpack.c.h.b16 %v321
  %v1524 = vunpack.c.l.b16 %v322
  %v1525 = vunpack.c.h.b16 %v322
  %v1526 = vunpack.c.l.b16 %v323
  %v1527 = vunpack.c.h.b16 %v323
  %v1528 = vunpack.c.l.b16 %v324
  %v1529 = vunpack.c.h.b16 %v324
  %v1530 = vunpack.c.l.b16 %v325
  %v1531 = vunpack.c.h.b16 %v325
  %v1532 = vunpack.c.l.b16 %v326
  %v1533 = vunpack.c.h.b16 %v326
  %v1534 = vunpack.c.l.b16 %v327
  %v1535 = vunpack.c.h.b16 %v327
  %v1536 = vunpack.c.l.b16 %v328
  %v1537 = vunpack.c.h.b16 %v328
  %v1538 = vunpack.c.l.b16 %v329
  %v1539 = vunpack.c.h.b16 %v329
  %v1540 = vunpack.c.l.b16 %v330
  %v1541 = vunpack.c.h.b16 %v330
  %v1542 = vunpack.c.l.b16 %v331
  %v1543 = vunpack.c.h.b16 %v331
  %v1544 = vunpack.c.l.b16 %v332
  %v1545 = vunpack.c.h.b16 %v332
  %v1546 = vunpack.c.l.b16 %v333
  %v1547 = vunpack.c.h.b16 %v333
  %v1548 = vunpack.c.l.b16 %v334
  %v1549 = vunpack.c.h.b16 %v334
  %v1550 = vunpack.c.l.b16 %v335
  %v1551 = vunpack.c.h.b16 %v335
  %v1552 = vunpack.c.l.b16 %v336
  %v1553 = vunpack.c.h.b16 %v336
  %v1554 = vunpack.c.l.b16 %v337
  %v1555 = vunpack.c.h.b16 %v337
  %v1556 = vunpack.c.l.b16 %v338
  %v1557 = vunpack.c.h.b16 %v338
  %v1558 = vunpack.c.l.b16 %v339
  %v1559 = vunpack.c.h.b16 %v339
  %v1560 = vunpack.c.l.b16 %v340
  %v1561 = vunpack.c.h.b16 %v340
  %v1562 = vunpack.c.l.b16 %v341
  %v1563 = vunpack.c.h.b16 %v341
  %v1564 = vunpack.c.l.b16 %v342
  %v1565 = vunpack.c.h.b16 %v342
  %v1566 = vunpack.c.l.b16 %v343
  %v1567 = vunpack.c.h.b16 %v343
  %v1568 = vunpack.c.l.b16 %v344
  %v1569 = vunpack.c.h.b16 %v344
  %v1570 = vunpack.c.l.b16 %v345
  %v1571 = vunpack.c.h.b16 %v345
  %v1572 = vunpack.c.l.b16 %v346
  %v1573 = vunpack.c.h.b16 %v346
  %v1574 = vunpack.c.l.b16 %v347
  %v1575 = vunpack.c.h.b16 %v347
  %v1576 = vunpack.c.l.b16 %v348
  %v1577 = vunpack.c.h.b16 %v348
  %v1578 = vunpack.c.l.b16 %v349
  %v1579 = vunpack.c.h.b16 %v349
  %v1580 = vunpack.c.l.b16 %v350
  %v1581 = vunpack.c.h.b16 %v350
  %v1582 = vunpack.c.l.b16 %v351
  %v1583 = vunpack.c.h.b16 %v351
  %v1584 = vunpack.c.l.b16 %v352
  %v1585 = vunpack.c.h.b16 %v352
  %v1586 = vunpack.c.l.b16 %v353
  %v1587 = vunpack.c.h.b16 %v353
  %v1588 = vunpack.c.l.b16 %v354
  %v1589 = vunpack.c.h.b16 %v354
  %v1590 = vunpack.c.l.b16 %v355
  %v1591 = vunpack.c.h.b16 %v355
  %v1592 = vunpack.c.l.b16 %v356
  %v1593 = vunpack.c.h.b16 %v356
  %v1594 = vunpack.c.l.b16 %v357
  %v1595 = vunpack.c.h.b16 %v357
  %v1596 = vunpack.c.l.b16 %v358
  %v1597 = vunpack.c.h.b16 %v358
  %v1598 = vunpack.c.l.b16 %v359
  %v1599 = vunpack.c.h.b16 %v359
  %v1600 = vunpack.c.l.b16 %v360
  %v1601 = vunpack.c.h.b16 %v360
  %v1602 = vunpack.c.l.b16 %v361
  %v1603 = vunpack.c.h.b16 %v361
  %v1604 = vunpack.c.l.b16 %v362
  %v1605 = vunpack.c.h.b16 %v362
  %v1606 = vunpack.c.l.b16 %v363
  %v1607 = vunpack.c.h.b16 %v363
  %v1608 = vunpack.c.l.b16 %v364
  %v1609 = vunpack.c.h.b16 %v364
  %v1610 = vunpack.c.l.b16 %v365
  %v1611 = vunpack.c.h.b16 %v365
  %v1612 = vunpack.c.l.b16 %v366
  %v1613 = vunpack.c.h.b16 %v366
  %v1614 = vunpack.c.l.b16 %v367
  %v1615 = vunpack.c.h.b16 %v367
  %v1616 = vunpack.c.l.b16 %v368
  %v1617 = vunpack.c.h.b16 %v368
  %v1618 = vunpack.c.l.b16 %v369
  %v1619 = vunpack.c.h.b16 %v369
  %v1620 = vunpack.c.l.b16 %v370
  %v1621 = vunpack.c.h.b16 %v370
  %v1622 = vunpack.c.l.b16 %v371
  %v1623 = vunpack.c.h.b16 %v371
  %v1624 = vunpack.c.l.b16 %v372
  %v1625 = vunpack.c.h.b16 %v372
  %v1626 = vunpack.c.l.b16 %v373
  %v1627 = vunpack.c.h.b16 %v373
  %v1628 = vunpack.c.l.b16 %v374
  %v1629 = vunpack.c.h.b16 %v374
  %v1630 = vunpack.c.l.b16 %v375
  %v1631 = vunpack.c.h.b16 %v375
  %v1632 = vunpack.c.l.b16 %v376
  %v1633 = vunpack.c.h.b16 %v376
  %v1634 = vunpack.c.l.b16 %v377
  %v1635 = vunpack.c.h.b16 %v377
  %v1636 = vunpack.c.l.b16 %v378
  %v1637 = vunpack.c.h.b16 %v378
  %v1638 = vunpack.c.l.b16 %v379
  %v1639 = vunpack.c.h.b16 %v379
  %v1640 = vunpack.c.l.b16 %v380
  %v1641 = vunpack.c.h.b16 %v380
  %v1642 = vunpack.c.l.b16 %v381
  %v1643 = vunpack.c.h.b16 %v381
  %v1644 = vunpack.c.l.b16 %v382
  %v1645 = vunpack.c.h.b16 %v382
  %v1646 = vunpack.c.l.b16 %v383
  %v1647 = vunpack.c.h.b16 %v383
  %v1648 = vunpack.c.l.b16 %v384
  %v1649 = vunpack.c.h.b16 %v384
  %v1650 = vunpack.c.l.b16 %v385
  %v1651 = vunpack.c.h.b16 %v385
  %v1652 = vunpack.c.l.b16 %v386
  %v1653 = vunpack.c.h.b16 %v386
  %v1654 = vunpack.c.l.b16 %v387
  %v1655 = vunpack.c.h.b16 %v387
  %v1656 = vunpack.c.l.b16 %v388
  %v1657 = vunpack.c.h.b16 %v388
  %v1658 = vunpack.c.l.b16 %v389
  %v1659 = vunpack.c.h.b16 %v389
  %v1660 = vunpack.c.l.b16 %v390
  %v1661 = vunpack.c.h.b16 %v390
  %v1662 = vunpack.c.l.b16 %v391
  %v1663 = vunpack.c.h.b16 %v391
  %v1664 = vunpack.c.l.b16 %v392
  %v1665 = vunpack.c.h.b16 %v392
  %v1666 = vunpack.c.l.b16 %v393
  %v1667 = vunpack.c.h.b16 %v393
  %v1668 = vunpack.c.l.b16 %v394
  %v1669 = vunpack.c.h.b16 %v394
  %v1670 = vunpack.c.l.b16 %v395
  %v1671 = vunpack.c.h.b16 %v395
  %v1672 = vunpack.c.l.b16 %v396
  %v1673 = vunpack.c.h.b16 %v396
  %v1674 = vunpack.c.l.b16 %v397
  %v1675 = vunpack.c.h.b16 %v397
  %v1676 = vunpack.c.l.b16 %v398
  %v1677 = vunpack.c.h.b16 %v398
  %v1678 = vunpack.c.l.b16 %v399
  %v1679 = vunpack.c.h.b16 %v399
  %v1680 = vunpack.c.l.b16 %v400
  %v1681 = vunpack.c.h.b16 %v400
  %v1682 = vunpack.c.l.b16 %v401
  %v1683 = vunpack.c.h.b16 %v401
  %v1684 = vunpack.c.l.b16 %v402
  %v1685 = vunpack.c.h.b16 %v402
  %v1686 = vunpack.c.l.b16 %v403
  %v1687 = vunpack.c.h.b16 %v403
  %v1688 = vunpack.c.l.b16 %v404
  %v1689 = vunpack.c.h.b16 %v404
  %v1690 = vunpack.c.l.b16 %v405
  %v1691 = vunpack.c.h.b16 %v405
  %v1692 = vunpack.c.l.b16 %v406
  %v1693 = vunpack.c.h.b16 %v406
  %v1694 = vunpack.c.l.b16 %v407
  %v1695 = vunpack.c.h.b16 %v407
  %v1696 = vunpack.c.l.b16 %v408
  %v1697 = vunpack.c.h.b16 %v408
  %v1698 = vunpack.c.l.b16 %v409
  %v1699 = vunpack.c.h.b16 %v409
  %v1700 = vunpack.c.l.b16 %v410
  %v1701 = vunpack.c.h.b16 %v410
  %v1702 = vunpack.c.l.b16 %v411
  %v1703 = vunpack.c.h.b16 %v411
  %v1704 = vunpack.c.l.b16 %v412
  %v1705 = vunpack.c.h.b16 %v412
  %v1706 = vunpack.c.l.b16 %v413
  %v1707 = vunpack.c.h.b16 %v413
  %v1708 = vunpack.c.l.b16 %v414
  %v1709 = vunpack.c.h.b16 %v414
  %v1710 = vunpack.c.l.b16 %v415
  %v1711 = vunpack.c.h.b16 %v415
  %v1712 = vunpack.c.l.b16 %v416
  %v1713 = vunpack.c.h.b16 %v416
  %v1714 = vunpack.c.l.b16 %v417
  %v1715 = vunpack.c.h.b16 %v417
  %v1716 = vunpack.c.l.b16 %v418
  %v1717 = vunpack.c.h.b16 %v418
  %v1718 = vunpack.c.l.b16 %v419
  %v1719 = vunpack.c.h.b16 %v419
  %v1720 = vunpack.c.l.b16 %v420
  %v1721 = vunpack.c.h.b16 %v420
  %v1722 = vunpack.c.l.b16 %v421
  %v1723 = vunpack.c.h.b16 %v421
  %v1724 = vunpack.c.l.b16 %v422
  %v1725 = vunpack.c.h.b16 %v422
  %v1726 = vunpack.c.l.b16 %v423
  %v1727 = vunpack.c.h.b16 %v423
  %v1728 = vunpack.c.l.b16 %v424
  %v1729 = vunpack.c.h.b16 %v424
  %v1730 = vunpack.c.l.b16 %v425
  %v1731 = vunpack.c.h.b16 %v425
  %v1732 = vunpack.c.l.b16 %v426
  %v1733 = vunpack.c.h.b16 %v426
  %v1734 = vunpack.c.l.b16 %v427
  %v1735 = vunpack.c.h.b16 %v427
  %v1736 = vunpack.c.l.b16 %v428
  %v1737 = vunpack.c.h.b16 %v428
  %v1738 = vunpack.c.l.b16 %v429
  %v1739 = vunpack.c.h.b16 %v429
  %v1740 = vunpack.c.l.b16 %v430
  %v1741 = vunpack.c.h.b16 %v430
  %v1742 = vunpack.c.l.b16 %v431
  %v1743 = vunpack.c.h.b16 %v431
  %v1744 = vunpack.c.l.b16 %v432
  %v1745 = vunpack.c.h.b16 %v432
  %v1746 = vunpack.c.l.b16 %v433
  %v1747 = vunpack.c.h.b16 %v433
  %v1748 = vunpack.c.l.b16 %v434
  %v1749 = vunpack.c.h.b16 %v434
  %v1750 = vunpack.c.l.b16 %v435
  %v1751 = vunpack.c.h.b16 %v435
  %v1752 = vunpack.c.l.b16 %v436
  %v1753 = vunpack.c.h.b16 %v436
  %v1754 = vunpack.c.l.b16 %v437
  %v1755 = vunpack.c.h.b16 %v437
  %v1756 = vunpack.c.l.b16 %v438
  %v1757 = vunpack.c.h.b16 %v438
  %v1758 = vunpack.c.l.b16 %v439
  %v1759 = vunpack.c.h.b16 %v439
  %v1760 = vunpack.c.l.b16 %v440
  %v1761 = vunpack.c.h.b16 %v440
  %v1762 = vunpack.c.l.b16 %v441
  %v1763 = vunpack.c.h.b16 %v441
  %v1764 = vunpack.c.l.b16 %v442
  %v1765 = vunpack.c.h.b16 %v442
  %v1766 = vunpack.c.l.b16 %v443
  %v1767 = vunpack.c.h.b16 %v443
  %v1768 = vunpack.c.l.b16 %v444
  %v1769 = vunpack.c.h.b16 %v444
  %v1770 = vunpack.c.l.b16 %v445
  %v1771 = vunpack.c.h.b16 %v445
  %v1772 = vunpack.c.l.b16 %v446
  %v1773 = vunpack.c.h.b16 %v446
  %v1774 = vunpack.c.l.b16 %v447
  %v1775 = vunpack.c.h.b16 %v447
  %v1776 = vunpack.c.l.b16 %v448
  %v1777 = vunpack.c.h.b16 %v448
  %v1778 = vunpack.c.l.b16 %v449
  %v1779 = vunpack.c.h.b16 %v449
  %v1780 = vunpack.c.l.b16 %v450
  %v1781 = vunpack.c.h.b16 %v450
  %v1782 = vunpack.c.l.b16 %v451
  %v1783 = vunpack.c.h.b16 %v451
  %v1784 = vpack.c.b16 %v986, %v984
  %v1785 = vpack.c.b16 %v987, %v985
  %v1786 = vpack.c.b16 %v990, %v988
  %v1787 = vpack.c.b16 %v991, %v989
  %v1788 = vpack.c.b16 %v994, %v992
  %v1789 = vpack.c.b16 %v995, %v993
  %v1790 = vpack.c.b16 %v998, %v996
  %v1791 = vpack.c.b16 %v999, %v997
  %v1792 = vpack.c.b16 %v1002, %v1000
  %v1793 = vpack.c.b16 %v1003, %v1001
  %v1794 = vpack.c.b16 %v1006, %v1004
  %v1795 = vpack.c.b16 %v1007, %v1005
  %v1796 = vpack.c.b16 %v1010, %v1008
  %v1797 = vpack.c.b16 %v1011, %v1009
  %v1798 = vpack.c.b16 %v1014, %v1012
  %v1799 = vpack.c.b16 %v1015, %v1013
  %v1800 = vpack.c.b16 %v1018, %v1016
  %v1801 = vpack.c.b16 %v1019, %v1017
  %v1802 = vpack.c.b16 %v1022, %v1020
  %v1803 = vpack.c.b16 %v1023, %v1021
  %v1804 = vpack.c.b16 %v1026, %v1024
  %v1805 = vpack.c.b16 %v1027, %v1025
  %v1806 = vpack.c.b16 %v1030, %v1028
  %v1807 = vpack.c.b16 %v1031, %v1029
  %v1808 = vpack.c.b16 %v1034, %v1032
  %v1809 = vpack.c.b16 %v1035, %v1033
  %v1810 = vpack.c.b16 %v1038, %v1036
  %v1811 = vpack.c.b16 %v1039, %v1037
  %v1812 = vpack.c.b16 %v1042, %v1040
  %v1813 = vpack.c.b16 %v1043, %v1041
  %v1814 = vpack.c.b16 %v1046, %v1044
  %v1815 = vpack.c.b16 %v1047, %v1045
  %v1816 = vpack.c.b16 %v1050, %v1048
  %v1817 = vpack.c.b16 %v1051, %v1049
  %v1818 = vpack.c.b16 %v1054, %v1052
  %v1819 = vpack.c.b16 %v1055, %v1053
  %v1820 = vpack.c.b16 %v1058, %v1056
  %v1821 = vpack.c.b16 %v1059, %v1057
  %v1822 = vpack.c.b16 %v1062, %v1060
  %v1823 = vpack.c.b16 %v1063, %v1061
  %v1824 = vpack.c.b16 %v1066, %v1064
  %v1825 = vpack.c.b16 %v1067, %v1065
  %v1826 = vpack.c.b16 %v1070, %v1068
  %v1827 = vpack.c.b16 %v1071, %v1069
  %v1828 = vpack.c.b16 %v1074, %v1072
  %v1829 = vpack.c.b16 %v1075, %v1073
  %v1830 = vpack.c.b16 %v1078, %v1076
  %v1831 = vpack.c.b16 %v1079, %v1077
  %v1832 = vpack.c.b16 %v1082, %v1080
  %v1833 = vpack.c.b16 %v1083, %v1081
  %v1834 = vpack.c.b16 %v1086, %v1084
  %v1835 = vpack.c.b16 %v1087, %v1085
  %v1836 = vpack.c.b16 %v1090, %v1088
  %v1837 = vpack.c.b16 %v1091, %v1089
  %v1838 = vpack.c.b16 %v1094, %v1092
  %v1839 = vpack.c.b16 %v1095, %v1093
  %v1840 = vpack.c.b16 %v1098, %v1096
  %v1841 = vpack.c.b16 %v1099, %v1097
  %v1842 = vpack.c.b16 %v1102, %v1100
  %v1843 = vpack.c.b16 %v1103, %v1101
  %v1844 = vpack.c.b16 %v1106, %v1104
  %v1845 = vpack.c.b16 %v1107, %v1105
  %v1846 = vpack.c.b16 %v1110, %v1108
  %v1847 = vpack.c.b16 %v1111, %v1109
  %v1848 = vpack.c.b16 %v1114, %v1112
  %v1849 = vpack.c.b16 %v1115, %v1113
  %v1850 = vpack.c.b16 %v1118, %v1116
  %v1851 = vpack.c.b16 %v1119, %v1117
  %v1852 = vpack.c.b16 %v1122, %v1120
  %v1853 = vpack.c.b16 %v1123, %v1121
  %v1854 = vpack.c.b16 %v1126, %v1124
  %v1855 = vpack.c.b16 %v1127, %v1125
  %v1856 = vpack.c.b16 %v1130, %v1128
  %v1857 = vpack.c.b16 %v1131, %v1129
  %v1858 = vpack.c.b16 %v1134, %v1132
  %v1859 = vpack.c.b16 %v1135, %v1133
  %v1860 = vpack.c.b16 %v1138, %v1136
  %v1861 = vpack.c.b16 %v1139, %v1137
  %v1862 = vpack.c.b16 %v1142, %v1140
  %v1863 = vpack.c.b16 %v1143, %v1141
  %v1864 = vpack.c.b16 %v1146, %v1144
  %v1865 = vpack.c.b16 %v1147, %v1145
  %v1866 = vpack.c.b16 %v1150, %v1148
  %v1867 = vpack.c.b16 %v1151, %v1149
  %v1868 = vpack.c.b16 %v1154, %v1152
  %v1869 = vpack.c.b16 %v1155, %v1153
  %v1870 = vpack.c.b16 %v1158, %v1156
  %v1871 = vpack.c.b16 %v1159, %v1157
  %v1872 = vpack.c.b16 %v1162, %v1160
  %v1873 = vpack.c.b16 %v1163, %v1161
  %v1874 = vpack.c.b16 %v1166, %v1164
  %v1875 = vpack.c.b16 %v1167, %v1165
  %v1876 = vpack.c.b16 %v1170, %v1168
  %v1877 = vpack.c.b16 %v1171, %v1169
  %v1878 = vpack.c.b16 %v1174, %v1172
  %v1879 = vpack.c.b16 %v1175, %v1173
  %v1880 = vpack.c.b16 %v1178, %v1176
  %v1881 = vpack.c.b16 %v1179, %v1177
  %v1882 = vpack.c.b16 %v1182, %v1180
  %v1883 = vpack.c.b16 %v1183, %v1181
  %v1884 = vpack.c.b16 %v1186, %v1184
  %v1885 = vpack.c.b16 %v1187, %v1185
  %v1886 = vpack.c.b16 %v1190, %v1188
  %v1887 = vpack.c.b16 %v1191, %v1189
  %v1888 = vpack.c.b16 %v1194, %v1192
  %v1889 = vpack.c.b16 %v1195, %v1193
  %v1890 = vpack.c.b16 %v1198, %v1196
  %v1891 = vpack.c.b16 %v1199, %v1197
  %v1892 = vpack.c.b16 %v1202, %v1200
  %v1893 = vpack.c.b16 %v1203, %v1201
  %v1894 = vpack.c.b16 %v1206, %v1204
  %v1895 = vpack.c.b16 %v1207, %v1205
  %v1896 = vpack.c.b16 %v1210, %v1208
  %v1897 = vpack.c.b16 %v1211, %v1209
  %v1898 = vpack.c.b16 %v1214, %v1212
  %v1899 = vpack.c.b16 %v1215, %v1213
  %v1900 = vpack.c.b16 %v1218, %v1216
  %v1901 = vpack.c.b16 %v1219, %v1217
  %v1902 = vpack.c.b16 %v1222, %v1220
  %v1903 = vpack.c.b16 %v1223, %v1221
  %v1904 = vpack.c.b16 %v1226, %v1224
  %v1905 = vpack.c.b16 %v1227, %v1225
  %v1906 = vpack.c.b16 %v1230, %v1228
  %v1907 = vpack.c.b16 %v1231, %v1229
  %v1908 = vpack.c.b16 %v1234, %v1232
  %v1909 = vpack.c.b16 %v1235, %v1233
  %v1910 = vpack.c.b16 %v1238, %v1236
  %v1911 = vpack.c.b16 %v1239, %v1237
  %v1912 = vpack.c.b16 %v1242, %v1240
  %v1913 = vpack.c.b16 %v1243, %v1241
  %v1914 = vpack.c.b16 %v1246, %v1244
  %v1915 = vpack.c.b16 %v1247, %v1245
  %v1916 = vpack.c.b16 %v1250, %v1248
  %v1917 = vpack.c.b16 %v1251, %v1249
  %v1918 = vpack.c.b16 %v1254, %v1252
  %v1919 = vpack.c.b16 %v1255, %v1253
  %v1920 = vpack.c.b16 %v1258, %v1256
  %v1921 = vpack.c.b16 %v1259, %v1257
  %v1922 = vpack.c.b16 %v1262, %v1260
  %v1923 = vpack.c.b16 %v1263, %v1261
  %v1924 = vpack.c.b16 %v1266, %v1264
  %v1925 = vpack.c.b16 %v1267, %v1265
  %v1926 = vpack.c.b16 %v1270, %v1268
  %v1927 = vpack.c.b16 %v1271, %v1269
  %v1928 = vpack.c.b16 %v1274, %v1272
  %v1929 = vpack.c.b16 %v1275, %v1273
  %v1930 = vpack.c.b16 %v1278, %v1276
  %v1931 = vpack.c.b16 %v1279, %v1277
  %v1932 = vpack.c.b16 %v1282, %v1280
  %v1933 = vpack.c.b16 %v1283, %v1281
  %v1934 = vpack.c.b16 %v1286, %v1284
  %v1935 = vpack.c.b16 %v1287, %v1285
  %v1936 = vpack.c.b16 %v1290, %v1288
  %v1937 = vpack.c.b16 %v1291, %v1289
  %v1938 = vpack.c.b16 %v1294, %v1292
  %v1939 = vpack.c.b16 %v1295, %v1293
  %v1940 = vpack.c.b16 %v1298, %v1296
  %v1941 = vpack.c.b16 %v1299, %v1297
  %v1942 = vpack.c.b16 %v1302, %v1300
  %v1943 = vpack.c.b16 %v1303, %v1301
  %v1944 = vpack.c.b16 %v1306, %v1304
  %v1945 = vpack.c.b16 %v1307, %v1305
  %v1946 = vpack.c.b16 %v1310, %v1308
  %v1947 = vpack.c.b16 %v1311, %v1309
  %v1948 = vpack.c.b16 %v1314, %v1312
  %v1949 = vpack.c.b16 %v1315, %v1313
  %v1950 = vpack.c.b16 %v1318, %v1316
  %v1951 = vpack.c.b16 %v1319, %v1317
  %v1952 = vpack.c.b16 %v1322, %v1320
  %v1953 = vpack.c.b16 %v1323, %v1321
  %v1954 = vpack.c.b16 %v1326, %v1324
  %v1955 = vpack.c.b16 %v1327, %v1325
  %v1956 = vpack.c.b16 %v1330, %v1328
  %v1957 = vpack.c.b16 %v1331, %v1329
  %v1958 = vpack.c.b16 %v1334, %v1332
  %v1959 = vpack.c.b16 %v1335, %v1333
  %v1960 = vpack.c.b16 %v1338, %v1336
  %v1961 = vpack.c.b16 %v1339, %v1337
  %v1962 = vpack.c.b16 %v1342, %v1340
  %v1963 = vpack.c.b16 %v1343, %v1341
  %v1964 = vpack.c.b16 %v1346, %v1344
  %v1965 = vpack.c.b16 %v1347, %v1345
  %v1966 = vpack.c.b16 %v1350, %v1348
  %v1967 = vpack.c.b16 %v1351, %v1349
  %v1968 = vpack.c.b16 %v1354, %v1352
  %v1969 = vpack.c.b16 %v1355, %v1353
  %v1970 = vpack.c.b16 %v1358, %v1356
  %v1971 = vpack.c.b16 %v1359, %v1357
  %v1972 = vpack.c.b16 %v1362, %v1360
  %v1973 = vpack.c.b16 %v1363, %v1361
  %v1974 = vpack.c.b16 %v1366, %v1364
  %v1975 = vpack.c.b16 %v1367, %v1365
  %v1976 = vpack.c.b16 %v1370, %v1368
  %v1977 = vpack.c.b16 %v1371, %v1369
  %v1978 = vpack.c.b16 %v1374, %v1372
  %v1979 = vpack.c.b16 %v1375, %v1373
  %v1980 = vpack.c.b16 %v1378, %v1376
  %v1981 = vpack.c.b16 %v1379, %v1377
  %v1982 = vpack.c.b16 %v1382, %v1380
  %v1983 = vpack.c.b16 %v1383, %v1381
  %v1984 = vpack.c.b16 %v1386, %v1384
  %v1985 = vpack.c.b16 %v1387, %v1385
  %v1986 = vpack.c.b16 %v1390, %v1388
  %v1987 = vpack.c.b16 %v1391, %v1389
  %v1988 = vpack.c.b16 %v1394, %v1392
  %v1989 = vpack.c.b16 %v1395, %v1393
  %v1990 = vpack.c.b16 %v1398, %v1396
  %v1991 = vpack.c.b16 %v1399, %v1397
  %v1992 = vpack.c.b16 %v1402, %v1400
  %v1993 = vpack.c.b16 %v1403, %v1401
  %v1994 = vpack.c.b16 %v1406, %v1404
  %v1995 = vpack.c.b16 %v1407, %v1405
  %v1996 = vpack.c.b16 %v1410, %v1408
  %v1997 = vpack.c.b16 %v1411, %v1409
  %v1998 = vpack.c.b16 %v1414, %v1412
  %v1999 = vpack.c.b16 %v1415, %v1413
  %v2000 = vpack.c.b16 %v1418, %v1416
  %v2001 = vpack.c.b16 %v1419, %v1417
  %v2002 = vpack.c.b16 %v1422, %v1420
  %v2003 = vpack.c.b16 %v1423, %v1421
  %v2004 = vpack.c.b16 %v1426, %v1424
  %v2005 = vpack.c.b16 %v1427, %v1425
  %v2006 = vpack.c.b16 %v1430, %v1428
  %v2007 = vpack.c.b16 %v1431, %v1429
  %v2008 = vpack.c.b16 %v1434, %v1432
  %v2009 = vpack.c.b16 %v1435, %v1433
  %v2010 = vpack.c.b16 %v1438, %v1436
  %v2011 = vpack.c.b16 %v1439, %v1437
  %v2012 = vpack.c.b16 %v1442, %v1440
  %v2013 = vpack.c.b16 %v1443, %v1441
  %v2014 = vpack.c.b16 %v1446, %v1444
  %v2015 = vpack.c.b16 %v1447, %v1445
  %v2016 = vpack.c.b16 %v1450, %v1448
  %v2017 = vpack.c.b16 %v1451, %v1449
  %v2018 = vpack.c.b16 %v1454, %v1452
  %v2019 = vpack.c.b16 %v1455, %v1453
  %v2020 = vpack.c.b16 %v1458, %v1456
  %v2021 = vpack.c.b16 %v1459, %v1457
  %v2022 = vpack.c.b16 %v1462, %v1460
  %v2023 = vpack.c.b16 %v1463, %v1461
  %v2024 = vpack.c.b16 %v1466, %v1464
  %v2025 = vpack.c.b16 %v1467, %v1465
  %v2026 = vpack.c.b16 %v1470, %v1468
  %v2027 = vpack.c.b16 %v1471, %v1469
  %v2028 = vpack.c.b16 %v1474, %v1472
  %v2029 = vpack.c.b16 %v1475, %v1473
  %v2030 = vpack.c.b16 %v1478, %v1476
  %v2031 = vpack.c.b16 %v1479, %v1477
  %v2032 = vpack.c.b16 %v1482, %v1480
  %v2033 = vpack.c.b16 %v1483, %v1481
  %v2034 = vpack.c.b16 %v1486, %v1484
  %v2035 = vpack.c.b16 %v1487, %v1485
  %v2036 = vpack.c.b16 %v1490, %v1488
  %v2037 = vpack.c.b16 %v1491, %v1489
  %v2038 = vpack.c.b16 %v1494, %v1492
  %v2039 = vpack.c.b16 %v1495, %v1493
  %v2040 = vpack.c.b16 %v1498, %v1496
  %v2041 = vpack.c.b16 %v1499, %v1497
  %v2042 = vpack.c.b16 %v1502, %v1500
  %v2043 = vpack.c.b16 %v1503, %v1501
  %v2044 = vpack.c.b16 %v1506, %v1504
  %v2045 = vpack.c.b16 %v1507, %v1505
  %v2046 = vpack.c.b16 %v1510, %v1508
  %v2047 = vpack.c.b16 %v1511, %v1509
  %v2048 = vpack.c.b16 %v1514, %v1512
  %v2049 = vpack.c.b16 %v1515, %v1513
  %v2050 = vpack.c.b16 %v1518, %v1516
  %v2051 = vpack.c.b16 %v1519, %v1517
  %v2052 = vpack.c.b16 %v1522, %v1520
  %v2053 = vpack.c.b16 %v1523, %v1521
  %v2054 = vpack.c.b16 %v1526, %v1524
  %v2055 = vpack.c.b16 %v1527, %v1525
  %v2056 = vpack.c.b16 %v1530, %v1528
  %v2057 = vpack.c.b16 %v1531, %v1529
  %v2058 = vpack.c.b16 %v1534, %v1532
  %v2059 = vpack.c.b16 %v1535, %v1533
  %v2060 = vpack.c.b16 %v1538, %v1536
  %v2061 = vpack.c.b16 %v1539, %v1537
  %v2062 = vpack.c.b16 %v1542, %v1540
  %v2063 = vpack.c.b16 %v1543, %v1541
  %v2064 = vpack.c.b16 %v1546, %v1544
  %v2065 = vpack.c.b16 %v1547, %v1545
  %v2066 = vpack.c.b16 %v1550, %v1548
  %v2067 = vpack.c.b16 %v1551, %v1549
  %v2068 = vpack.c.b16 %v1554, %v1552
  %v2069 = vpack.c.b16 %v1555, %v1553
  %v2070 = vpack.c.b16 %v1558, %v1556
  %v2071 = vpack.c.b16 %v1559, %v1557
  %v2072 = vpack.c.b16 %v1562, %v1560
  %v2073 = vpack.c.b16 %v1563, %v1561
  %v2074 = vpack.c.b16 %v1566, %v1564
  %v2075 = vpack.c.b16 %v1567, %v1565
  %v2076 = vpack.c.b16 %v1570, %v1568
  %v2077 = vpack.c.b16 %v1571, %v1569
  %v2078 = vpack.c.b16 %v1574, %v1572
  %v2079 = vpack.c.b16 %v1575, %v1573
  %v2080 = vpack.c.b16 %v1578, %v1576
  %v2081 = vpack.c.b16 %v1579, %v1577
  %v2082 = vpack.c.b16 %v1582, %v1580
  %v2083 = vpack.c.b16 %v1583, %v1581
  %v2084 = vpack.c.b16 %v1586, %v1584
  %v2085 = vpack.c.b16 %v1587, %v1585
  %v2086 = vpack.c.b16 %v1590, %v1588
  %v2087 = vpack.c.b16 %v1591, %v1589
  %v2088 = vpack.c.b16 %v1594, %v1592
  %v2089 = vpack.c.b16 %v1595, %v1593
  %v2090 = vpack.c.b16 %v1598, %v1596
  %v2091 = vpack.c.b16 %v1599, %v1597
  %v2092 = vpack.c.b16 %v1602, %v1600
  %v2093 = vpack.c.b16 %v1603, %v1601
  %v2094 = vpack.c.b16 %v1606, %v1604
  %v2095 = vpack.c.b16 %v1607, %v1605
  %v2096 = vpack.c.b16 %v1610, %v1608
  %v2097 = vpack.c.b16 %v1611, %v1609
  %v2098 = vpack.c.b16 %v1614, %v1612
  %v2099 = vpack.c.b16 %v1615, %v1613
  %v2100 = vpack.c.b16 %v1618, %v1616
  %v2101 = vpack.c.b16 %v1619, %v1617
  %v2102 = vpack.c.b16 %v1622, %v1620
  %v2103 = vpack.c.b16 %v1623, %v1621
  %v2104 = vpack.c.b16 %v1626, %v1624
  %v2105 = vpack.c.b16 %v1627, %v1625
  %v2106 = vpack.c.b16 %v1630, %v1628
  %v2107 = vpack.c.b16 %v1631, %v1629
  %v2108 = vpack.c.b16 %v1634, %v1632
  %v2109 = vpack.c.b16 %v1635, %v1633
  %v2110 = vpack.c.b16 %v1638, %v1636
  %v2111 = vpack.c.b16 %v1639, %v1637
  %v2112 = vpack.c.b16 %v1642, %v1640
  %v2113 = vpack.c.b16 %v1643, %v1641
  %v2114 = vpack.c.b16 %v1646, %v1644
  %v2115 = vpack.c.b16 %v1647, %v1645
  %v2116 = vpack.c.b16 %v1650, %v1648
  %v2117 = vpack.c.b16 %v1651, %v1649
  %v2118 = vpack.c.b16 %v1654, %v1652
  %v2119 = vpack.c.b16 %v1655, %v1653
  %v2120 = vpack.c.b16 %v1658, %v1656
  %v2121 = vpack.c.b16 %v1659, %v1657
  %v2122 = vpack.c.b16 %v1662, %v1660
  %v2123 = vpack.c.b16 %v1663, %v1661
  %v2124 = vpack.c.b16 %v1666, %v1664
  %v2125 = vpack.c.b16 %v1667, %v1665
  %v2126 = vpack.c.b16 %v1670, %v1668
  %v2127 = vpack.c.b16 %v1671, %v1669
  %v2128 = vpack.c.b16 %v1674, %v1672
  %v2129 = vpack.c.b16 %v1675, %v1673
  %v2130 = vpack.c.b16 %v1678, %v1676
  %v2131 = vpack.c.b16 %v1679, %v1677
  %v2132 = vpack.c.b16 %v1682, %v1680
  %v2133 = vpack.c.b16 %v1683, %v1681
  %v2134 = vpack.c.b16 %v1686, %v1684
  %v2135 = vpack.c.b16 %v1687, %v1685
  %v2136 = vpack.c.b16 %v1690, %v1688
  %v2137 = vpack.c.b16 %v1691, %v1689
  %v2138 = vpack.c.b16 %v1694, %v1692
  %v2139 = vpack.c.b16 %v1695, %v1693
  %v2140 = vpack.c.b16 %v1698, %v1696
  %v2141 = vpack.c.b16 %v1699, %v1697
  %v2142 = vpack.c.b16 %v1702, %v1700
  %v2143 = vpack.c.b16 %v1703, %v1701
  %v2144 = vpack.c.b16 %v1706, %v1704
  %v2145 = vpack.c.b16 %v1707, %v1705
  %v2146 = vpack.c.b16 %v1710, %v1708
  %v2147 = vpack.c.b16 %v1711, %v1709
  %v2148 = vpack.c.b16 %v1714, %v1712
  %v2149 = vpack.c.b16 %v1715, %v1713
  %v2150 = vpack.c.b16 %v1718, %v1716
  %v2151 = vpack.c.b16 %v1719, %v1717
  %v2152 = vpack.c.b16 %v1722, %v1720
  %v2153 = vpack.c.b16 %v1723, %v1721
  %v2154 = vpack.c.b16 %v1726, %v1724
  %v2155 = vpack.c.b16 %v1727, %v1725
  %v2156 = vpack.c.b16 %v1730, %v1728
  %v2157 = vpack.c.b16 %v1731, %v1729
  %v2158 = vpack.c.b16 %v1734, %v1732
  %v2159 = vpack.c.b16 %v1735, %v1733
  %v2160 = vpack.c.b16 %v1738, %v1736
  %v2161 = vpack.c.b16 %v1739, %v1737
  %v2162 = vpack.c.b16 %v1742, %v1740
  %v2163 = vpack.c.b16 %v1743, %v1741
  %v2164 = vpack.c.b16 %v1746, %v1744
  %v2165 = vpack.c.b16 %v1747, %v1745
  %v2166 = vpack.c.b16 %v1750, %v1748
  %v2167 = vpack.c.b16 %v1751, %v1749
  %v2168 = vpack.c.b16 %v1754, %v1752
  %v2169 = vpack.c.b16 %v1755, %v1753
  %v2170 = vpack.c.b16 %v1758, %v1756
  %v2171 = vpack.c.b16 %v1759, %v1757
  %v2172 = vpack.c.b16 %v1762, %v1760
  %v2173 = vpack.c.b16 %v1763, %v1761
  %v2174 = vpack.c.b16 %v1766, %v1764
  %v2175 = vpack.c.b16 %v1767, %v1765
  %v2176 = vpack.c.b16 %v1770, %v1768
  %v2177 = vpack.c.b16 %v1771, %v1769
  %v2178 = vpack.c.b16 %v1774, %v1772
  %v2179 = vpack.c.b16 %v1775, %v1773
  %v2180 = vpack.c.b16 %v1778, %v1776
  %v2181 = vpack.c.b16 %v1779, %v1777
  %v2182 = vpack.c.b16 %v1782, %v1780
  %v2183 = vpack.c.b16 %v1783, %v1781
  %2584 = vmatpush.bf16.msra.mxu0 %v1798
  %2585 = vmatpush.bf16.msra.mxu0 %v1796
  %2586 = vmatpush.bf16.msra.mxu0 %v1794
  %2587 = vmatpush.bf16.msra.mxu0 %v1792
  %2588 = vmatpush.bf16.msra.mxu0 %v1790
  %2589 = vmatpush.bf16.msra.mxu0 %v1788
  %2590 = vmatpush.bf16.msra.mxu0 %v1786
  %2591 = vmatpush.bf16.msra.mxu0 %v1784
  %2592 = vmatmul.bf16.gmra.mxu0 %v534
  %v2593 = vpop.f32.mrf.mxu0
  %v2594 = vadd.f32 %v454, %v2593
  %v2595 = vpop.f32.mrf.mxu0
  %v2596 = vadd.f32 %v454, %v2595
  %2597 = vdwg.mxu0
  %2598 = vmatpush.bf16.msra.mxu0 %v1814
  %2599 = vmatpush.bf16.msra.mxu0 %v1812
  %2600 = vmatpush.bf16.msra.mxu0 %v1810
  %2601 = vmatpush.bf16.msra.mxu0 %v1808
  %2602 = vmatpush.bf16.msra.mxu0 %v1806
  %2603 = vmatpush.bf16.msra.mxu0 %v1804
  %2604 = vmatpush.bf16.msra.mxu0 %v1802
  %2605 = vmatpush.bf16.msra.mxu0 %v1800
  %2606 = vmatmul.bf16.gmra.mxu0 %v535
  %v2607 = vpop.f32.mrf.mxu0
  %v2608 = vadd.f32 %v2594, %v2607
  %v2609 = vpop.f32.mrf.mxu0
  %v2610 = vadd.f32 %v2596, %v2609
  %2611 = vdwg.mxu0
  %2612 = vmatpush.bf16.msra.mxu0 %v1830
  %2613 = vmatpush.bf16.msra.mxu0 %v1828
  %2614 = vmatpush.bf16.msra.mxu0 %v1826
  %2615 = vmatpush.bf16.msra.mxu0 %v1824
  %2616 = vmatpush.bf16.msra.mxu0 %v1822
  %2617 = vmatpush.bf16.msra.mxu0 %v1820
  %2618 = vmatpush.bf16.msra.mxu0 %v1818
  %2619 = vmatpush.bf16.msra.mxu0 %v1816
  %2620 = vmatmul.bf16.gmra.mxu0 %v536
  %v2621 = vpop.f32.mrf.mxu0
  %v2622 = vadd.f32 %v2608, %v2621
  %v2623 = vpop.f32.mrf.mxu0
  %v2624 = vadd.f32 %v2610, %v2623
  %2625 = vdwg.mxu0
  %2626 = vmatpush.bf16.msra.mxu0 %v1846
  %2627 = vmatpush.bf16.msra.mxu0 %v1844
  %2628 = vmatpush.bf16.msra.mxu0 %v1842
  %2629 = vmatpush.bf16.msra.mxu0 %v1840
  %2630 = vmatpush.bf16.msra.mxu0 %v1838
  %2631 = vmatpush.bf16.msra.mxu0 %v1836
  %2632 = vmatpush.bf16.msra.mxu0 %v1834
  %2633 = vmatpush.bf16.msra.mxu0 %v1832
  %2634 = vmatmul.bf16.gmra.mxu0 %v537
  %v2635 = vpop.f32.mrf.mxu0
  %v2636 = vadd.f32 %v2622, %v2635
  %v2637 = vpop.f32.mrf.mxu0
  %v2638 = vadd.f32 %v2624, %v2637
  %2639 = vdwg.mxu0
  %2640 = vmatpush.bf16.msra.mxu0 %v1862
  %2641 = vmatpush.bf16.msra.mxu0 %v1860
  %2642 = vmatpush.bf16.msra.mxu0 %v1858
  %2643 = vmatpush.bf16.msra.mxu0 %v1856
  %2644 = vmatpush.bf16.msra.mxu0 %v1854
  %2645 = vmatpush.bf16.msra.mxu0 %v1852
  %2646 = vmatpush.bf16.msra.mxu0 %v1850
  %2647 = vmatpush.bf16.msra.mxu0 %v1848
  %2648 = vmatmul.bf16.gmra.mxu0 %v538
  %v2649 = vpop.f32.mrf.mxu0
  %v2650 = vadd.f32 %v2636, %v2649
  %v2651 = vpop.f32.mrf.mxu0
  %v2652 = vadd.f32 %v2638, %v2651
  %2653 = vdwg.mxu0
  %2654 = vmatpush.bf16.msra.mxu0 %v1878
  %2655 = vmatpush.bf16.msra.mxu0 %v1876
  %2656 = vmatpush.bf16.msra.mxu0 %v1874
  %2657 = vmatpush.bf16.msra.mxu0 %v1872
  %2658 = vmatpush.bf16.msra.mxu0 %v1870
  %2659 = vmatpush.bf16.msra.mxu0 %v1868
  %2660 = vmatpush.bf16.msra.mxu0 %v1866
  %2661 = vmatpush.bf16.msra.mxu0 %v1864
  %2662 = vmatmul.bf16.gmra.mxu0 %v539
  %v2663 = vpop.f32.mrf.mxu0
  %v2664 = vadd.f32 %v2650, %v2663
  %v2665 = vpop.f32.mrf.mxu0
  %v2666 = vadd.f32 %v2652, %v2665
  %2667 = vdwg.mxu0
  %2668 = vmatpush.bf16.msra.mxu0 %v1894
  %2669 = vmatpush.bf16.msra.mxu0 %v1892
  %2670 = vmatpush.bf16.msra.mxu0 %v1890
  %2671 = vmatpush.bf16.msra.mxu0 %v1888
  %2672 = vmatpush.bf16.msra.mxu0 %v1886
  %2673 = vmatpush.bf16.msra.mxu0 %v1884
  %2674 = vmatpush.bf16.msra.mxu0 %v1882
  %2675 = vmatpush.bf16.msra.mxu0 %v1880
  %2676 = vmatmul.bf16.gmra.mxu0 %v540
  %v2677 = vpop.f32.mrf.mxu0
  %v2678 = vadd.f32 %v2664, %v2677
  %v2679 = vpop.f32.mrf.mxu0
  %v2680 = vadd.f32 %v2666, %v2679
  %2681 = vdwg.mxu0
  %2682 = vmatpush.bf16.msra.mxu0 %v1910
  %2683 = vmatpush.bf16.msra.mxu0 %v1908
  %2684 = vmatpush.bf16.msra.mxu0 %v1906
  %2685 = vmatpush.bf16.msra.mxu0 %v1904
  %2686 = vmatpush.bf16.msra.mxu0 %v1902
  %2687 = vmatpush.bf16.msra.mxu0 %v1900
  %2688 = vmatpush.bf16.msra.mxu0 %v1898
  %2689 = vmatpush.bf16.msra.mxu0 %v1896
  %2690 = vmatmul.bf16.gmra.mxu0 %v541
  %v2691 = vpop.f32.mrf.mxu0
  %v2692 = vadd.f32 %v2678, %v2691
  %v2693 = vpop.f32.mrf.mxu0
  %v2694 = vadd.f32 %v2680, %v2693
  %2695 = vdwg.mxu0
  %2696 = vmatpush.bf16.msra.mxu0 %v1926
  %2697 = vmatpush.bf16.msra.mxu0 %v1924
  %2698 = vmatpush.bf16.msra.mxu0 %v1922
  %2699 = vmatpush.bf16.msra.mxu0 %v1920
  %2700 = vmatpush.bf16.msra.mxu0 %v1918
  %2701 = vmatpush.bf16.msra.mxu0 %v1916
  %2702 = vmatpush.bf16.msra.mxu0 %v1914
  %2703 = vmatpush.bf16.msra.mxu0 %v1912
  %2704 = vmatmul.bf16.gmra.mxu0 %v542
  %v2705 = vpop.f32.mrf.mxu0
  %v2706 = vadd.f32 %v2692, %v2705
  %v2707 = vpop.f32.mrf.mxu0
  %v2708 = vadd.f32 %v2694, %v2707
  %2709 = vdwg.mxu0
  %2710 = vmatpush.bf16.msra.mxu0 %v1942
  %2711 = vmatpush.bf16.msra.mxu0 %v1940
  %2712 = vmatpush.bf16.msra.mxu0 %v1938
  %2713 = vmatpush.bf16.msra.mxu0 %v1936
  %2714 = vmatpush.bf16.msra.mxu0 %v1934
  %2715 = vmatpush.bf16.msra.mxu0 %v1932
  %2716 = vmatpush.bf16.msra.mxu0 %v1930
  %2717 = vmatpush.bf16.msra.mxu0 %v1928
  %2718 = vmatmul.bf16.gmra.mxu0 %v543
  %v2719 = vpop.f32.mrf.mxu0
  %v2720 = vadd.f32 %v2706, %v2719
  %v2721 = vpop.f32.mrf.mxu0
  %v2722 = vadd.f32 %v2708, %v2721
  %2723 = vdwg.mxu0
  %2724 = vmatpush.bf16.msra.mxu0 %v1958
  %2725 = vmatpush.bf16.msra.mxu0 %v1956
  %2726 = vmatpush.bf16.msra.mxu0 %v1954
  %2727 = vmatpush.bf16.msra.mxu0 %v1952
  %2728 = vmatpush.bf16.msra.mxu0 %v1950
  %2729 = vmatpush.bf16.msra.mxu0 %v1948
  %2730 = vmatpush.bf16.msra.mxu0 %v1946
  %2731 = vmatpush.bf16.msra.mxu0 %v1944
  %2732 = vmatmul.bf16.gmra.mxu0 %v544
  %v2733 = vpop.f32.mrf.mxu0
  %v2734 = vadd.f32 %v2720, %v2733
  %v2735 = vpop.f32.mrf.mxu0
  %v2736 = vadd.f32 %v2722, %v2735
  %2737 = vdwg.mxu0
  %2738 = vmatpush.bf16.msra.mxu0 %v1974
  %2739 = vmatpush.bf16.msra.mxu0 %v1972
  %2740 = vmatpush.bf16.msra.mxu0 %v1970
  %2741 = vmatpush.bf16.msra.mxu0 %v1968
  %2742 = vmatpush.bf16.msra.mxu0 %v1966
  %2743 = vmatpush.bf16.msra.mxu0 %v1964
  %2744 = vmatpush.bf16.msra.mxu0 %v1962
  %2745 = vmatpush.bf16.msra.mxu0 %v1960
  %2746 = vmatmul.bf16.gmra.mxu0 %v545
  %v2747 = vpop.f32.mrf.mxu0
  %v2748 = vadd.f32 %v2734, %v2747
  %v2749 = vpop.f32.mrf.mxu0
  %v2750 = vadd.f32 %v2736, %v2749
  %2751 = vdwg.mxu0
  %2752 = vmatpush.bf16.msra.mxu0 %v1990
  %2753 = vmatpush.bf16.msra.mxu0 %v1988
  %2754 = vmatpush.bf16.msra.mxu0 %v1986
  %2755 = vmatpush.bf16.msra.mxu0 %v1984
  %2756 = vmatpush.bf16.msra.mxu0 %v1982
  %2757 = vmatpush.bf16.msra.mxu0 %v1980
  %2758 = vmatpush.bf16.msra.mxu0 %v1978
  %2759 = vmatpush.bf16.msra.mxu0 %v1976
  %2760 = vmatmul.bf16.gmra.mxu0 %v546
  %v2761 = vpop.f32.mrf.mxu0
  %v2762 = vadd.f32 %v2748, %v2761
  %v2763 = vpop.f32.mrf.mxu0
  %v2764 = vadd.f32 %v2750, %v2763
  %2765 = vdwg.mxu0
  %2766 = vmatpush.bf16.msra.mxu0 %v2006
  %2767 = vmatpush.bf16.msra.mxu0 %v2004
  %2768 = vmatpush.bf16.msra.mxu0 %v2002
  %2769 = vmatpush.bf16.msra.mxu0 %v2000
  %2770 = vmatpush.bf16.msra.mxu0 %v1998
  %2771 = vmatpush.bf16.msra.mxu0 %v1996
  %2772 = vmatpush.bf16.msra.mxu0 %v1994
  %2773 = vmatpush.bf16.msra.mxu0 %v1992
  %2774 = vmatmul.bf16.gmra.mxu0 %v547
  %v2775 = vpop.f32.mrf.mxu0
  %v2776 = vadd.f32 %v2762, %v2775
  %v2777 = vpop.f32.mrf.mxu0
  %v2778 = vadd.f32 %v2764, %v2777
  %2779 = vdwg.mxu0
  %2780 = vmatpush.bf16.msra.mxu0 %v2022
  %2781 = vmatpush.bf16.msra.mxu0 %v2020
  %2782 = vmatpush.bf16.msra.mxu0 %v2018
  %2783 = vmatpush.bf16.msra.mxu0 %v2016
  %2784 = vmatpush.bf16.msra.mxu0 %v2014
  %2785 = vmatpush.bf16.msra.mxu0 %v2012
  %2786 = vmatpush.bf16.msra.mxu0 %v2010
  %2787 = vmatpush.bf16.msra.mxu0 %v2008
  %2788 = vmatmul.bf16.gmra.mxu0 %v548
  %v2789 = vpop.f32.mrf.mxu0
  %v2790 = vadd.f32 %v2776, %v2789
  %v2791 = vpop.f32.mrf.mxu0
  %v2792 = vadd.f32 %v2778, %v2791
  %2793 = vdwg.mxu0
  %2794 = vmatpush.bf16.msra.mxu0 %v2038
  %2795 = vmatpush.bf16.msra.mxu0 %v2036
  %2796 = vmatpush.bf16.msra.mxu0 %v2034
  %2797 = vmatpush.bf16.msra.mxu0 %v2032
  %2798 = vmatpush.bf16.msra.mxu0 %v2030
  %2799 = vmatpush.bf16.msra.mxu0 %v2028
  %2800 = vmatpush.bf16.msra.mxu0 %v2026
  %2801 = vmatpush.bf16.msra.mxu0 %v2024
  %2802 = vmatmul.bf16.gmra.mxu0 %v549
  %v2803 = vpop.f32.mrf.mxu0
  %v2804 = vadd.f32 %v2790, %v2803
  %v2805 = vpop.f32.mrf.mxu0
  %v2806 = vadd.f32 %v2792, %v2805
  %2807 = vdwg.mxu0
  %2808 = vmatpush.bf16.msra.mxu0 %v2054
  %2809 = vmatpush.bf16.msra.mxu0 %v2052
  %2810 = vmatpush.bf16.msra.mxu0 %v2050
  %2811 = vmatpush.bf16.msra.mxu0 %v2048
  %2812 = vmatpush.bf16.msra.mxu0 %v2046
  %2813 = vmatpush.bf16.msra.mxu0 %v2044
  %2814 = vmatpush.bf16.msra.mxu0 %v2042
  %2815 = vmatpush.bf16.msra.mxu0 %v2040
  %2816 = vmatmul.bf16.gmra.mxu0 %v550
  %v2817 = vpop.f32.mrf.mxu0
  %v2818 = vadd.f32 %v2804, %v2817
  %v2819 = vpop.f32.mrf.mxu0
  %v2820 = vadd.f32 %v2806, %v2819
  %2821 = vdwg.mxu0
  %2822 = vmatpush.bf16.msra.mxu0 %v2070
  %2823 = vmatpush.bf16.msra.mxu0 %v2068
  %2824 = vmatpush.bf16.msra.mxu0 %v2066
  %2825 = vmatpush.bf16.msra.mxu0 %v2064
  %2826 = vmatpush.bf16.msra.mxu0 %v2062
  %2827 = vmatpush.bf16.msra.mxu0 %v2060
  %2828 = vmatpush.bf16.msra.mxu0 %v2058
  %2829 = vmatpush.bf16.msra.mxu0 %v2056
  %2830 = vmatmul.bf16.gmra.mxu0 %v551
  %v2831 = vpop.f32.mrf.mxu0
  %v2832 = vadd.f32 %v2818, %v2831
  %v2833 = vpop.f32.mrf.mxu0
  %v2834 = vadd.f32 %v2820, %v2833
  %2835 = vdwg.mxu0
  %2836 = vmatpush.bf16.msra.mxu0 %v2086
  %2837 = vmatpush.bf16.msra.mxu0 %v2084
  %2838 = vmatpush.bf16.msra.mxu0 %v2082
  %2839 = vmatpush.bf16.msra.mxu0 %v2080
  %2840 = vmatpush.bf16.msra.mxu0 %v2078
  %2841 = vmatpush.bf16.msra.mxu0 %v2076
  %2842 = vmatpush.bf16.msra.mxu0 %v2074
  %2843 = vmatpush.bf16.msra.mxu0 %v2072
  %2844 = vmatmul.bf16.gmra.mxu0 %v552
  %v2845 = vpop.f32.mrf.mxu0
  %v2846 = vadd.f32 %v2832, %v2845
  %v2847 = vpop.f32.mrf.mxu0
  %v2848 = vadd.f32 %v2834, %v2847
  %2849 = vdwg.mxu0
  %2850 = vmatpush.bf16.msra.mxu0 %v2102
  %2851 = vmatpush.bf16.msra.mxu0 %v2100
  %2852 = vmatpush.bf16.msra.mxu0 %v2098
  %2853 = vmatpush.bf16.msra.mxu0 %v2096
  %2854 = vmatpush.bf16.msra.mxu0 %v2094
  %2855 = vmatpush.bf16.msra.mxu0 %v2092
  %2856 = vmatpush.bf16.msra.mxu0 %v2090
  %2857 = vmatpush.bf16.msra.mxu0 %v2088
  %2858 = vmatmul.bf16.gmra.mxu0 %v553
  %v2859 = vpop.f32.mrf.mxu0
  %v2860 = vadd.f32 %v2846, %v2859
  %v2861 = vpop.f32.mrf.mxu0
  %v2862 = vadd.f32 %v2848, %v2861
  %2863 = vdwg.mxu0
  %2864 = vmatpush.bf16.msra.mxu0 %v2118
  %2865 = vmatpush.bf16.msra.mxu0 %v2116
  %2866 = vmatpush.bf16.msra.mxu0 %v2114
  %2867 = vmatpush.bf16.msra.mxu0 %v2112
  %2868 = vmatpush.bf16.msra.mxu0 %v2110
  %2869 = vmatpush.bf16.msra.mxu0 %v2108
  %2870 = vmatpush.bf16.msra.mxu0 %v2106
  %2871 = vmatpush.bf16.msra.mxu0 %v2104
  %2872 = vmatmul.bf16.gmra.mxu0 %v554
  %v2873 = vpop.f32.mrf.mxu0
  %v2874 = vadd.f32 %v2860, %v2873
  %v2875 = vpop.f32.mrf.mxu0
  %v2876 = vadd.f32 %v2862, %v2875
  %2877 = vdwg.mxu0
  %2878 = vmatpush.bf16.msra.mxu0 %v2134
  %2879 = vmatpush.bf16.msra.mxu0 %v2132
  %2880 = vmatpush.bf16.msra.mxu0 %v2130
  %2881 = vmatpush.bf16.msra.mxu0 %v2128
  %2882 = vmatpush.bf16.msra.mxu0 %v2126
  %2883 = vmatpush.bf16.msra.mxu0 %v2124
  %2884 = vmatpush.bf16.msra.mxu0 %v2122
  %2885 = vmatpush.bf16.msra.mxu0 %v2120
  %2886 = vmatmul.bf16.gmra.mxu0 %v555
  %v2887 = vpop.f32.mrf.mxu0
  %v2888 = vadd.f32 %v2874, %v2887
  %v2889 = vpop.f32.mrf.mxu0
  %v2890 = vadd.f32 %v2876, %v2889
  %2891 = vdwg.mxu0
  %2892 = vmatpush.bf16.msra.mxu0 %v2150
  %2893 = vmatpush.bf16.msra.mxu0 %v2148
  %2894 = vmatpush.bf16.msra.mxu0 %v2146
  %2895 = vmatpush.bf16.msra.mxu0 %v2144
  %2896 = vmatpush.bf16.msra.mxu0 %v2142
  %2897 = vmatpush.bf16.msra.mxu0 %v2140
  %2898 = vmatpush.bf16.msra.mxu0 %v2138
  %2899 = vmatpush.bf16.msra.mxu0 %v2136
  %2900 = vmatmul.bf16.gmra.mxu0 %v556
  %v2901 = vpop.f32.mrf.mxu0
  %v2902 = vadd.f32 %v2888, %v2901
  %v2903 = vpop.f32.mrf.mxu0
  %v2904 = vadd.f32 %v2890, %v2903
  %2905 = vdwg.mxu0
  %2906 = vmatpush.bf16.msra.mxu0 %v2166
  %2907 = vmatpush.bf16.msra.mxu0 %v2164
  %2908 = vmatpush.bf16.msra.mxu0 %v2162
  %2909 = vmatpush.bf16.msra.mxu0 %v2160
  %2910 = vmatpush.bf16.msra.mxu0 %v2158
  %2911 = vmatpush.bf16.msra.mxu0 %v2156
  %2912 = vmatpush.bf16.msra.mxu0 %v2154
  %2913 = vmatpush.bf16.msra.mxu0 %v2152
  %2914 = vmatmul.bf16.gmra.mxu0 %v557
  %v2915 = vpop.f32.mrf.mxu0
  %v2916 = vadd.f32 %v2902, %v2915
  %v2917 = vpop.f32.mrf.mxu0
  %v2918 = vadd.f32 %v2904, %v2917
  %2919 = vdwg.mxu0
  %2920 = vmatpush.bf16.msra.mxu0 %v2182
  %2921 = vmatpush.bf16.msra.mxu0 %v2180
  %2922 = vmatpush.bf16.msra.mxu0 %v2178
  %2923 = vmatpush.bf16.msra.mxu0 %v2176
  %2924 = vmatpush.bf16.msra.mxu0 %v2174
  %2925 = vmatpush.bf16.msra.mxu0 %v2172
  %2926 = vmatpush.bf16.msra.mxu0 %v2170
  %2927 = vmatpush.bf16.msra.mxu0 %v2168
  %2928 = vmatmul.bf16.gmra.mxu0 %v558
  %v2929 = vpop.f32.mrf.mxu0
  %v2930 = vadd.f32 %v2916, %v2929
  %v2931 = vpop.f32.mrf.mxu0
  %v2932 = vadd.f32 %v2918, %v2931
  %2933 = vdwg.mxu0
  %2934 = vmatpush.bf16.msra.mxu0 %v1799
  %2935 = vmatpush.bf16.msra.mxu0 %v1797
  %2936 = vmatpush.bf16.msra.mxu0 %v1795
  %2937 = vmatpush.bf16.msra.mxu0 %v1793
  %2938 = vmatpush.bf16.msra.mxu0 %v1791
  %2939 = vmatpush.bf16.msra.mxu0 %v1789
  %2940 = vmatpush.bf16.msra.mxu0 %v1787
  %2941 = vmatpush.bf16.msra.mxu0 %v1785
  %2942 = vmatmul.bf16.gmra.mxu0 %v534
  %v2943 = vpop.f32.mrf.mxu0
  %v2944 = vadd.f32 %v455, %v2943
  %v2945 = vpop.f32.mrf.mxu0
  %v2946 = vadd.f32 %v455, %v2945
  %2947 = vdwg.mxu0
  %2948 = vmatpush.bf16.msra.mxu0 %v1815
  %2949 = vmatpush.bf16.msra.mxu0 %v1813
  %2950 = vmatpush.bf16.msra.mxu0 %v1811
  %2951 = vmatpush.bf16.msra.mxu0 %v1809
  %2952 = vmatpush.bf16.msra.mxu0 %v1807
  %2953 = vmatpush.bf16.msra.mxu0 %v1805
  %2954 = vmatpush.bf16.msra.mxu0 %v1803
  %2955 = vmatpush.bf16.msra.mxu0 %v1801
  %2956 = vmatmul.bf16.gmra.mxu0 %v535
  %v2957 = vpop.f32.mrf.mxu0
  %v2958 = vadd.f32 %v2944, %v2957
  %v2959 = vpop.f32.mrf.mxu0
  %v2960 = vadd.f32 %v2946, %v2959
  %2961 = vdwg.mxu0
  %2962 = vmatpush.bf16.msra.mxu0 %v1831
  %2963 = vmatpush.bf16.msra.mxu0 %v1829
  %2964 = vmatpush.bf16.msra.mxu0 %v1827
  %2965 = vmatpush.bf16.msra.mxu0 %v1825
  %2966 = vmatpush.bf16.msra.mxu0 %v1823
  %2967 = vmatpush.bf16.msra.mxu0 %v1821
  %2968 = vmatpush.bf16.msra.mxu0 %v1819
  %2969 = vmatpush.bf16.msra.mxu0 %v1817
  %2970 = vmatmul.bf16.gmra.mxu0 %v536
  %v2971 = vpop.f32.mrf.mxu0
  %v2972 = vadd.f32 %v2958, %v2971
  %v2973 = vpop.f32.mrf.mxu0
  %v2974 = vadd.f32 %v2960, %v2973
  %2975 = vdwg.mxu0
  %2976 = vmatpush.bf16.msra.mxu0 %v1847
  %2977 = vmatpush.bf16.msra.mxu0 %v1845
  %2978 = vmatpush.bf16.msra.mxu0 %v1843
  %2979 = vmatpush.bf16.msra.mxu0 %v1841
  %2980 = vmatpush.bf16.msra.mxu0 %v1839
  %2981 = vmatpush.bf16.msra.mxu0 %v1837
  %2982 = vmatpush.bf16.msra.mxu0 %v1835
  %2983 = vmatpush.bf16.msra.mxu0 %v1833
  %2984 = vmatmul.bf16.gmra.mxu0 %v537
  %v2985 = vpop.f32.mrf.mxu0
  %v2986 = vadd.f32 %v2972, %v2985
  %v2987 = vpop.f32.mrf.mxu0
  %v2988 = vadd.f32 %v2974, %v2987
  %2989 = vdwg.mxu0
  %2990 = vmatpush.bf16.msra.mxu0 %v1863
  %2991 = vmatpush.bf16.msra.mxu0 %v1861
  %2992 = vmatpush.bf16.msra.mxu0 %v1859
  %2993 = vmatpush.bf16.msra.mxu0 %v1857
  %2994 = vmatpush.bf16.msra.mxu0 %v1855
  %2995 = vmatpush.bf16.msra.mxu0 %v1853
  %2996 = vmatpush.bf16.msra.mxu0 %v1851
  %2997 = vmatpush.bf16.msra.mxu0 %v1849
  %2998 = vmatmul.bf16.gmra.mxu0 %v538
  %v2999 = vpop.f32.mrf.mxu0
  %v3000 = vadd.f32 %v2986, %v2999
  %v3001 = vpop.f32.mrf.mxu0
  %v3002 = vadd.f32 %v2988, %v3001
  %3003 = vdwg.mxu0
  %3004 = vmatpush.bf16.msra.mxu0 %v1879
  %3005 = vmatpush.bf16.msra.mxu0 %v1877
  %3006 = vmatpush.bf16.msra.mxu0 %v1875
  %3007 = vmatpush.bf16.msra.mxu0 %v1873
  %3008 = vmatpush.bf16.msra.mxu0 %v1871
  %3009 = vmatpush.bf16.msra.mxu0 %v1869
  %3010 = vmatpush.bf16.msra.mxu0 %v1867
  %3011 = vmatpush.bf16.msra.mxu0 %v1865
  %3012 = vmatmul.bf16.gmra.mxu0 %v539
  %v3013 = vpop.f32.mrf.mxu0
  %v3014 = vadd.f32 %v3000, %v3013
  %v3015 = vpop.f32.mrf.mxu0
  %v3016 = vadd.f32 %v3002, %v3015
  %3017 = vdwg.mxu0
  %3018 = vmatpush.bf16.msra.mxu0 %v1895
  %3019 = vmatpush.bf16.msra.mxu0 %v1893
  %3020 = vmatpush.bf16.msra.mxu0 %v1891
  %3021 = vmatpush.bf16.msra.mxu0 %v1889
  %3022 = vmatpush.bf16.msra.mxu0 %v1887
  %3023 = vmatpush.bf16.msra.mxu0 %v1885
  %3024 = vmatpush.bf16.msra.mxu0 %v1883
  %3025 = vmatpush.bf16.msra.mxu0 %v1881
  %3026 = vmatmul.bf16.gmra.mxu0 %v540
  %v3027 = vpop.f32.mrf.mxu0
  %v3028 = vadd.f32 %v3014, %v3027
  %v3029 = vpop.f32.mrf.mxu0
  %v3030 = vadd.f32 %v3016, %v3029
  %3031 = vdwg.mxu0
  %3032 = vmatpush.bf16.msra.mxu0 %v1911
  %3033 = vmatpush.bf16.msra.mxu0 %v1909
  %3034 = vmatpush.bf16.msra.mxu0 %v1907
  %3035 = vmatpush.bf16.msra.mxu0 %v1905
  %3036 = vmatpush.bf16.msra.mxu0 %v1903
  %3037 = vmatpush.bf16.msra.mxu0 %v1901
  %3038 = vmatpush.bf16.msra.mxu0 %v1899
  %3039 = vmatpush.bf16.msra.mxu0 %v1897
  %3040 = vmatmul.bf16.gmra.mxu0 %v541
  %v3041 = vpop.f32.mrf.mxu0
  %v3042 = vadd.f32 %v3028, %v3041
  %v3043 = vpop.f32.mrf.mxu0
  %v3044 = vadd.f32 %v3030, %v3043
  %3045 = vdwg.mxu0
  %3046 = vmatpush.bf16.msra.mxu0 %v1927
  %3047 = vmatpush.bf16.msra.mxu0 %v1925
  %3048 = vmatpush.bf16.msra.mxu0 %v1923
  %3049 = vmatpush.bf16.msra.mxu0 %v1921
  %3050 = vmatpush.bf16.msra.mxu0 %v1919
  %3051 = vmatpush.bf16.msra.mxu0 %v1917
  %3052 = vmatpush.bf16.msra.mxu0 %v1915
  %3053 = vmatpush.bf16.msra.mxu0 %v1913
  %3054 = vmatmul.bf16.gmra.mxu0 %v542
  %v3055 = vpop.f32.mrf.mxu0
  %v3056 = vadd.f32 %v3042, %v3055
  %v3057 = vpop.f32.mrf.mxu0
  %v3058 = vadd.f32 %v3044, %v3057
  %3059 = vdwg.mxu0
  %3060 = vmatpush.bf16.msra.mxu0 %v1943
  %3061 = vmatpush.bf16.msra.mxu0 %v1941
  %3062 = vmatpush.bf16.msra.mxu0 %v1939
  %3063 = vmatpush.bf16.msra.mxu0 %v1937
  %3064 = vmatpush.bf16.msra.mxu0 %v1935
  %3065 = vmatpush.bf16.msra.mxu0 %v1933
  %3066 = vmatpush.bf16.msra.mxu0 %v1931
  %3067 = vmatpush.bf16.msra.mxu0 %v1929
  %3068 = vmatmul.bf16.gmra.mxu0 %v543
  %v3069 = vpop.f32.mrf.mxu0
  %v3070 = vadd.f32 %v3056, %v3069
  %v3071 = vpop.f32.mrf.mxu0
  %v3072 = vadd.f32 %v3058, %v3071
  %3073 = vdwg.mxu0
  %3074 = vmatpush.bf16.msra.mxu0 %v1959
  %3075 = vmatpush.bf16.msra.mxu0 %v1957
  %3076 = vmatpush.bf16.msra.mxu0 %v1955
  %3077 = vmatpush.bf16.msra.mxu0 %v1953
  %3078 = vmatpush.bf16.msra.mxu0 %v1951
  %3079 = vmatpush.bf16.msra.mxu0 %v1949
  %3080 = vmatpush.bf16.msra.mxu0 %v1947
  %3081 = vmatpush.bf16.msra.mxu0 %v1945
  %3082 = vmatmul.bf16.gmra.mxu0 %v544
  %v3083 = vpop.f32.mrf.mxu0
  %v3084 = vadd.f32 %v3070, %v3083
  %v3085 = vpop.f32.mrf.mxu0
  %v3086 = vadd.f32 %v3072, %v3085
  %3087 = vdwg.mxu0
  %3088 = vmatpush.bf16.msra.mxu0 %v1975
  %3089 = vmatpush.bf16.msra.mxu0 %v1973
  %3090 = vmatpush.bf16.msra.mxu0 %v1971
  %3091 = vmatpush.bf16.msra.mxu0 %v1969
  %3092 = vmatpush.bf16.msra.mxu0 %v1967
  %3093 = vmatpush.bf16.msra.mxu0 %v1965
  %3094 = vmatpush.bf16.msra.mxu0 %v1963
  %3095 = vmatpush.bf16.msra.mxu0 %v1961
  %3096 = vmatmul.bf16.gmra.mxu0 %v545
  %v3097 = vpop.f32.mrf.mxu0
  %v3098 = vadd.f32 %v3084, %v3097
  %v3099 = vpop.f32.mrf.mxu0
  %v3100 = vadd.f32 %v3086, %v3099
  %3101 = vdwg.mxu0
  %3102 = vmatpush.bf16.msra.mxu0 %v1991
  %3103 = vmatpush.bf16.msra.mxu0 %v1989
  %3104 = vmatpush.bf16.msra.mxu0 %v1987
  %3105 = vmatpush.bf16.msra.mxu0 %v1985
  %3106 = vmatpush.bf16.msra.mxu0 %v1983
  %3107 = vmatpush.bf16.msra.mxu0 %v1981
  %3108 = vmatpush.bf16.msra.mxu0 %v1979
  %3109 = vmatpush.bf16.msra.mxu0 %v1977
  %3110 = vmatmul.bf16.gmra.mxu0 %v546
  %v3111 = vpop.f32.mrf.mxu0
  %v3112 = vadd.f32 %v3098, %v3111
  %v3113 = vpop.f32.mrf.mxu0
  %v3114 = vadd.f32 %v3100, %v3113
  %3115 = vdwg.mxu0
  %3116 = vmatpush.bf16.msra.mxu0 %v2007
  %3117 = vmatpush.bf16.msra.mxu0 %v2005
  %3118 = vmatpush.bf16.msra.mxu0 %v2003
  %3119 = vmatpush.bf16.msra.mxu0 %v2001
  %3120 = vmatpush.bf16.msra.mxu0 %v1999
  %3121 = vmatpush.bf16.msra.mxu0 %v1997
  %3122 = vmatpush.bf16.msra.mxu0 %v1995
  %3123 = vmatpush.bf16.msra.mxu0 %v1993
  %3124 = vmatmul.bf16.gmra.mxu0 %v547
  %v3125 = vpop.f32.mrf.mxu0
  %v3126 = vadd.f32 %v3112, %v3125
  %v3127 = vpop.f32.mrf.mxu0
  %v3128 = vadd.f32 %v3114, %v3127
  %3129 = vdwg.mxu0
  %3130 = vmatpush.bf16.msra.mxu0 %v2023
  %3131 = vmatpush.bf16.msra.mxu0 %v2021
  %3132 = vmatpush.bf16.msra.mxu0 %v2019
  %3133 = vmatpush.bf16.msra.mxu0 %v2017
  %3134 = vmatpush.bf16.msra.mxu0 %v2015
  %3135 = vmatpush.bf16.msra.mxu0 %v2013
  %3136 = vmatpush.bf16.msra.mxu0 %v2011
  %3137 = vmatpush.bf16.msra.mxu0 %v2009
  %3138 = vmatmul.bf16.gmra.mxu0 %v548
  %v3139 = vpop.f32.mrf.mxu0
  %v3140 = vadd.f32 %v3126, %v3139
  %v3141 = vpop.f32.mrf.mxu0
  %v3142 = vadd.f32 %v3128, %v3141
  %3143 = vdwg.mxu0
  %3144 = vmatpush.bf16.msra.mxu0 %v2039
  %3145 = vmatpush.bf16.msra.mxu0 %v2037
  %3146 = vmatpush.bf16.msra.mxu0 %v2035
  %3147 = vmatpush.bf16.msra.mxu0 %v2033
  %3148 = vmatpush.bf16.msra.mxu0 %v2031
  %3149 = vmatpush.bf16.msra.mxu0 %v2029
  %3150 = vmatpush.bf16.msra.mxu0 %v2027
  %3151 = vmatpush.bf16.msra.mxu0 %v2025
  %3152 = vmatmul.bf16.gmra.mxu0 %v549
  %v3153 = vpop.f32.mrf.mxu0
  %v3154 = vadd.f32 %v3140, %v3153
  %v3155 = vpop.f32.mrf.mxu0
  %v3156 = vadd.f32 %v3142, %v3155
  %3157 = vdwg.mxu0
  %3158 = vmatpush.bf16.msra.mxu0 %v2055
  %3159 = vmatpush.bf16.msra.mxu0 %v2053
  %3160 = vmatpush.bf16.msra.mxu0 %v2051
  %3161 = vmatpush.bf16.msra.mxu0 %v2049
  %3162 = vmatpush.bf16.msra.mxu0 %v2047
  %3163 = vmatpush.bf16.msra.mxu0 %v2045
  %3164 = vmatpush.bf16.msra.mxu0 %v2043
  %3165 = vmatpush.bf16.msra.mxu0 %v2041
  %3166 = vmatmul.bf16.gmra.mxu0 %v550
  %v3167 = vpop.f32.mrf.mxu0
  %v3168 = vadd.f32 %v3154, %v3167
  %v3169 = vpop.f32.mrf.mxu0
  %v3170 = vadd.f32 %v3156, %v3169
  %3171 = vdwg.mxu0
  %3172 = vmatpush.bf16.msra.mxu0 %v2071
  %3173 = vmatpush.bf16.msra.mxu0 %v2069
  %3174 = vmatpush.bf16.msra.mxu0 %v2067
  %3175 = vmatpush.bf16.msra.mxu0 %v2065
  %3176 = vmatpush.bf16.msra.mxu0 %v2063
  %3177 = vmatpush.bf16.msra.mxu0 %v2061
  %3178 = vmatpush.bf16.msra.mxu0 %v2059
  %3179 = vmatpush.bf16.msra.mxu0 %v2057
  %3180 = vmatmul.bf16.gmra.mxu0 %v551
  %v3181 = vpop.f32.mrf.mxu0
  %v3182 = vadd.f32 %v3168, %v3181
  %v3183 = vpop.f32.mrf.mxu0
  %v3184 = vadd.f32 %v3170, %v3183
  %3185 = vdwg.mxu0
  %3186 = vmatpush.bf16.msra.mxu0 %v2087
  %3187 = vmatpush.bf16.msra.mxu0 %v2085
  %3188 = vmatpush.bf16.msra.mxu0 %v2083
  %3189 = vmatpush.bf16.msra.mxu0 %v2081
  %3190 = vmatpush.bf16.msra.mxu0 %v2079
  %3191 = vmatpush.bf16.msra.mxu0 %v2077
  %3192 = vmatpush.bf16.msra.mxu0 %v2075
  %3193 = vmatpush.bf16.msra.mxu0 %v2073
  %3194 = vmatmul.bf16.gmra.mxu0 %v552
  %v3195 = vpop.f32.mrf.mxu0
  %v3196 = vadd.f32 %v3182, %v3195
  %v3197 = vpop.f32.mrf.mxu0
  %v3198 = vadd.f32 %v3184, %v3197
  %3199 = vdwg.mxu0
  %3200 = vmatpush.bf16.msra.mxu0 %v2103
  %3201 = vmatpush.bf16.msra.mxu0 %v2101
  %3202 = vmatpush.bf16.msra.mxu0 %v2099
  %3203 = vmatpush.bf16.msra.mxu0 %v2097
  %3204 = vmatpush.bf16.msra.mxu0 %v2095
  %3205 = vmatpush.bf16.msra.mxu0 %v2093
  %3206 = vmatpush.bf16.msra.mxu0 %v2091
  %3207 = vmatpush.bf16.msra.mxu0 %v2089
  %3208 = vmatmul.bf16.gmra.mxu0 %v553
  %v3209 = vpop.f32.mrf.mxu0
  %v3210 = vadd.f32 %v3196, %v3209
  %v3211 = vpop.f32.mrf.mxu0
  %v3212 = vadd.f32 %v3198, %v3211
  %3213 = vdwg.mxu0
  %3214 = vmatpush.bf16.msra.mxu0 %v2119
  %3215 = vmatpush.bf16.msra.mxu0 %v2117
  %3216 = vmatpush.bf16.msra.mxu0 %v2115
  %3217 = vmatpush.bf16.msra.mxu0 %v2113
  %3218 = vmatpush.bf16.msra.mxu0 %v2111
  %3219 = vmatpush.bf16.msra.mxu0 %v2109
  %3220 = vmatpush.bf16.msra.mxu0 %v2107
  %3221 = vmatpush.bf16.msra.mxu0 %v2105
  %3222 = vmatmul.bf16.gmra.mxu0 %v554
  %v3223 = vpop.f32.mrf.mxu0
  %v3224 = vadd.f32 %v3210, %v3223
  %v3225 = vpop.f32.mrf.mxu0
  %v3226 = vadd.f32 %v3212, %v3225
  %3227 = vdwg.mxu0
  %3228 = vmatpush.bf16.msra.mxu0 %v2135
  %3229 = vmatpush.bf16.msra.mxu0 %v2133
  %3230 = vmatpush.bf16.msra.mxu0 %v2131
  %3231 = vmatpush.bf16.msra.mxu0 %v2129
  %3232 = vmatpush.bf16.msra.mxu0 %v2127
  %3233 = vmatpush.bf16.msra.mxu0 %v2125
  %3234 = vmatpush.bf16.msra.mxu0 %v2123
  %3235 = vmatpush.bf16.msra.mxu0 %v2121
  %3236 = vmatmul.bf16.gmra.mxu0 %v555
  %v3237 = vpop.f32.mrf.mxu0
  %v3238 = vadd.f32 %v3224, %v3237
  %v3239 = vpop.f32.mrf.mxu0
  %v3240 = vadd.f32 %v3226, %v3239
  %3241 = vdwg.mxu0
  %3242 = vmatpush.bf16.msra.mxu0 %v2151
  %3243 = vmatpush.bf16.msra.mxu0 %v2149
  %3244 = vmatpush.bf16.msra.mxu0 %v2147
  %3245 = vmatpush.bf16.msra.mxu0 %v2145
  %3246 = vmatpush.bf16.msra.mxu0 %v2143
  %3247 = vmatpush.bf16.msra.mxu0 %v2141
  %3248 = vmatpush.bf16.msra.mxu0 %v2139
  %3249 = vmatpush.bf16.msra.mxu0 %v2137
  %3250 = vmatmul.bf16.gmra.mxu0 %v556
  %v3251 = vpop.f32.mrf.mxu0
  %v3252 = vadd.f32 %v3238, %v3251
  %v3253 = vpop.f32.mrf.mxu0
  %v3254 = vadd.f32 %v3240, %v3253
  %3255 = vdwg.mxu0
  %3256 = vmatpush.bf16.msra.mxu0 %v2167
  %3257 = vmatpush.bf16.msra.mxu0 %v2165
  %3258 = vmatpush.bf16.msra.mxu0 %v2163
  %3259 = vmatpush.bf16.msra.mxu0 %v2161
  %3260 = vmatpush.bf16.msra.mxu0 %v2159
  %3261 = vmatpush.bf16.msra.mxu0 %v2157
  %3262 = vmatpush.bf16.msra.mxu0 %v2155
  %3263 = vmatpush.bf16.msra.mxu0 %v2153
  %3264 = vmatmul.bf16.gmra.mxu0 %v557
  %v3265 = vpop.f32.mrf.mxu0
  %v3266 = vadd.f32 %v3252, %v3265
  %v3267 = vpop.f32.mrf.mxu0
  %v3268 = vadd.f32 %v3254, %v3267
  %3269 = vdwg.mxu0
  %3270 = vmatpush.bf16.msra.mxu0 %v2183
  %3271 = vmatpush.bf16.msra.mxu0 %v2181
  %3272 = vmatpush.bf16.msra.mxu0 %v2179
  %3273 = vmatpush.bf16.msra.mxu0 %v2177
  %3274 = vmatpush.bf16.msra.mxu0 %v2175
  %3275 = vmatpush.bf16.msra.mxu0 %v2173
  %3276 = vmatpush.bf16.msra.mxu0 %v2171
  %3277 = vmatpush.bf16.msra.mxu0 %v2169
  %3278 = vmatmul.bf16.gmra.mxu0 %v558
  %v3279 = vpop.f32.mrf.mxu0
  %v3280 = vadd.f32 %v3266, %v3279
  %v3281 = vpop.f32.mrf.mxu0
  %v3282 = vadd.f32 %v3268, %v3281
  %3283 = vdwg.mxu0
  %v3284 = vmax.f32 %v2930, 0.0
  %v3285 = vmax.f32 %v3280, 0.0
  %v3286 = vmax.f32 %v2932, 0.0
  %v3287 = vmax.f32 %v3282, 0.0
  %v3288 = vpack.c.bf16 %v3286, %v3284
  %v3289 = vpack.c.bf16 %v3287, %v3285
  %v3290 = vld [vmem:[%s3] sm:$0xf]
  %v3291 = vld [vmem:[%s3 + $0x4] sm:$0xf]
  %v3292 = vld [vmem:[%s3 + $0x8] sm:$0xf]
  %v3293 = vld [vmem:[%s3 + $0xc] sm:$0xf]
  %v3294 = vld [vmem:[%s3 + $0x10] sm:$0xf]
  %v3295 = vld [vmem:[%s3 + $0x14] sm:$0xf]
  %v3296 = vld [vmem:[%s3 + $0x18] sm:$0xf]
  %v3297 = vld [vmem:[%s3 + $0x1c] sm:$0xf]
  %v3298 = vld [vmem:[%s3 + $0x20] sm:$0xf]
  %v3299 = vld [vmem:[%s3 + $0x24] sm:$0xf]
  %v3300 = vld [vmem:[%s3 + $0x28] sm:$0xf]
  %v3301 = vld [vmem:[%s3 + $0x2c] sm:$0xf]
  %v3302 = vld [vmem:[%s3 + $0x30] sm:$0xf]
  %v3303 = vld [vmem:[%s3 + $0x34] sm:$0xf]
  %v3304 = vld [vmem:[%s3 + $0x38] sm:$0xf]
  %v3305 = vld [vmem:[%s3 + $0x3c] sm:$0xf]
  %v3306 = vld [vmem:[%s3 + $0x40] sm:$0xf]
  %v3307 = vld [vmem:[%s3 + $0x44] sm:$0xf]
  %v3308 = vld [vmem:[%s3 + $0x48] sm:$0xf]
  %v3309 = vld [vmem:[%s3 + $0x4c] sm:$0xf]
  %v3310 = vld [vmem:[%s3 + $0x50] sm:$0xf]
  %v3311 = vld [vmem:[%s3 + $0x54] sm:$0xf]
  %v3312 = vld [vmem:[%s3 + $0x58] sm:$0xf]
  %v3313 = vld [vmem:[%s3 + $0x5c] sm:$0xf]
  %v3314 = vld [vmem:[%s3 + $0x60] sm:$0xf]
  %v3315 = vld [vmem:[%s3 + $0x64] sm:$0xf]
  %v3316 = vld [vmem:[%s3 + $0x68] sm:$0xf]
  %v3317 = vld [vmem:[%s3 + $0x6c] sm:$0xf]
  %v3318 = vld [vmem:[%s3 + $0x70] sm:$0xf]
  %v3319 = vld [vmem:[%s3 + $0x74] sm:$0xf]
  %v3320 = vld [vmem:[%s3 + $0x78] sm:$0xf]
  %v3321 = vld [vmem:[%s3 + $0x7c] sm:$0xf]
  %v3322 = vld [vmem:[%s4] sm:$0x1]
  %v3324 = vperm.slane %v3322, 0
  %v3358 = vunpack.c.l.b16 %v3290
  %v3359 = vunpack.c.l.b16 %v3291
  %v3360 = vunpack.c.l.b16 %v3292
  %v3361 = vunpack.c.l.b16 %v3293
  %v3362 = vunpack.c.l.b16 %v3294
  %v3363 = vunpack.c.l.b16 %v3295
  %v3364 = vunpack.c.l.b16 %v3296
  %v3365 = vunpack.c.l.b16 %v3297
  %v3366 = vunpack.c.l.b16 %v3298
  %v3367 = vunpack.c.l.b16 %v3299
  %v3368 = vunpack.c.l.b16 %v3300
  %v3369 = vunpack.c.l.b16 %v3301
  %v3370 = vunpack.c.l.b16 %v3302
  %v3371 = vunpack.c.l.b16 %v3303
  %v3372 = vunpack.c.l.b16 %v3304
  %v3373 = vunpack.c.l.b16 %v3305
  %v3374 = vunpack.c.l.b16 %v3306
  %v3375 = vunpack.c.l.b16 %v3307
  %v3376 = vunpack.c.l.b16 %v3308
  %v3377 = vunpack.c.l.b16 %v3309
  %v3378 = vunpack.c.l.b16 %v3310
  %v3379 = vunpack.c.l.b16 %v3311
  %v3380 = vunpack.c.l.b16 %v3312
  %v3381 = vunpack.c.l.b16 %v3313
  %v3382 = vunpack.c.l.b16 %v3314
  %v3383 = vunpack.c.l.b16 %v3315
  %v3384 = vunpack.c.l.b16 %v3316
  %v3385 = vunpack.c.l.b16 %v3317
  %v3386 = vunpack.c.l.b16 %v3318
  %v3387 = vunpack.c.l.b16 %v3319
  %v3388 = vunpack.c.l.b16 %v3320
  %v3389 = vunpack.c.l.b16 %v3321
  %v3390 = vpack.c.b16 %v3359, %v3358
  %v3391 = vpack.c.b16 %v3361, %v3360
  %v3392 = vpack.c.b16 %v3363, %v3362
  %v3393 = vpack.c.b16 %v3365, %v3364
  %v3394 = vpack.c.b16 %v3367, %v3366
  %v3395 = vpack.c.b16 %v3369, %v3368
  %v3396 = vpack.c.b16 %v3371, %v3370
  %v3397 = vpack.c.b16 %v3373, %v3372
  %v3398 = vpack.c.b16 %v3375, %v3374
  %v3399 = vpack.c.b16 %v3377, %v3376
  %v3400 = vpack.c.b16 %v3379, %v3378
  %v3401 = vpack.c.b16 %v3381, %v3380
  %v3402 = vpack.c.b16 %v3383, %v3382
  %v3403 = vpack.c.b16 %v3385, %v3384
  %v3404 = vpack.c.b16 %v3387, %v3386
  %v3405 = vpack.c.b16 %v3389, %v3388
  %3422 = vmatpush.bf16.msra.mxu0 %v3397
  %3423 = vmatpush.bf16.msra.mxu0 %v3396
  %3424 = vmatpush.bf16.msra.mxu0 %v3395
  %3425 = vmatpush.bf16.msra.mxu0 %v3394
  %3426 = vmatpush.bf16.msra.mxu0 %v3393
  %3427 = vmatpush.bf16.msra.mxu0 %v3392
  %3428 = vmatpush.bf16.msra.mxu0 %v3391
  %3429 = vmatpush.bf16.msra.mxu0 %v3390
  %3430 = vmatmul.bf16.gmra.mxu0 %v3288
  %v3431 = vpop.f32.mrf.mxu0
  %v3432 = vadd.f32 %v3324, %v3431
  %v3433 = vpop.f32.mrf.mxu0
  %v3434 = vadd.f32 %v3324, %v3433
  %3435 = vdwg.mxu0
  %3436 = vmatpush.bf16.msra.mxu0 %v3405
  %3437 = vmatpush.bf16.msra.mxu0 %v3404
  %3438 = vmatpush.bf16.msra.mxu0 %v3403
  %3439 = vmatpush.bf16.msra.mxu0 %v3402
  %3440 = vmatpush.bf16.msra.mxu0 %v3401
  %3441 = vmatpush.bf16.msra.mxu0 %v3400
  %3442 = vmatpush.bf16.msra.mxu0 %v3399
  %3443 = vmatpush.bf16.msra.mxu0 %v3398
  %3444 = vmatmul.bf16.gmra.mxu0 %v3289
  %v3445 = vpop.f32.mrf.mxu0
  %v3446 = vadd.f32 %v3432, %v3445
  %v3447 = vpop.f32.mrf.mxu0
  %v3448 = vadd.f32 %v3434, %v3447
  %3449 = vdwg.mxu0
  %v3450 = vmax.f32 %v3446, 0.0
  %v3451 = vmax.f32 %v3448, 0.0
  %v3452 = vpack.c.bf16 %v3451, %v3450
  %v3453 = vld [vmem:[%s5] sm:$0xf]
  %v3454 = vld [vmem:[%s5 + $0x4] sm:$0xf]
  %v3455 = vld [vmem:[%s5 + $0x8] sm:$0xf]
  %v3456 = vld [vmem:[%s5 + $0xc] sm:$0xf]
  %v3457 = vld [vmem:[%s5 + $0x10] sm:$0xf]
  %v3458 = vld [vmem:[%s5 + $0x14] sm:$0xf]
  %v3459 = vld [vmem:[%s5 + $0x18] sm:$0xf]
  %v3460 = vld [vmem:[%s5 + $0x1c] sm:$0xf]
  %v3461 = vld [vmem:[%s5 + $0x20] sm:$0xf]
  %v3462 = vld [vmem:[%s5 + $0x24] sm:$0xf]
  %v3463 = vld [vmem:[%s5 + $0x28] sm:$0xf]
  %v3464 = vld [vmem:[%s5 + $0x2c] sm:$0xf]
  %v3465 = vld [vmem:[%s5 + $0x30] sm:$0xf]
  %v3466 = vld [vmem:[%s5 + $0x34] sm:$0xf]
  %v3467 = vld [vmem:[%s5 + $0x38] sm:$0xf]
  %v3468 = vld [vmem:[%s5 + $0x3c] sm:$0xf]
  %v3469 = vld [vmem:[%s6] sm:$0x1]
  %v3471 = vperm.slane %v3469, 0
  %v3489 = vunpack.c.l.b16 %v3453
  %v3490 = vunpack.c.l.b16 %v3454
  %v3491 = vunpack.c.l.b16 %v3455
  %v3492 = vunpack.c.l.b16 %v3456
  %v3493 = vunpack.c.l.b16 %v3457
  %v3494 = vunpack.c.l.b16 %v3458
  %v3495 = vunpack.c.l.b16 %v3459
  %v3496 = vunpack.c.l.b16 %v3460
  %v3497 = vunpack.c.l.b16 %v3461
  %v3498 = vunpack.c.l.b16 %v3462
  %v3499 = vunpack.c.l.b16 %v3463
  %v3500 = vunpack.c.l.b16 %v3464
  %v3501 = vunpack.c.l.b16 %v3465
  %v3502 = vunpack.c.l.b16 %v3466
  %v3503 = vunpack.c.l.b16 %v3467
  %v3504 = vunpack.c.l.b16 %v3468
  %v3505 = vpack.c.b16 %v3490, %v3489
  %v3506 = vpack.c.b16 %v3492, %v3491
  %v3507 = vpack.c.b16 %v3494, %v3493
  %v3508 = vpack.c.b16 %v3496, %v3495
  %v3509 = vpack.c.b16 %v3498, %v3497
  %v3510 = vpack.c.b16 %v3500, %v3499
  %v3511 = vpack.c.b16 %v3502, %v3501
  %v3512 = vpack.c.b16 %v3504, %v3503
  %3521 = vmatpush.bf16.msra.mxu0 %v3512
  %3522 = vmatpush.bf16.msra.mxu0 %v3511
  %3523 = vmatpush.bf16.msra.mxu0 %v3510
  %3524 = vmatpush.bf16.msra.mxu0 %v3509
  %3525 = vmatpush.bf16.msra.mxu0 %v3508
  %3526 = vmatpush.bf16.msra.mxu0 %v3507
  %3527 = vmatpush.bf16.msra.mxu0 %v3506
  %3528 = vmatpush.bf16.msra.mxu0 %v3505
  %3529 = vmatmul.bf16.gmra.mxu0 %v3452
  %v3530 = vpop.f32.mrf.mxu0
  %v3531 = vadd.f32 %v3471, %v3530
  %v3532 = vpop.f32.mrf.mxu0
  %v3533 = vadd.f32 %v3471, %v3532
  %3534 = vdwg.mxu0
  %3535 = vst [vmem:[%s7] sm:$0xff] %v3531
  %3536 = vst [vmem:[%s7 + $0x8] sm:$0xff] %v3533
  // Predicated region
  $region30: #{_lenet_apply.5} parent=0 // pred_check
    _
  $region31: #{_lenet_apply.5} parent=0 // pred_check_branch
    %3538 = sbr.rel (0) target = $region33
  $region32: #{_lenet_apply.5} parent=0 // pred_region
    _
  $region33: #{_lenet_apply.5} parent=0 // pred_fallthru
    _
  // Predicated region
  $region34: #{_lenet_apply.5} parent=0 // pred_check
    _
  $region35: #{_lenet_apply.5} parent=0 // pred_check_branch
    %3540 = sbr.rel (0) target = $region37
  $region36: #{_lenet_apply.5} parent=0 // pred_region
    _
  $region37: #{_lenet_apply.5} parent=0 // pred_fallthru
    _

</llo_original>
